<compile_context>
chip_gen: v6e
topology: v6e:2x2x1
jax: 0.10.0
libtpu: 0.0.40
codegen_flags: <defaults>
</compile_context>

<pallas_src>
import math
import functools

import jax
import jax.numpy as jnp
from jax.experimental import pallas as pl
from jax.experimental.pallas import tpu as pltpu


# ----------------------------- Pallas kernel --------------------------------
def encoder_layer_kernel(
    x_ref,
    wq_ref, bq_ref, wk_ref, bk_ref, wv_ref, bv_ref, wo_ref, bo_ref,
    w1_ref, b1_ref, w2_ref, b2_ref,
    g1_ref, beta1_ref, g2_ref, beta2_ref,
    o_ref,
    kh_ref, vh_ref,                       # VMEM scratch: (H, S, d_k) bf16, persist over qi
    *, n_head: int, tq: int,
):
    f32 = jnp.float32
    bf16 = jnp.bfloat16

    S, D = x_ref.shape                    # leading batch dim squeezed by BlockSpec
    d_k = D // n_head
    inv_sqrt_dk = 1.0 / math.sqrt(d_k)
    eps = 1e-5                            # PyTorch nn.LayerNorm default
    qi = pl.program_id(1)

    # Hoisted parameter loads (one read per invocation).
    g1 = g1_ref[...]; beta1 = beta1_ref[...]          # (1, D)
    g2 = g2_ref[...]; beta2 = beta2_ref[...]          # (1, D)
    bq = bq_ref[...]; bo = bo_ref[...]
    b1 = b1_ref[...]; b2 = b2_ref[...]

    def layer_norm(v, gamma, beta):
        mu = jnp.mean(v, axis=-1, keepdims=True)
        c = v - mu
        var = jnp.mean(c * c, axis=-1, keepdims=True)
        return c * jax.lax.rsqrt(var + eps) * gamma + beta

    def split_heads(m):
        # (rows, D) -> (H, rows, d_k) via static lane slices (lowering-safe relayout).
        return jnp.stack([m[:, h * d_k:(h + 1) * d_k] for h in range(n_head)], axis=0)

    # ---- K/V path: computed ONCE per batch element, cached in VMEM scratch ----
    @pl.when(qi == 0)
    def _():
        xn_kv = layer_norm(x_ref[...], g1, beta1).astype(bf16)                   # (S, D)
        k = jnp.dot(xn_kv, wk_ref[...], preferred_element_type=f32) + bk_ref[...]
        v = jnp.dot(xn_kv, wv_ref[...], preferred_element_type=f32) + bv_ref[...]
        kh_ref[...] = split_heads(k).astype(bf16)                                # (H, S, dk)
        vh_ref[...] = split_heads(v).astype(bf16)

    # ---- query tile sliced from the resident full-sequence block ----
    row0 = pl.multiple_of(qi * tq, tq)
    x_q = x_ref[pl.ds(row0, tq), :]                                              # (tq, D) f32
    xn_q = layer_norm(x_q, g1, beta1).astype(bf16)
    q = jnp.dot(xn_q, wq_ref[...], preferred_element_type=f32) + bq              # (tq, D)
    q = q * inv_sqrt_dk
    qh = split_heads(q).astype(bf16)                                             # (H, tq, dk)

    kh = kh_ref[...]                                                             # (H, S, dk)
    vh = vh_ref[...]

    # ---- batched attention over heads: contract d_k directly, no k.T materialised ----
    s = jax.lax.dot_general(qh, kh, (((2,), (2,)), ((0,), (0,))),
                            preferred_element_type=f32)                          # (H, tq, S)
    s = s - jnp.max(s, axis=-1, keepdims=True)
    p = jnp.exp(s)
    p = p * pl.reciprocal(jnp.sum(p, axis=-1, keepdims=True), approx=True)       # EUP vrcp

    ctx = jax.lax.dot_general(p.astype(bf16), vh, (((2,), (1,)), ((0,), (0,))),
                              preferred_element_type=f32)                        # (H, tq, dk)

    # ---- head merge (lane concat) + single full-depth output projection ----
    ctx2d = jnp.concatenate([ctx[h] for h in range(n_head)], axis=-1).astype(bf16)  # (tq, D)
    attn = jnp.dot(ctx2d, wo_ref[...], preferred_element_type=f32) + bo             # (tq, D)

    # residual 1 (dropout1 identity in eval)
    x1 = x_q + attn

    # ---- pre-norm 2 + feed-forward (bf16 matmuls, f32 accumulate) ----
    xn2 = layer_norm(x1, g2, beta2).astype(bf16)
    hdd = jnp.dot(xn2, w1_ref[...], preferred_element_type=f32) + b1
    hdd = jnp.maximum(hdd, 0.0).astype(bf16)          # ReLU (FFN dropout identity in eval)
    ffn = jnp.dot(hdd, w2_ref[...], preferred_element_type=f32) + b2

    # residual 2
    o_ref[...] = (x1 + ffn).astype(o_ref.dtype)


# ----------------------------- wrapper ---------------------------------------
def _vmem_capacity_bytes():
    try:
        return int(pltpu.get_tpu_info().vmem_capacity_bytes)
    except Exception:
        return 64 * 1024 * 1024


def _pick_tq(S, vmem_cap):
    if S <= 128:
        return S
    max_tq = 256 if vmem_cap >= 100 * 1024 * 1024 else 128
    for c in (256, 128, 64, 32, 16, 8):
        if c <= max_tq and S % c == 0:
            return c
    # TODO(synk): odd large S falls back to a single full-S query tile; pad + mask instead
    #             for very large non-multiple-of-8 S to avoid a (H,S,S) score tensor.
    return S


def _vmem_limit_bytes(S, D, F, H, tq, single_buffer, vmem_cap):
    bf, f4 = 2, 4
    in_buf = 1 if single_buffer else 2
    weights = (4 * D * D + 2 * D * F) * bf * in_buf
    small = (7 * D + F) * f4 * in_buf                     # biases + LN params
    x_block = S * D * f4 * in_buf
    out_block = tq * D * f4 * 2                           # output stays double-buffered
    kv_scratch = 2 * H * S * max(D // H, 128) * bf        # lane-padded scratch
    attn_state = 2 * H * tq * S * f4                      # scores + probs (f32)
    ffn_state = tq * F * (f4 + bf)
    misc = 8 * tq * D * f4
    est = weights + small + x_block + out_block + kv_scratch + attn_state + ffn_state + misc
    limit = int(min(vmem_cap * 0.92, est * 1.5 + (16 << 20)))
    return max(limit, 16 << 20)


def _build_and_call(x, param_list, n_head, tq, single_buffer):
    B, S, D = x.shape
    F = param_list[8].shape[1]           # w1: (D, F)
    d_k = D // n_head
    n_q_tiles = S // tq

    def make_spec(shape, index_map):
        if single_buffer:
            try:
                return pl.BlockSpec(shape, index_map, pipeline_mode=pl.Buffered(1))
            except TypeError:
                return pl.BlockSpec(shape, index_map)
        return pl.BlockSpec(shape, index_map)

    # Full-sequence x block: index only changes with b (resident across all qi steps).
    in_specs = [make_spec((None, S, D), lambda b, qi: (b, 0, 0))]
    for p in param_list:
        in_specs.append(make_spec(p.shape, lambda b, qi, nd=p.ndim: (0,) * nd))

    vmem_cap = _vmem_capacity_bytes()
    vmem_limit = _vmem_limit_bytes(S, D, F, n_head, tq, single_buffer, vmem_cap)

    call = pl.pallas_call(
        functools.partial(encoder_layer_kernel, n_head=n_head, tq=tq),
        out_shape=jax.ShapeDtypeStruct((B, S, D), jnp.float32),
        grid_spec=pltpu.PrefetchScalarGridSpec(
            num_scalar_prefetch=0,
            grid=(B, n_q_tiles),
            in_specs=in_specs,
            out_specs=pl.BlockSpec((None, tq, D), lambda b, qi: (b, qi, 0)),
            scratch_shapes=[
                pltpu.VMEM((n_head, S, d_k), jnp.bfloat16),   # K heads, cached per b
                pltpu.VMEM((n_head, S, d_k), jnp.bfloat16),   # V heads, cached per b
            ],
        ),
        compiler_params=pltpu.CompilerParams(
            # qi must be sequential ("arbitrary"): the KV scratch carries state across it.
            dimension_semantics=("parallel", "arbitrary"),
            vmem_limit_bytes=vmem_limit,
        ),
    )
    return call(x, *param_list)


def transformer_encoder_layer(x, params, n_head, tq=None):
    B, S, D = x.shape
    assert D % n_head == 0, "d_model must be divisible by n_head"

    vmem_cap = _vmem_capacity_bytes()
    if tq is None:
        tq = _pick_tq(S, vmem_cap)
    assert S % tq == 0 and (tq % 8 == 0 or tq == S), "tq must divide S and be 8-aligned"

    bf16 = jnp.bfloat16
    # Weights cast to bf16 once here; biases / LN params stay f32.
    param_list = [
        params["wq"].astype(bf16), params["bq"],
        params["wk"].astype(bf16), params["bk"],
        params["wv"].astype(bf16), params["bv"],
        params["wo"].astype(bf16), params["bo"],
        params["w1"].astype(bf16), params["b1"],
        params["w2"].astype(bf16), params["b2"],
        params["g1"], params["beta1"], params["g2"], params["beta2"],
    ]

    try:
        # Preferred path: constant-index inputs single-buffered (halves weight VMEM).
        return _build_and_call(x, param_list, n_head, tq, single_buffer=True)
    except Exception:
        # Fallback: default double-buffering if pl.Buffered(1) is rejected by this build.
        return _build_and_call(x, param_list, n_head, tq, single_buffer=False)


# ----------------------------- reference (plain JAX, f32) --------------------
def reference(x, params, n_head):
    B, S, D = x.shape
    d_k = D // n_head
    eps = 1e-5

    def ln(v, g, b):
        mu = jnp.mean(v, -1, keepdims=True)
        var = jnp.mean((v - mu) ** 2, -1, keepdims=True)
        return (v - mu) / jnp.sqrt(var + eps) * g + b

    xn1 = ln(x, params["g1"][0], params["beta1"][0])
    q = xn1 @ params["wq"] + params["bq"][0]
    k = xn1 @ params["wk"] + params["bk"][0]
    v = xn1 @ params["wv"] + params["bv"][0]
    q = q.reshape(B, S, n_head, d_k).transpose(0, 2, 1, 3)
    k = k.reshape(B, S, n_head, d_k).transpose(0, 2, 1, 3)
    v = v.reshape(B, S, n_head, d_k).transpose(0, 2, 1, 3)
    scores = jnp.einsum("bhqd,bhkd->bhqk", q / math.sqrt(d_k), k)
    p = jax.nn.softmax(scores, axis=-1)
    attn = jnp.einsum("bhqk,bhkd->bhqd", p, v)
    attn = attn.transpose(0, 2, 1, 3).reshape(B, S, D)
    attn = attn @ params["wo"] + params["bo"][0]
    x1 = x + attn
    xn2 = ln(x1, params["g2"][0], params["beta2"][0])
    ffn = jnp.maximum(xn2 @ params["w1"] + params["b1"][0], 0.0)
    ffn = ffn @ params["w2"] + params["b2"][0]
    return x1 + ffn


# ----------------------------- param init ------------------------------------
def xavier_uniform(key, fan_in, fan_out):
    bound = math.sqrt(6.0 / (fan_in + fan_out))
    return jax.random.uniform(key, (fan_in, fan_out), jnp.float32, -bound, bound)


def make_params(key, d_model, d_ffn):
    ks = jax.random.split(key, 6)
    D, F = d_model, d_ffn
    return {
        "wq": xavier_uniform(ks[0], D, D), "bq": jnp.zeros((1, D), jnp.float32),
        "wk": xavier_uniform(ks[1], D, D), "bk": jnp.zeros((1, D), jnp.float32),
        "wv": xavier_uniform(ks[2], D, D), "bv": jnp.zeros((1, D), jnp.float32),
        "wo": xavier_uniform(ks[3], D, D), "bo": jnp.zeros((1, D), jnp.float32),
        "w1": xavier_uniform(ks[4], D, F), "b1": jnp.zeros((1, F), jnp.float32),
        "w2": xavier_uniform(ks[5], F, D), "b2": jnp.zeros((1, D), jnp.float32),
        "g1": jnp.ones((1, D), jnp.float32), "beta1": jnp.zeros((1, D), jnp.float32),
        "g2": jnp.ones((1, D), jnp.float32), "beta2": jnp.zeros((1, D), jnp.float32),
    }


# ----------------------------- main -------------------------------------------
if __name__ == "__main__":
    B, S, D, H, F = 2, 16, 32, 4, 64   # batch, seq, d_model, n_head, d_ffn

    key = jax.random.PRNGKey(0)
    kx, kp = jax.random.split(key)
    x = jax.random.normal(kx, (B, S, D), jnp.float32)
    params = make_params(kp, D, F)

    # tq=8 so the test exercises multiple query tiles per batch element
    # (qi == 0 computes the cached K/V scratch; qi == 1 reuses it).
    out = transformer_encoder_layer(x, params, H, tq=8)
    out = jax.block_until_ready(out)

    ref = reference(x, params, H)
    assert out.shape == (B, S, D)
    # bf16 matmul inputs (f32 accumulation) + approx reciprocal -> loose tolerance.
    assert jnp.allclose(out, ref, atol=5e-2, rtol=5e-2), "mismatch vs JAX reference"

    print("KERNEL_OK")
</pallas_src>

<mosaic_0001>
module attributes {stable_mosaic.version = 11 : i64} {
  func.func @encoder_layer_kernel(%arg0: i32, %arg1: i32, %arg2: memref<1x16x32xf32, #tpu.memory_space<vmem>>, %arg3: memref<32x32xbf16, #tpu.memory_space<vmem>>, %arg4: memref<1x32xf32, #tpu.memory_space<vmem>>, %arg5: memref<32x32xbf16, #tpu.memory_space<vmem>>, %arg6: memref<1x32xf32, #tpu.memory_space<vmem>>, %arg7: memref<32x32xbf16, #tpu.memory_space<vmem>>, %arg8: memref<1x32xf32, #tpu.memory_space<vmem>>, %arg9: memref<32x32xbf16, #tpu.memory_space<vmem>>, %arg10: memref<1x32xf32, #tpu.memory_space<vmem>>, %arg11: memref<32x64xbf16, #tpu.memory_space<vmem>>, %arg12: memref<1x64xf32, #tpu.memory_space<vmem>>, %arg13: memref<64x32xbf16, #tpu.memory_space<vmem>>, %arg14: memref<1x32xf32, #tpu.memory_space<vmem>>, %arg15: memref<1x32xf32, #tpu.memory_space<vmem>>, %arg16: memref<1x32xf32, #tpu.memory_space<vmem>>, %arg17: memref<1x32xf32, #tpu.memory_space<vmem>>, %arg18: memref<1x32xf32, #tpu.memory_space<vmem>>, %arg19: memref<1x8x32xf32, #tpu.memory_space<vmem>>, %arg20: memref<4x16x8xbf16, #tpu.memory_space<vmem>>, %arg21: memref<4x16x8xbf16, #tpu.memory_space<vmem>>) attributes {dimension_semantics = [#tpu.dimension_semantics<parallel>, #tpu.dimension_semantics<arbitrary>], iteration_bounds = array<i64: 2, 2>, scalar_prefetch = 0 : i64, scratch_operands = 2 : i64, tpu.core_type = #tpu.core_type<tc>, window_params = [{pipeline_mode = #tpu.pipeline_mode<synchronous>, transform_indices = @transform_0, window_bounds = array<i64: 1, 16, 32>}, {pipeline_mode = #tpu.pipeline_mode<synchronous>, transform_indices = @transform_1, window_bounds = array<i64: 32, 32>}, {pipeline_mode = #tpu.pipeline_mode<synchronous>, transform_indices = @transform_2, window_bounds = array<i64: 1, 32>}, {pipeline_mode = #tpu.pipeline_mode<synchronous>, transform_indices = @transform_3, window_bounds = array<i64: 32, 32>}, {pipeline_mode = #tpu.pipeline_mode<synchronous>, transform_indices = @transform_4, window_bounds = array<i64: 1, 32>}, {pipeline_mode = #tpu.pipeline_mode<synchronous>, transform_indices = @transform_5, window_bounds = array<i64: 32, 32>}, {pipeline_mode = #tpu.pipeline_mode<synchronous>, transform_indices = @transform_6, window_bounds = array<i64: 1, 32>}, {pipeline_mode = #tpu.pipeline_mode<synchronous>, transform_indices = @transform_7, window_bounds = array<i64: 32, 32>}, {pipeline_mode = #tpu.pipeline_mode<synchronous>, transform_indices = @transform_8, window_bounds = array<i64: 1, 32>}, {pipeline_mode = #tpu.pipeline_mode<synchronous>, transform_indices = @transform_9, window_bounds = array<i64: 32, 64>}, {pipeline_mode = #tpu.pipeline_mode<synchronous>, transform_indices = @transform_10, window_bounds = array<i64: 1, 64>}, {pipeline_mode = #tpu.pipeline_mode<synchronous>, transform_indices = @transform_11, window_bounds = array<i64: 64, 32>}, {pipeline_mode = #tpu.pipeline_mode<synchronous>, transform_indices = @transform_12, window_bounds = array<i64: 1, 32>}, {pipeline_mode = #tpu.pipeline_mode<synchronous>, transform_indices = @transform_13, window_bounds = array<i64: 1, 32>}, {pipeline_mode = #tpu.pipeline_mode<synchronous>, transform_indices = @transform_14, window_bounds = array<i64: 1, 32>}, {pipeline_mode = #tpu.pipeline_mode<synchronous>, transform_indices = @transform_15, window_bounds = array<i64: 1, 32>}, {pipeline_mode = #tpu.pipeline_mode<synchronous>, transform_indices = @transform_16, window_bounds = array<i64: 1, 32>}, {transform_indices = @transform_17, window_bounds = array<i64: 1, 8, 32>}]} {
    %c0 = arith.constant 0 : index
    %c0_0 = arith.constant 0 : index
    %0 = vector.load %arg15[%c0, %c0_0] : memref<1x32xf32, #tpu.memory_space<vmem>>, vector<1x32xf32>
    %c0_1 = arith.constant 0 : index
    %c0_2 = arith.constant 0 : index
    %1 = vector.load %arg16[%c0_1, %c0_2] : memref<1x32xf32, #tpu.memory_space<vmem>>, vector<1x32xf32>
    %c0_3 = arith.constant 0 : index
    %c0_4 = arith.constant 0 : index
    %2 = vector.load %arg17[%c0_3, %c0_4] : memref<1x32xf32, #tpu.memory_space<vmem>>, vector<1x32xf32>
    %c0_5 = arith.constant 0 : index
    %c0_6 = arith.constant 0 : index
    %3 = vector.load %arg18[%c0_5, %c0_6] : memref<1x32xf32, #tpu.memory_space<vmem>>, vector<1x32xf32>
    %c0_7 = arith.constant 0 : index
    %c0_8 = arith.constant 0 : index
    %4 = vector.load %arg4[%c0_7, %c0_8] : memref<1x32xf32, #tpu.memory_space<vmem>>, vector<1x32xf32>
    %c0_9 = arith.constant 0 : index
    %c0_10 = arith.constant 0 : index
    %5 = vector.load %arg10[%c0_9, %c0_10] : memref<1x32xf32, #tpu.memory_space<vmem>>, vector<1x32xf32>
    %c0_11 = arith.constant 0 : index
    %c0_12 = arith.constant 0 : index
    %6 = vector.load %arg12[%c0_11, %c0_12] : memref<1x64xf32, #tpu.memory_space<vmem>>, vector<1x64xf32>
    %c0_13 = arith.constant 0 : index
    %c0_14 = arith.constant 0 : index
    %7 = vector.load %arg14[%c0_13, %c0_14] : memref<1x32xf32, #tpu.memory_space<vmem>>, vector<1x32xf32>
    %c0_i32 = arith.constant 0 : i32
    %8 = arith.cmpi eq, %arg1, %c0_i32 : i32
    %9 = arith.extui %8 : i1 to i32
    %c0_i32_15 = arith.constant 0 : i32
    %10 = arith.cmpi ne, %9, %c0_i32_15 : i32
    scf.if %10 {
      %c0_54 = arith.constant 0 : index
      %c0_55 = arith.constant 0 : index
      %c0_56 = arith.constant 0 : index
      %119 = vector.load %arg2[%c0_54, %c0_55, %c0_56] : memref<1x16x32xf32, #tpu.memory_space<vmem>>, vector<1x16x32xf32>
      %120 = vector.shape_cast %119 : vector<1x16x32xf32> to vector<16x32xf32>
      %cst_57 = arith.constant dense<0.000000e+00> : vector<16xf32>
      %121 = vector.multi_reduction <add>, %120, %cst_57 [1] : vector<16x32xf32> to vector<16xf32>
      %122 = vector.shape_cast %121 : vector<16xf32> to vector<16x1xf32>
      %cst_58 = arith.constant 3.200000e+01 : f32
      %123 = vector.broadcast %cst_58 : f32 to vector<16x1xf32>
      %124 = arith.divf %122, %123 : vector<16x1xf32>
      %125 = vector.broadcast %124 : vector<16x1xf32> to vector<16x32xf32>
      %126 = arith.subf %120, %125 : vector<16x32xf32>
      %127 = arith.mulf %126, %126 : vector<16x32xf32>
      %cst_59 = arith.constant dense<0.000000e+00> : vector<16xf32>
      %128 = vector.multi_reduction <add>, %127, %cst_59 [1] : vector<16x32xf32> to vector<16xf32>
      %129 = vector.shape_cast %128 : vector<16xf32> to vector<16x1xf32>
      %cst_60 = arith.constant 3.200000e+01 : f32
      %130 = vector.broadcast %cst_60 : f32 to vector<16x1xf32>
      %131 = arith.divf %129, %130 : vector<16x1xf32>
      %cst_61 = arith.constant 9.99999974E-6 : f32
      %132 = vector.broadcast %cst_61 : f32 to vector<16x1xf32>
      %133 = arith.addf %131, %132 : vector<16x1xf32>
      %134 = math.rsqrt %133 : vector<16x1xf32>
      %135 = vector.broadcast %134 : vector<16x1xf32> to vector<16x32xf32>
      %136 = arith.mulf %126, %135 : vector<16x32xf32>
      %137 = vector.broadcast %0 : vector<1x32xf32> to vector<16x32xf32>
      %138 = arith.mulf %136, %137 : vector<16x32xf32>
      %139 = vector.broadcast %1 : vector<1x32xf32> to vector<16x32xf32>
      %140 = arith.addf %138, %139 : vector<16x32xf32>
      %141 = arith.truncf %140 : vector<16x32xf32> to vector<16x32xbf16>
      %c0_62 = arith.constant 0 : index
      %c0_63 = arith.constant 0 : index
      %142 = vector.load %arg5[%c0_62, %c0_63] : memref<32x32xbf16, #tpu.memory_space<vmem>>, vector<32x32xbf16>
      %cst_64 = arith.constant dense<0.000000e+00> : vector<16x32xf32>
      %143 = tpu.matmul %141, %142, %cst_64 {dimension_numbers = #tpu.dot_dimension_numbers<[1], [0], [0], [1], [0, 0, 1, 1], [], []>} : vector<16x32xbf16>, vector<32x32xbf16>, vector<16x32xf32> -> vector<16x32xf32>
      %c0_65 = arith.constant 0 : index
      %c0_66 = arith.constant 0 : index
      %144 = vector.load %arg6[%c0_65, %c0_66] : memref<1x32xf32, #tpu.memory_space<vmem>>, vector<1x32xf32>
      %145 = vector.broadcast %144 : vector<1x32xf32> to vector<16x32xf32>
      %146 = arith.addf %143, %145 : vector<16x32xf32>
      %c0_67 = arith.constant 0 : index
      %c0_68 = arith.constant 0 : index
      %147 = vector.load %arg7[%c0_67, %c0_68] : memref<32x32xbf16, #tpu.memory_space<vmem>>, vector<32x32xbf16>
      %cst_69 = arith.constant dense<0.000000e+00> : vector<16x32xf32>
      %148 = tpu.matmul %141, %147, %cst_69 {dimension_numbers = #tpu.dot_dimension_numbers<[1], [0], [0], [1], [0, 0, 1, 1], [], []>} : vector<16x32xbf16>, vector<32x32xbf16>, vector<16x32xf32> -> vector<16x32xf32>
      %c0_70 = arith.constant 0 : index
      %c0_71 = arith.constant 0 : index
      %149 = vector.load %arg8[%c0_70, %c0_71] : memref<1x32xf32, #tpu.memory_space<vmem>>, vector<1x32xf32>
      %150 = vector.broadcast %149 : vector<1x32xf32> to vector<16x32xf32>
      %151 = arith.addf %148, %150 : vector<16x32xf32>
      %152 = vector.extract_strided_slice %146 {offsets = [0, 0], sizes = [16, 8], strides = [1, 1]} : vector<16x32xf32> to vector<16x8xf32>
      %153 = vector.extract_strided_slice %146 {offsets = [0, 8], sizes = [16, 8], strides = [1, 1]} : vector<16x32xf32> to vector<16x8xf32>
      %154 = vector.extract_strided_slice %146 {offsets = [0, 16], sizes = [16, 8], strides = [1, 1]} : vector<16x32xf32> to vector<16x8xf32>
      %155 = vector.extract_strided_slice %146 {offsets = [0, 24], sizes = [16, 8], strides = [1, 1]} : vector<16x32xf32> to vector<16x8xf32>
      %156 = vector.shape_cast %152 : vector<16x8xf32> to vector<1x16x8xf32>
      %157 = vector.shape_cast %153 : vector<16x8xf32> to vector<1x16x8xf32>
      %158 = vector.shape_cast %154 : vector<16x8xf32> to vector<1x16x8xf32>
      %159 = vector.shape_cast %155 : vector<16x8xf32> to vector<1x16x8xf32>
      %160 = tpu.concatenate %156, %157, %158, %159 in 0 : vector<1x16x8xf32>, vector<1x16x8xf32>, vector<1x16x8xf32>, vector<1x16x8xf32> -> vector<4x16x8xf32>
      %161 = arith.truncf %160 : vector<4x16x8xf32> to vector<4x16x8xbf16>
      %c0_72 = arith.constant 0 : index
      %c0_73 = arith.constant 0 : index
      %c0_74 = arith.constant 0 : index
      %162 = vector.load %arg20[%c0_72, %c0_73, %c0_74] : memref<4x16x8xbf16, #tpu.memory_space<vmem>>, vector<4x16x8xbf16>
      tpu.vector_store %arg20[%c0_72, %c0_73, %c0_74], %161 {strides = array<i32>} : memref<4x16x8xbf16, #tpu.memory_space<vmem>>, vector<4x16x8xbf16>,
      %163 = vector.extract_strided_slice %151 {offsets = [0, 0], sizes = [16, 8], strides = [1, 1]} : vector<16x32xf32> to vector<16x8xf32>
      %164 = vector.extract_strided_slice %151 {offsets = [0, 8], sizes = [16, 8], strides = [1, 1]} : vector<16x32xf32> to vector<16x8xf32>
      %165 = vector.extract_strided_slice %151 {offsets = [0, 16], sizes = [16, 8], strides = [1, 1]} : vector<16x32xf32> to vector<16x8xf32>
      %166 = vector.extract_strided_slice %151 {offsets = [0, 24], sizes = [16, 8], strides = [1, 1]} : vector<16x32xf32> to vector<16x8xf32>
      %167 = vector.shape_cast %163 : vector<16x8xf32> to vector<1x16x8xf32>
      %168 = vector.shape_cast %164 : vector<16x8xf32> to vector<1x16x8xf32>
      %169 = vector.shape_cast %165 : vector<16x8xf32> to vector<1x16x8xf32>
      %170 = vector.shape_cast %166 : vector<16x8xf32> to vector<1x16x8xf32>
      %171 = tpu.concatenate %167, %168, %169, %170 in 0 : vector<1x16x8xf32>, vector<1x16x8xf32>, vector<1x16x8xf32>, vector<1x16x8xf32> -> vector<4x16x8xf32>
      %172 = arith.truncf %171 : vector<4x16x8xf32> to vector<4x16x8xbf16>
      %c0_75 = arith.constant 0 : index
      %c0_76 = arith.constant 0 : index
      %c0_77 = arith.constant 0 : index
      %173 = vector.load %arg21[%c0_75, %c0_76, %c0_77] : memref<4x16x8xbf16, #tpu.memory_space<vmem>>, vector<4x16x8xbf16>
      tpu.vector_store %arg21[%c0_75, %c0_76, %c0_77], %172 {strides = array<i32>} : memref<4x16x8xbf16, #tpu.memory_space<vmem>>, vector<4x16x8xbf16>,
    } else {
    }
    %c8_i32 = arith.constant 8 : i32
    %11 = arith.muli %arg1, %c8_i32 : i32
    %12 = tpu.assume_multiple %11, 8 : i32
    %c0_16 = arith.constant 0 : index
    %13 = arith.index_cast %12 : i32 to index
    %c0_17 = arith.constant 0 : index
    %14 = vector.load %arg2[%c0_16, %13, %c0_17] : memref<1x16x32xf32, #tpu.memory_space<vmem>>, vector<1x8x32xf32>
    %15 = vector.shape_cast %14 : vector<1x8x32xf32> to vector<8x32xf32>
    %cst = arith.constant dense<0.000000e+00> : vector<8xf32>
    %16 = vector.multi_reduction <add>, %15, %cst [1] : vector<8x32xf32> to vector<8xf32>
    %17 = vector.shape_cast %16 : vector<8xf32> to vector<8x1xf32>
    %cst_18 = arith.constant 3.200000e+01 : f32
    %18 = vector.broadcast %cst_18 : f32 to vector<8x1xf32>
    %19 = arith.divf %17, %18 : vector<8x1xf32>
    %20 = vector.broadcast %19 : vector<8x1xf32> to vector<8x32xf32>
    %21 = arith.subf %15, %20 : vector<8x32xf32>
    %22 = arith.mulf %21, %21 : vector<8x32xf32>
    %cst_19 = arith.constant dense<0.000000e+00> : vector<8xf32>
    %23 = vector.multi_reduction <add>, %22, %cst_19 [1] : vector<8x32xf32> to vector<8xf32>
    %24 = vector.shape_cast %23 : vector<8xf32> to vector<8x1xf32>
    %cst_20 = arith.constant 3.200000e+01 : f32
    %25 = vector.broadcast %cst_20 : f32 to vector<8x1xf32>
    %26 = arith.divf %24, %25 : vector<8x1xf32>
    %cst_21 = arith.constant 9.99999974E-6 : f32
    %27 = vector.broadcast %cst_21 : f32 to vector<8x1xf32>
    %28 = arith.addf %26, %27 : vector<8x1xf32>
    %29 = math.rsqrt %28 : vector<8x1xf32>
    %30 = vector.broadcast %29 : vector<8x1xf32> to vector<8x32xf32>
    %31 = arith.mulf %21, %30 : vector<8x32xf32>
    %32 = vector.broadcast %0 : vector<1x32xf32> to vector<8x32xf32>
    %33 = arith.mulf %31, %32 : vector<8x32xf32>
    %34 = vector.broadcast %1 : vector<1x32xf32> to vector<8x32xf32>
    %35 = arith.addf %33, %34 : vector<8x32xf32>
    %36 = arith.truncf %35 : vector<8x32xf32> to vector<8x32xbf16>
    %c0_22 = arith.constant 0 : index
    %c0_23 = arith.constant 0 : index
    %37 = vector.load %arg3[%c0_22, %c0_23] : memref<32x32xbf16, #tpu.memory_space<vmem>>, vector<32x32xbf16>
    %cst_24 = arith.constant dense<0.000000e+00> : vector<8x32xf32>
    %38 = tpu.matmul %36, %37, %cst_24 {dimension_numbers = #tpu.dot_dimension_numbers<[1], [0], [0], [1], [0, 0, 1, 1], [], []>} : vector<8x32xbf16>, vector<32x32xbf16>, vector<8x32xf32> -> vector<8x32xf32>
    %39 = vector.broadcast %4 : vector<1x32xf32> to vector<8x32xf32>
    %40 = arith.addf %38, %39 : vector<8x32xf32>
    %cst_25 = arith.constant 0.353553385 : f32
    %41 = vector.broadcast %cst_25 : f32 to vector<8x32xf32>
    %42 = arith.mulf %40, %41 : vector<8x32xf32>
    %43 = vector.extract_strided_slice %42 {offsets = [0, 0], sizes = [8, 8], strides = [1, 1]} : vector<8x32xf32> to vector<8x8xf32>
    %44 = vector.extract_strided_slice %42 {offsets = [0, 8], sizes = [8, 8], strides = [1, 1]} : vector<8x32xf32> to vector<8x8xf32>
    %45 = vector.extract_strided_slice %42 {offsets = [0, 16], sizes = [8, 8], strides = [1, 1]} : vector<8x32xf32> to vector<8x8xf32>
    %46 = vector.extract_strided_slice %42 {offsets = [0, 24], sizes = [8, 8], strides = [1, 1]} : vector<8x32xf32> to vector<8x8xf32>
    %47 = vector.shape_cast %43 : vector<8x8xf32> to vector<1x8x8xf32>
    %48 = vector.shape_cast %44 : vector<8x8xf32> to vector<1x8x8xf32>
    %49 = vector.shape_cast %45 : vector<8x8xf32> to vector<1x8x8xf32>
    %50 = vector.shape_cast %46 : vector<8x8xf32> to vector<1x8x8xf32>
    %51 = tpu.concatenate %47, %48, %49, %50 in 0 : vector<1x8x8xf32>, vector<1x8x8xf32>, vector<1x8x8xf32>, vector<1x8x8xf32> -> vector<4x8x8xf32>
    %52 = arith.truncf %51 : vector<4x8x8xf32> to vector<4x8x8xbf16>
    %c0_26 = arith.constant 0 : index
    %c0_27 = arith.constant 0 : index
    %c0_28 = arith.constant 0 : index
    %53 = vector.load %arg20[%c0_26, %c0_27, %c0_28] : memref<4x16x8xbf16, #tpu.memory_space<vmem>>, vector<4x16x8xbf16>
    %c0_29 = arith.constant 0 : index
    %c0_30 = arith.constant 0 : index
    %c0_31 = arith.constant 0 : index
    %54 = vector.load %arg21[%c0_29, %c0_30, %c0_31] : memref<4x16x8xbf16, #tpu.memory_space<vmem>>, vector<4x16x8xbf16>
    %cst_32 = arith.constant dense<0.000000e+00> : vector<4x8x16xf32>
    %55 = tpu.matmul %52, %53, %cst_32 {dimension_numbers = #tpu.dot_dimension_numbers<[2], [2], [1], [1], [0, 0, 0, 1, 1, 1], [0], [0]>} : vector<4x8x8xbf16>, vector<4x16x8xbf16>, vector<4x8x16xf32> -> vector<4x8x16xf32>
    %cst_33 = arith.constant dense<0xFF800000> : vector<4x8xf32>
    %56 = vector.multi_reduction <maximumf>, %55, %cst_33 [2] : vector<4x8x16xf32> to vector<4x8xf32>
    %57 = vector.shape_cast %56 : vector<4x8xf32> to vector<4x8x1xf32>
    %58 = vector.broadcast %57 : vector<4x8x1xf32> to vector<4x8x16xf32>
    %59 = arith.subf %55, %58 : vector<4x8x16xf32>
    %60 = math.exp %59 : vector<4x8x16xf32>
    %cst_34 = arith.constant dense<0.000000e+00> : vector<4x8xf32>
    %61 = vector.multi_reduction <add>, %60, %cst_34 [2] : vector<4x8x16xf32> to vector<4x8xf32>
    %62 = vector.shape_cast %61 : vector<4x8xf32> to vector<4x8x1xf32>
    %63 = tpu.reciprocal %62 {approx = true} : vector<4x8x1xf32> -> vector<4x8x1xf32>
    %64 = vector.broadcast %63 : vector<4x8x1xf32> to vector<4x8x16xf32>
    %65 = arith.mulf %60, %64 : vector<4x8x16xf32>
    %66 = arith.truncf %65 : vector<4x8x16xf32> to vector<4x8x16xbf16>
    %cst_35 = arith.constant dense<0.000000e+00> : vector<4x8x8xf32>
    %67 = tpu.matmul %66, %54, %cst_35 {dimension_numbers = #tpu.dot_dimension_numbers<[2], [1], [1], [2], [0, 0, 0, 1, 1, 2], [0], [0]>} : vector<4x8x16xbf16>, vector<4x16x8xbf16>, vector<4x8x8xf32> -> vector<4x8x8xf32>
    %68 = vector.extract_strided_slice %67 {offsets = [0, 0, 0], sizes = [1, 8, 8], strides = [1, 1, 1]} : vector<4x8x8xf32> to vector<1x8x8xf32>
    %69 = vector.shape_cast %68 : vector<1x8x8xf32> to vector<8x8xf32>
    %70 = vector.extract_strided_slice %67 {offsets = [1, 0, 0], sizes = [1, 8, 8], strides = [1, 1, 1]} : vector<4x8x8xf32> to vector<1x8x8xf32>
    %71 = vector.shape_cast %70 : vector<1x8x8xf32> to vector<8x8xf32>
    %72 = vector.extract_strided_slice %67 {offsets = [2, 0, 0], sizes = [1, 8, 8], strides = [1, 1, 1]} : vector<4x8x8xf32> to vector<1x8x8xf32>
    %73 = vector.shape_cast %72 : vector<1x8x8xf32> to vector<8x8xf32>
    %74 = vector.extract_strided_slice %67 {offsets = [3, 0, 0], sizes = [1, 8, 8], strides = [1, 1, 1]} : vector<4x8x8xf32> to vector<1x8x8xf32>
    %75 = vector.shape_cast %74 : vector<1x8x8xf32> to vector<8x8xf32>
    %76 = tpu.concatenate %69, %71, %73, %75 in 1 : vector<8x8xf32>, vector<8x8xf32>, vector<8x8xf32>, vector<8x8xf32> -> vector<8x32xf32>
    %77 = arith.truncf %76 : vector<8x32xf32> to vector<8x32xbf16>
    %c0_36 = arith.constant 0 : index
    %c0_37 = arith.constant 0 : index
    %78 = vector.load %arg9[%c0_36, %c0_37] : memref<32x32xbf16, #tpu.memory_space<vmem>>, vector<32x32xbf16>
    %cst_38 = arith.constant dense<0.000000e+00> : vector<8x32xf32>
    %79 = tpu.matmul %77, %78, %cst_38 {dimension_numbers = #tpu.dot_dimension_numbers<[1], [0], [0], [1], [0, 0, 1, 1], [], []>} : vector<8x32xbf16>, vector<32x32xbf16>, vector<8x32xf32> -> vector<8x32xf32>
    %80 = vector.broadcast %5 : vector<1x32xf32> to vector<8x32xf32>
    %81 = arith.addf %79, %80 : vector<8x32xf32>
    %82 = arith.addf %15, %81 : vector<8x32xf32>
    %cst_39 = arith.constant dense<0.000000e+00> : vector<8xf32>
    %83 = vector.multi_reduction <add>, %82, %cst_39 [1] : vector<8x32xf32> to vector<8xf32>
    %84 = vector.shape_cast %83 : vector<8xf32> to vector<8x1xf32>
    %cst_40 = arith.constant 3.200000e+01 : f32
    %85 = vector.broadcast %cst_40 : f32 to vector<8x1xf32>
    %86 = arith.divf %84, %85 : vector<8x1xf32>
    %87 = vector.broadcast %86 : vector<8x1xf32> to vector<8x32xf32>
    %88 = arith.subf %82, %87 : vector<8x32xf32>
    %89 = arith.mulf %88, %88 : vector<8x32xf32>
    %cst_41 = arith.constant dense<0.000000e+00> : vector<8xf32>
    %90 = vector.multi_reduction <add>, %89, %cst_41 [1] : vector<8x32xf32> to vector<8xf32>
    %91 = vector.shape_cast %90 : vector<8xf32> to vector<8x1xf32>
    %cst_42 = arith.constant 3.200000e+01 : f32
    %92 = vector.broadcast %cst_42 : f32 to vector<8x1xf32>
    %93 = arith.divf %91, %92 : vector<8x1xf32>
    %cst_43 = arith.constant 9.99999974E-6 : f32
    %94 = vector.broadcast %cst_43 : f32 to vector<8x1xf32>
    %95 = arith.addf %93, %94 : vector<8x1xf32>
    %96 = math.rsqrt %95 : vector<8x1xf32>
    %97 = vector.broadcast %96 : vector<8x1xf32> to vector<8x32xf32>
    %98 = arith.mulf %88, %97 : vector<8x32xf32>
    %99 = vector.broadcast %2 : vector<1x32xf32> to vector<8x32xf32>
    %100 = arith.mulf %98, %99 : vector<8x32xf32>
    %101 = vector.broadcast %3 : vector<1x32xf32> to vector<8x32xf32>
    %102 = arith.addf %100, %101 : vector<8x32xf32>
    %103 = arith.truncf %102 : vector<8x32xf32> to vector<8x32xbf16>
    %c0_44 = arith.constant 0 : index
    %c0_45 = arith.constant 0 : index
    %104 = vector.load %arg11[%c0_44, %c0_45] : memref<32x64xbf16, #tpu.memory_space<vmem>>, vector<32x64xbf16>
    %cst_46 = arith.constant dense<0.000000e+00> : vector<8x64xf32>
    %105 = tpu.matmul %103, %104, %cst_46 {dimension_numbers = #tpu.dot_dimension_numbers<[1], [0], [0], [1], [0, 0, 1, 1], [], []>} : vector<8x32xbf16>, vector<32x64xbf16>, vector<8x64xf32> -> vector<8x64xf32>
    %106 = vector.broadcast %6 : vector<1x64xf32> to vector<8x64xf32>
    %107 = arith.addf %105, %106 : vector<8x64xf32>
    %cst_47 = arith.constant 0.000000e+00 : f32
    %108 = vector.broadcast %cst_47 : f32 to vector<8x64xf32>
    %109 = arith.maximumf %107, %108 : vector<8x64xf32>
    %110 = arith.truncf %109 : vector<8x64xf32> to vector<8x64xbf16>
    %c0_48 = arith.constant 0 : index
    %c0_49 = arith.constant 0 : index
    %111 = vector.load %arg13[%c0_48, %c0_49] : memref<64x32xbf16, #tpu.memory_space<vmem>>, vector<64x32xbf16>
    %cst_50 = arith.constant dense<0.000000e+00> : vector<8x32xf32>
    %112 = tpu.matmul %110, %111, %cst_50 {dimension_numbers = #tpu.dot_dimension_numbers<[1], [0], [0], [1], [0, 0, 1, 1], [], []>} : vector<8x64xbf16>, vector<64x32xbf16>, vector<8x32xf32> -> vector<8x32xf32>
    %113 = vector.broadcast %7 : vector<1x32xf32> to vector<8x32xf32>
    %114 = arith.addf %112, %113 : vector<8x32xf32>
    %115 = arith.addf %82, %114 : vector<8x32xf32>
    %c0_51 = arith.constant 0 : index
    %c0_52 = arith.constant 0 : index
    %c0_53 = arith.constant 0 : index
    %116 = vector.load %arg19[%c0_51, %c0_52, %c0_53] : memref<1x8x32xf32, #tpu.memory_space<vmem>>, vector<1x8x32xf32>
    %117 = vector.shape_cast %116 : vector<1x8x32xf32> to vector<8x32xf32>
    %118 = vector.shape_cast %115 : vector<8x32xf32> to vector<1x8x32xf32>
    tpu.vector_store %arg19[%c0_51, %c0_52, %c0_53], %118 {strides = array<i32>} : memref<1x8x32xf32, #tpu.memory_space<vmem>>, vector<1x8x32xf32>,
    return
  }
  func.func @transform_0(%arg0: i32, %arg1: i32) -> (i32, i32, i32) {
    %c0_i32 = arith.constant 0 : i32
    %c0_i32_0 = arith.constant 0 : i32
    %c0_i32_1 = arith.constant 0 : i32
    return %arg0, %c0_i32, %c0_i32_0 : i32, i32, i32
  }
  func.func @transform_1(%arg0: i32, %arg1: i32) -> (i32, i32) {
    %c0_i32 = arith.constant 0 : i32
    %c0_i32_0 = arith.constant 0 : i32
    %c0_i32_1 = arith.constant 0 : i32
    return %c0_i32, %c0_i32_0 : i32, i32
  }
  func.func @transform_2(%arg0: i32, %arg1: i32) -> (i32, i32) {
    %c0_i32 = arith.constant 0 : i32
    %c0_i32_0 = arith.constant 0 : i32
    %c0_i32_1 = arith.constant 0 : i32
    return %c0_i32, %c0_i32_0 : i32, i32
  }
  func.func @transform_3(%arg0: i32, %arg1: i32) -> (i32, i32) {
    %c0_i32 = arith.constant 0 : i32
    %c0_i32_0 = arith.constant 0 : i32
    %c0_i32_1 = arith.constant 0 : i32
    return %c0_i32, %c0_i32_0 : i32, i32
  }
  func.func @transform_4(%arg0: i32, %arg1: i32) -> (i32, i32) {
    %c0_i32 = arith.constant 0 : i32
    %c0_i32_0 = arith.constant 0 : i32
    %c0_i32_1 = arith.constant 0 : i32
    return %c0_i32, %c0_i32_0 : i32, i32
  }
  func.func @transform_5(%arg0: i32, %arg1: i32) -> (i32, i32) {
    %c0_i32 = arith.constant 0 : i32
    %c0_i32_0 = arith.constant 0 : i32
    %c0_i32_1 = arith.constant 0 : i32
    return %c0_i32, %c0_i32_0 : i32, i32
  }
  func.func @transform_6(%arg0: i32, %arg1: i32) -> (i32, i32) {
    %c0_i32 = arith.constant 0 : i32
    %c0_i32_0 = arith.constant 0 : i32
    %c0_i32_1 = arith.constant 0 : i32
    return %c0_i32, %c0_i32_0 : i32, i32
  }
  func.func @transform_7(%arg0: i32, %arg1: i32) -> (i32, i32) {
    %c0_i32 = arith.constant 0 : i32
    %c0_i32_0 = arith.constant 0 : i32
    %c0_i32_1 = arith.constant 0 : i32
    return %c0_i32, %c0_i32_0 : i32, i32
  }
  func.func @transform_8(%arg0: i32, %arg1: i32) -> (i32, i32) {
    %c0_i32 = arith.constant 0 : i32
    %c0_i32_0 = arith.constant 0 : i32
    %c0_i32_1 = arith.constant 0 : i32
    return %c0_i32, %c0_i32_0 : i32, i32
  }
  func.func @transform_9(%arg0: i32, %arg1: i32) -> (i32, i32) {
    %c0_i32 = arith.constant 0 : i32
    %c0_i32_0 = arith.constant 0 : i32
    %c0_i32_1 = arith.constant 0 : i32
    return %c0_i32, %c0_i32_0 : i32, i32
  }
  func.func @transform_10(%arg0: i32, %arg1: i32) -> (i32, i32) {
    %c0_i32 = arith.constant 0 : i32
    %c0_i32_0 = arith.constant 0 : i32
    %c0_i32_1 = arith.constant 0 : i32
    return %c0_i32, %c0_i32_0 : i32, i32
  }
  func.func @transform_11(%arg0: i32, %arg1: i32) -> (i32, i32) {
    %c0_i32 = arith.constant 0 : i32
    %c0_i32_0 = arith.constant 0 : i32
    %c0_i32_1 = arith.constant 0 : i32
    return %c0_i32, %c0_i32_0 : i32, i32
  }
  func.func @transform_12(%arg0: i32, %arg1: i32) -> (i32, i32) {
    %c0_i32 = arith.constant 0 : i32
    %c0_i32_0 = arith.constant 0 : i32
    %c0_i32_1 = arith.constant 0 : i32
    return %c0_i32, %c0_i32_0 : i32, i32
  }
  func.func @transform_13(%arg0: i32, %arg1: i32) -> (i32, i32) {
    %c0_i32 = arith.constant 0 : i32
    %c0_i32_0 = arith.constant 0 : i32
    %c0_i32_1 = arith.constant 0 : i32
    return %c0_i32, %c0_i32_0 : i32, i32
  }
  func.func @transform_14(%arg0: i32, %arg1: i32) -> (i32, i32) {
    %c0_i32 = arith.constant 0 : i32
    %c0_i32_0 = arith.constant 0 : i32
    %c0_i32_1 = arith.constant 0 : i32
    return %c0_i32, %c0_i32_0 : i32, i32
  }
  func.func @transform_15(%arg0: i32, %arg1: i32) -> (i32, i32) {
    %c0_i32 = arith.constant 0 : i32
    %c0_i32_0 = arith.constant 0 : i32
    %c0_i32_1 = arith.constant 0 : i32
    return %c0_i32, %c0_i32_0 : i32, i32
  }
  func.func @transform_16(%arg0: i32, %arg1: i32) -> (i32, i32) {
    %c0_i32 = arith.constant 0 : i32
    %c0_i32_0 = arith.constant 0 : i32
    %c0_i32_1 = arith.constant 0 : i32
    return %c0_i32, %c0_i32_0 : i32, i32
  }
  func.func @transform_17(%arg0: i32, %arg1: i32) -> (i32, i32, i32) {
    %c0_i32 = arith.constant 0 : i32
    %c0_i32_0 = arith.constant 0 : i32
    return %arg0, %arg1, %c0_i32 : i32, i32, i32
  }
}

module attributes {stable_mosaic.version = 11 : i64} {
  func.func @encoder_layer_kernel(%arg0: i32, %arg1: i32, %arg2: memref<1x16x32xf32, #tpu.memory_space<vmem>>, %arg3: memref<32x32xbf16, #tpu.memory_space<vmem>>, %arg4: memref<1x32xf32, #tpu.memory_space<vmem>>, %arg5: memref<32x32xbf16, #tpu.memory_space<vmem>>, %arg6: memref<1x32xf32, #tpu.memory_space<vmem>>, %arg7: memref<32x32xbf16, #tpu.memory_space<vmem>>, %arg8: memref<1x32xf32, #tpu.memory_space<vmem>>, %arg9: memref<32x32xbf16, #tpu.memory_space<vmem>>, %arg10: memref<1x32xf32, #tpu.memory_space<vmem>>, %arg11: memref<32x64xbf16, #tpu.memory_space<vmem>>, %arg12: memref<1x64xf32, #tpu.memory_space<vmem>>, %arg13: memref<64x32xbf16, #tpu.memory_space<vmem>>, %arg14: memref<1x32xf32, #tpu.memory_space<vmem>>, %arg15: memref<1x32xf32, #tpu.memory_space<vmem>>, %arg16: memref<1x32xf32, #tpu.memory_space<vmem>>, %arg17: memref<1x32xf32, #tpu.memory_space<vmem>>, %arg18: memref<1x32xf32, #tpu.memory_space<vmem>>, %arg19: memref<1x8x32xf32, #tpu.memory_space<vmem>>, %arg20: memref<4x16x8xbf16, #tpu.memory_space<vmem>>, %arg21: memref<4x16x8xbf16, #tpu.memory_space<vmem>>) attributes {dimension_semantics = [#tpu.dimension_semantics<parallel>, #tpu.dimension_semantics<arbitrary>], iteration_bounds = array<i64: 2, 2>, scalar_prefetch = 0 : i64, scratch_operands = 2 : i64, tpu.core_type = #tpu.core_type<tc>, window_params = [{transform_indices = @transform_0, window_bounds = array<i64: 1, 16, 32>}, {pipeline_mode = #tpu.pipeline_mode<synchronous>, transform_indices = @transform_1, window_bounds = array<i64: 32, 32>}, {pipeline_mode = #tpu.pipeline_mode<synchronous>, transform_indices = @transform_2, window_bounds = array<i64: 1, 32>}, {pipeline_mode = #tpu.pipeline_mode<synchronous>, transform_indices = @transform_3, window_bounds = array<i64: 32, 32>}, {pipeline_mode = #tpu.pipeline_mode<synchronous>, transform_indices = @transform_4, window_bounds = array<i64: 1, 32>}, {pipeline_mode = #tpu.pipeline_mode<synchronous>, transform_indices = @transform_5, window_bounds = array<i64: 32, 32>}, {pipeline_mode = #tpu.pipeline_mode<synchronous>, transform_indices = @transform_6, window_bounds = array<i64: 1, 32>}, {pipeline_mode = #tpu.pipeline_mode<synchronous>, transform_indices = @transform_7, window_bounds = array<i64: 32, 32>}, {pipeline_mode = #tpu.pipeline_mode<synchronous>, transform_indices = @transform_8, window_bounds = array<i64: 1, 32>}, {pipeline_mode = #tpu.pipeline_mode<synchronous>, transform_indices = @transform_9, window_bounds = array<i64: 32, 64>}, {pipeline_mode = #tpu.pipeline_mode<synchronous>, transform_indices = @transform_10, window_bounds = array<i64: 1, 64>}, {pipeline_mode = #tpu.pipeline_mode<synchronous>, transform_indices = @transform_11, window_bounds = array<i64: 64, 32>}, {pipeline_mode = #tpu.pipeline_mode<synchronous>, transform_indices = @transform_12, window_bounds = array<i64: 1, 32>}, {pipeline_mode = #tpu.pipeline_mode<synchronous>, transform_indices = @transform_13, window_bounds = array<i64: 1, 32>}, {pipeline_mode = #tpu.pipeline_mode<synchronous>, transform_indices = @transform_14, window_bounds = array<i64: 1, 32>}, {pipeline_mode = #tpu.pipeline_mode<synchronous>, transform_indices = @transform_15, window_bounds = array<i64: 1, 32>}, {pipeline_mode = #tpu.pipeline_mode<synchronous>, transform_indices = @transform_16, window_bounds = array<i64: 1, 32>}, {transform_indices = @transform_17, window_bounds = array<i64: 1, 8, 32>}]} {
    %c0 = arith.constant 0 : index
    %c0_0 = arith.constant 0 : index
    %0 = vector.load %arg15[%c0, %c0_0] : memref<1x32xf32, #tpu.memory_space<vmem>>, vector<1x32xf32>
    %c0_1 = arith.constant 0 : index
    %c0_2 = arith.constant 0 : index
    %1 = vector.load %arg16[%c0_1, %c0_2] : memref<1x32xf32, #tpu.memory_space<vmem>>, vector<1x32xf32>
    %c0_3 = arith.constant 0 : index
    %c0_4 = arith.constant 0 : index
    %2 = vector.load %arg17[%c0_3, %c0_4] : memref<1x32xf32, #tpu.memory_space<vmem>>, vector<1x32xf32>
    %c0_5 = arith.constant 0 : index
    %c0_6 = arith.constant 0 : index
    %3 = vector.load %arg18[%c0_5, %c0_6] : memref<1x32xf32, #tpu.memory_space<vmem>>, vector<1x32xf32>
    %c0_7 = arith.constant 0 : index
    %c0_8 = arith.constant 0 : index
    %4 = vector.load %arg4[%c0_7, %c0_8] : memref<1x32xf32, #tpu.memory_space<vmem>>, vector<1x32xf32>
    %c0_9 = arith.constant 0 : index
    %c0_10 = arith.constant 0 : index
    %5 = vector.load %arg10[%c0_9, %c0_10] : memref<1x32xf32, #tpu.memory_space<vmem>>, vector<1x32xf32>
    %c0_11 = arith.constant 0 : index
    %c0_12 = arith.constant 0 : index
    %6 = vector.load %arg12[%c0_11, %c0_12] : memref<1x64xf32, #tpu.memory_space<vmem>>, vector<1x64xf32>
    %c0_13 = arith.constant 0 : index
    %c0_14 = arith.constant 0 : index
    %7 = vector.load %arg14[%c0_13, %c0_14] : memref<1x32xf32, #tpu.memory_space<vmem>>, vector<1x32xf32>
    %c0_i32 = arith.constant 0 : i32
    %8 = arith.cmpi eq, %arg1, %c0_i32 : i32
    %9 = arith.extui %8 : i1 to i32
    %c0_i32_15 = arith.constant 0 : i32
    %10 = arith.cmpi ne, %9, %c0_i32_15 : i32
    scf.if %10 {
      %c0_54 = arith.constant 0 : index
      %c0_55 = arith.constant 0 : index
      %c0_56 = arith.constant 0 : index
      %119 = vector.load %arg2[%c0_54, %c0_55, %c0_56] : memref<1x16x32xf32, #tpu.memory_space<vmem>>, vector<1x16x32xf32>
      %120 = vector.shape_cast %119 : vector<1x16x32xf32> to vector<16x32xf32>
      %cst_57 = arith.constant dense<0.000000e+00> : vector<16xf32>
      %121 = vector.multi_reduction <add>, %120, %cst_57 [1] : vector<16x32xf32> to vector<16xf32>
      %122 = vector.shape_cast %121 : vector<16xf32> to vector<16x1xf32>
      %cst_58 = arith.constant 3.200000e+01 : f32
      %123 = vector.broadcast %cst_58 : f32 to vector<16x1xf32>
      %124 = arith.divf %122, %123 : vector<16x1xf32>
      %125 = vector.broadcast %124 : vector<16x1xf32> to vector<16x32xf32>
      %126 = arith.subf %120, %125 : vector<16x32xf32>
      %127 = arith.mulf %126, %126 : vector<16x32xf32>
      %cst_59 = arith.constant dense<0.000000e+00> : vector<16xf32>
      %128 = vector.multi_reduction <add>, %127, %cst_59 [1] : vector<16x32xf32> to vector<16xf32>
      %129 = vector.shape_cast %128 : vector<16xf32> to vector<16x1xf32>
      %cst_60 = arith.constant 3.200000e+01 : f32
      %130 = vector.broadcast %cst_60 : f32 to vector<16x1xf32>
      %131 = arith.divf %129, %130 : vector<16x1xf32>
      %cst_61 = arith.constant 9.99999974E-6 : f32
      %132 = vector.broadcast %cst_61 : f32 to vector<16x1xf32>
      %133 = arith.addf %131, %132 : vector<16x1xf32>
      %134 = math.rsqrt %133 : vector<16x1xf32>
      %135 = vector.broadcast %134 : vector<16x1xf32> to vector<16x32xf32>
      %136 = arith.mulf %126, %135 : vector<16x32xf32>
      %137 = vector.broadcast %0 : vector<1x32xf32> to vector<16x32xf32>
      %138 = arith.mulf %136, %137 : vector<16x32xf32>
      %139 = vector.broadcast %1 : vector<1x32xf32> to vector<16x32xf32>
      %140 = arith.addf %138, %139 : vector<16x32xf32>
      %141 = arith.truncf %140 : vector<16x32xf32> to vector<16x32xbf16>
      %c0_62 = arith.constant 0 : index
      %c0_63 = arith.constant 0 : index
      %142 = vector.load %arg5[%c0_62, %c0_63] : memref<32x32xbf16, #tpu.memory_space<vmem>>, vector<32x32xbf16>
      %cst_64 = arith.constant dense<0.000000e+00> : vector<16x32xf32>
      %143 = tpu.matmul %141, %142, %cst_64 {dimension_numbers = #tpu.dot_dimension_numbers<[1], [0], [0], [1], [0, 0, 1, 1], [], []>} : vector<16x32xbf16>, vector<32x32xbf16>, vector<16x32xf32> -> vector<16x32xf32>
      %c0_65 = arith.constant 0 : index
      %c0_66 = arith.constant 0 : index
      %144 = vector.load %arg6[%c0_65, %c0_66] : memref<1x32xf32, #tpu.memory_space<vmem>>, vector<1x32xf32>
      %145 = vector.broadcast %144 : vector<1x32xf32> to vector<16x32xf32>
      %146 = arith.addf %143, %145 : vector<16x32xf32>
      %c0_67 = arith.constant 0 : index
      %c0_68 = arith.constant 0 : index
      %147 = vector.load %arg7[%c0_67, %c0_68] : memref<32x32xbf16, #tpu.memory_space<vmem>>, vector<32x32xbf16>
      %cst_69 = arith.constant dense<0.000000e+00> : vector<16x32xf32>
      %148 = tpu.matmul %141, %147, %cst_69 {dimension_numbers = #tpu.dot_dimension_numbers<[1], [0], [0], [1], [0, 0, 1, 1], [], []>} : vector<16x32xbf16>, vector<32x32xbf16>, vector<16x32xf32> -> vector<16x32xf32>
      %c0_70 = arith.constant 0 : index
      %c0_71 = arith.constant 0 : index
      %149 = vector.load %arg8[%c0_70, %c0_71] : memref<1x32xf32, #tpu.memory_space<vmem>>, vector<1x32xf32>
      %150 = vector.broadcast %149 : vector<1x32xf32> to vector<16x32xf32>
      %151 = arith.addf %148, %150 : vector<16x32xf32>
      %152 = vector.extract_strided_slice %146 {offsets = [0, 0], sizes = [16, 8], strides = [1, 1]} : vector<16x32xf32> to vector<16x8xf32>
      %153 = vector.extract_strided_slice %146 {offsets = [0, 8], sizes = [16, 8], strides = [1, 1]} : vector<16x32xf32> to vector<16x8xf32>
      %154 = vector.extract_strided_slice %146 {offsets = [0, 16], sizes = [16, 8], strides = [1, 1]} : vector<16x32xf32> to vector<16x8xf32>
      %155 = vector.extract_strided_slice %146 {offsets = [0, 24], sizes = [16, 8], strides = [1, 1]} : vector<16x32xf32> to vector<16x8xf32>
      %156 = vector.shape_cast %152 : vector<16x8xf32> to vector<1x16x8xf32>
      %157 = vector.shape_cast %153 : vector<16x8xf32> to vector<1x16x8xf32>
      %158 = vector.shape_cast %154 : vector<16x8xf32> to vector<1x16x8xf32>
      %159 = vector.shape_cast %155 : vector<16x8xf32> to vector<1x16x8xf32>
      %160 = tpu.concatenate %156, %157, %158, %159 in 0 : vector<1x16x8xf32>, vector<1x16x8xf32>, vector<1x16x8xf32>, vector<1x16x8xf32> -> vector<4x16x8xf32>
      %161 = arith.truncf %160 : vector<4x16x8xf32> to vector<4x16x8xbf16>
      %c0_72 = arith.constant 0 : index
      %c0_73 = arith.constant 0 : index
      %c0_74 = arith.constant 0 : index
      %162 = vector.load %arg20[%c0_72, %c0_73, %c0_74] : memref<4x16x8xbf16, #tpu.memory_space<vmem>>, vector<4x16x8xbf16>
      tpu.vector_store %arg20[%c0_72, %c0_73, %c0_74], %161 {strides = array<i32>} : memref<4x16x8xbf16, #tpu.memory_space<vmem>>, vector<4x16x8xbf16>,
      %163 = vector.extract_strided_slice %151 {offsets = [0, 0], sizes = [16, 8], strides = [1, 1]} : vector<16x32xf32> to vector<16x8xf32>
      %164 = vector.extract_strided_slice %151 {offsets = [0, 8], sizes = [16, 8], strides = [1, 1]} : vector<16x32xf32> to vector<16x8xf32>
      %165 = vector.extract_strided_slice %151 {offsets = [0, 16], sizes = [16, 8], strides = [1, 1]} : vector<16x32xf32> to vector<16x8xf32>
      %166 = vector.extract_strided_slice %151 {offsets = [0, 24], sizes = [16, 8], strides = [1, 1]} : vector<16x32xf32> to vector<16x8xf32>
      %167 = vector.shape_cast %163 : vector<16x8xf32> to vector<1x16x8xf32>
      %168 = vector.shape_cast %164 : vector<16x8xf32> to vector<1x16x8xf32>
      %169 = vector.shape_cast %165 : vector<16x8xf32> to vector<1x16x8xf32>
      %170 = vector.shape_cast %166 : vector<16x8xf32> to vector<1x16x8xf32>
      %171 = tpu.concatenate %167, %168, %169, %170 in 0 : vector<1x16x8xf32>, vector<1x16x8xf32>, vector<1x16x8xf32>, vector<1x16x8xf32> -> vector<4x16x8xf32>
      %172 = arith.truncf %171 : vector<4x16x8xf32> to vector<4x16x8xbf16>
      %c0_75 = arith.constant 0 : index
      %c0_76 = arith.constant 0 : index
      %c0_77 = arith.constant 0 : index
      %173 = vector.load %arg21[%c0_75, %c0_76, %c0_77] : memref<4x16x8xbf16, #tpu.memory_space<vmem>>, vector<4x16x8xbf16>
      tpu.vector_store %arg21[%c0_75, %c0_76, %c0_77], %172 {strides = array<i32>} : memref<4x16x8xbf16, #tpu.memory_space<vmem>>, vector<4x16x8xbf16>,
    } else {
    }
    %c8_i32 = arith.constant 8 : i32
    %11 = arith.muli %arg1, %c8_i32 : i32
    %12 = tpu.assume_multiple %11, 8 : i32
    %c0_16 = arith.constant 0 : index
    %13 = arith.index_cast %12 : i32 to index
    %c0_17 = arith.constant 0 : index
    %14 = vector.load %arg2[%c0_16, %13, %c0_17] : memref<1x16x32xf32, #tpu.memory_space<vmem>>, vector<1x8x32xf32>
    %15 = vector.shape_cast %14 : vector<1x8x32xf32> to vector<8x32xf32>
    %cst = arith.constant dense<0.000000e+00> : vector<8xf32>
    %16 = vector.multi_reduction <add>, %15, %cst [1] : vector<8x32xf32> to vector<8xf32>
    %17 = vector.shape_cast %16 : vector<8xf32> to vector<8x1xf32>
    %cst_18 = arith.constant 3.200000e+01 : f32
    %18 = vector.broadcast %cst_18 : f32 to vector<8x1xf32>
    %19 = arith.divf %17, %18 : vector<8x1xf32>
    %20 = vector.broadcast %19 : vector<8x1xf32> to vector<8x32xf32>
    %21 = arith.subf %15, %20 : vector<8x32xf32>
    %22 = arith.mulf %21, %21 : vector<8x32xf32>
    %cst_19 = arith.constant dense<0.000000e+00> : vector<8xf32>
    %23 = vector.multi_reduction <add>, %22, %cst_19 [1] : vector<8x32xf32> to vector<8xf32>
    %24 = vector.shape_cast %23 : vector<8xf32> to vector<8x1xf32>
    %cst_20 = arith.constant 3.200000e+01 : f32
    %25 = vector.broadcast %cst_20 : f32 to vector<8x1xf32>
    %26 = arith.divf %24, %25 : vector<8x1xf32>
    %cst_21 = arith.constant 9.99999974E-6 : f32
    %27 = vector.broadcast %cst_21 : f32 to vector<8x1xf32>
    %28 = arith.addf %26, %27 : vector<8x1xf32>
    %29 = math.rsqrt %28 : vector<8x1xf32>
    %30 = vector.broadcast %29 : vector<8x1xf32> to vector<8x32xf32>
    %31 = arith.mulf %21, %30 : vector<8x32xf32>
    %32 = vector.broadcast %0 : vector<1x32xf32> to vector<8x32xf32>
    %33 = arith.mulf %31, %32 : vector<8x32xf32>
    %34 = vector.broadcast %1 : vector<1x32xf32> to vector<8x32xf32>
    %35 = arith.addf %33, %34 : vector<8x32xf32>
    %36 = arith.truncf %35 : vector<8x32xf32> to vector<8x32xbf16>
    %c0_22 = arith.constant 0 : index
    %c0_23 = arith.constant 0 : index
    %37 = vector.load %arg3[%c0_22, %c0_23] : memref<32x32xbf16, #tpu.memory_space<vmem>>, vector<32x32xbf16>
    %cst_24 = arith.constant dense<0.000000e+00> : vector<8x32xf32>
    %38 = tpu.matmul %36, %37, %cst_24 {dimension_numbers = #tpu.dot_dimension_numbers<[1], [0], [0], [1], [0, 0, 1, 1], [], []>} : vector<8x32xbf16>, vector<32x32xbf16>, vector<8x32xf32> -> vector<8x32xf32>
    %39 = vector.broadcast %4 : vector<1x32xf32> to vector<8x32xf32>
    %40 = arith.addf %38, %39 : vector<8x32xf32>
    %cst_25 = arith.constant 0.353553385 : f32
    %41 = vector.broadcast %cst_25 : f32 to vector<8x32xf32>
    %42 = arith.mulf %40, %41 : vector<8x32xf32>
    %43 = vector.extract_strided_slice %42 {offsets = [0, 0], sizes = [8, 8], strides = [1, 1]} : vector<8x32xf32> to vector<8x8xf32>
    %44 = vector.extract_strided_slice %42 {offsets = [0, 8], sizes = [8, 8], strides = [1, 1]} : vector<8x32xf32> to vector<8x8xf32>
    %45 = vector.extract_strided_slice %42 {offsets = [0, 16], sizes = [8, 8], strides = [1, 1]} : vector<8x32xf32> to vector<8x8xf32>
    %46 = vector.extract_strided_slice %42 {offsets = [0, 24], sizes = [8, 8], strides = [1, 1]} : vector<8x32xf32> to vector<8x8xf32>
    %47 = vector.shape_cast %43 : vector<8x8xf32> to vector<1x8x8xf32>
    %48 = vector.shape_cast %44 : vector<8x8xf32> to vector<1x8x8xf32>
    %49 = vector.shape_cast %45 : vector<8x8xf32> to vector<1x8x8xf32>
    %50 = vector.shape_cast %46 : vector<8x8xf32> to vector<1x8x8xf32>
    %51 = tpu.concatenate %47, %48, %49, %50 in 0 : vector<1x8x8xf32>, vector<1x8x8xf32>, vector<1x8x8xf32>, vector<1x8x8xf32> -> vector<4x8x8xf32>
    %52 = arith.truncf %51 : vector<4x8x8xf32> to vector<4x8x8xbf16>
    %c0_26 = arith.constant 0 : index
    %c0_27 = arith.constant 0 : index
    %c0_28 = arith.constant 0 : index
    %53 = vector.load %arg20[%c0_26, %c0_27, %c0_28] : memref<4x16x8xbf16, #tpu.memory_space<vmem>>, vector<4x16x8xbf16>
    %c0_29 = arith.constant 0 : index
    %c0_30 = arith.constant 0 : index
    %c0_31 = arith.constant 0 : index
    %54 = vector.load %arg21[%c0_29, %c0_30, %c0_31] : memref<4x16x8xbf16, #tpu.memory_space<vmem>>, vector<4x16x8xbf16>
    %cst_32 = arith.constant dense<0.000000e+00> : vector<4x8x16xf32>
    %55 = tpu.matmul %52, %53, %cst_32 {dimension_numbers = #tpu.dot_dimension_numbers<[2], [2], [1], [1], [0, 0, 0, 1, 1, 1], [0], [0]>} : vector<4x8x8xbf16>, vector<4x16x8xbf16>, vector<4x8x16xf32> -> vector<4x8x16xf32>
    %cst_33 = arith.constant dense<0xFF800000> : vector<4x8xf32>
    %56 = vector.multi_reduction <maximumf>, %55, %cst_33 [2] : vector<4x8x16xf32> to vector<4x8xf32>
    %57 = vector.shape_cast %56 : vector<4x8xf32> to vector<4x8x1xf32>
    %58 = vector.broadcast %57 : vector<4x8x1xf32> to vector<4x8x16xf32>
    %59 = arith.subf %55, %58 : vector<4x8x16xf32>
    %60 = math.exp %59 : vector<4x8x16xf32>
    %cst_34 = arith.constant dense<0.000000e+00> : vector<4x8xf32>
    %61 = vector.multi_reduction <add>, %60, %cst_34 [2] : vector<4x8x16xf32> to vector<4x8xf32>
    %62 = vector.shape_cast %61 : vector<4x8xf32> to vector<4x8x1xf32>
    %63 = tpu.reciprocal %62 {approx = true} : vector<4x8x1xf32> -> vector<4x8x1xf32>
    %64 = vector.broadcast %63 : vector<4x8x1xf32> to vector<4x8x16xf32>
    %65 = arith.mulf %60, %64 : vector<4x8x16xf32>
    %66 = arith.truncf %65 : vector<4x8x16xf32> to vector<4x8x16xbf16>
    %cst_35 = arith.constant dense<0.000000e+00> : vector<4x8x8xf32>
    %67 = tpu.matmul %66, %54, %cst_35 {dimension_numbers = #tpu.dot_dimension_numbers<[2], [1], [1], [2], [0, 0, 0, 1, 1, 2], [0], [0]>} : vector<4x8x16xbf16>, vector<4x16x8xbf16>, vector<4x8x8xf32> -> vector<4x8x8xf32>
    %68 = vector.extract_strided_slice %67 {offsets = [0, 0, 0], sizes = [1, 8, 8], strides = [1, 1, 1]} : vector<4x8x8xf32> to vector<1x8x8xf32>
    %69 = vector.shape_cast %68 : vector<1x8x8xf32> to vector<8x8xf32>
    %70 = vector.extract_strided_slice %67 {offsets = [1, 0, 0], sizes = [1, 8, 8], strides = [1, 1, 1]} : vector<4x8x8xf32> to vector<1x8x8xf32>
    %71 = vector.shape_cast %70 : vector<1x8x8xf32> to vector<8x8xf32>
    %72 = vector.extract_strided_slice %67 {offsets = [2, 0, 0], sizes = [1, 8, 8], strides = [1, 1, 1]} : vector<4x8x8xf32> to vector<1x8x8xf32>
    %73 = vector.shape_cast %72 : vector<1x8x8xf32> to vector<8x8xf32>
    %74 = vector.extract_strided_slice %67 {offsets = [3, 0, 0], sizes = [1, 8, 8], strides = [1, 1, 1]} : vector<4x8x8xf32> to vector<1x8x8xf32>
    %75 = vector.shape_cast %74 : vector<1x8x8xf32> to vector<8x8xf32>
    %76 = tpu.concatenate %69, %71, %73, %75 in 1 : vector<8x8xf32>, vector<8x8xf32>, vector<8x8xf32>, vector<8x8xf32> -> vector<8x32xf32>
    %77 = arith.truncf %76 : vector<8x32xf32> to vector<8x32xbf16>
    %c0_36 = arith.constant 0 : index
    %c0_37 = arith.constant 0 : index
    %78 = vector.load %arg9[%c0_36, %c0_37] : memref<32x32xbf16, #tpu.memory_space<vmem>>, vector<32x32xbf16>
    %cst_38 = arith.constant dense<0.000000e+00> : vector<8x32xf32>
    %79 = tpu.matmul %77, %78, %cst_38 {dimension_numbers = #tpu.dot_dimension_numbers<[1], [0], [0], [1], [0, 0, 1, 1], [], []>} : vector<8x32xbf16>, vector<32x32xbf16>, vector<8x32xf32> -> vector<8x32xf32>
    %80 = vector.broadcast %5 : vector<1x32xf32> to vector<8x32xf32>
    %81 = arith.addf %79, %80 : vector<8x32xf32>
    %82 = arith.addf %15, %81 : vector<8x32xf32>
    %cst_39 = arith.constant dense<0.000000e+00> : vector<8xf32>
    %83 = vector.multi_reduction <add>, %82, %cst_39 [1] : vector<8x32xf32> to vector<8xf32>
    %84 = vector.shape_cast %83 : vector<8xf32> to vector<8x1xf32>
    %cst_40 = arith.constant 3.200000e+01 : f32
    %85 = vector.broadcast %cst_40 : f32 to vector<8x1xf32>
    %86 = arith.divf %84, %85 : vector<8x1xf32>
    %87 = vector.broadcast %86 : vector<8x1xf32> to vector<8x32xf32>
    %88 = arith.subf %82, %87 : vector<8x32xf32>
    %89 = arith.mulf %88, %88 : vector<8x32xf32>
    %cst_41 = arith.constant dense<0.000000e+00> : vector<8xf32>
    %90 = vector.multi_reduction <add>, %89, %cst_41 [1] : vector<8x32xf32> to vector<8xf32>
    %91 = vector.shape_cast %90 : vector<8xf32> to vector<8x1xf32>
    %cst_42 = arith.constant 3.200000e+01 : f32
    %92 = vector.broadcast %cst_42 : f32 to vector<8x1xf32>
    %93 = arith.divf %91, %92 : vector<8x1xf32>
    %cst_43 = arith.constant 9.99999974E-6 : f32
    %94 = vector.broadcast %cst_43 : f32 to vector<8x1xf32>
    %95 = arith.addf %93, %94 : vector<8x1xf32>
    %96 = math.rsqrt %95 : vector<8x1xf32>
    %97 = vector.broadcast %96 : vector<8x1xf32> to vector<8x32xf32>
    %98 = arith.mulf %88, %97 : vector<8x32xf32>
    %99 = vector.broadcast %2 : vector<1x32xf32> to vector<8x32xf32>
    %100 = arith.mulf %98, %99 : vector<8x32xf32>
    %101 = vector.broadcast %3 : vector<1x32xf32> to vector<8x32xf32>
    %102 = arith.addf %100, %101 : vector<8x32xf32>
    %103 = arith.truncf %102 : vector<8x32xf32> to vector<8x32xbf16>
    %c0_44 = arith.constant 0 : index
    %c0_45 = arith.constant 0 : index
    %104 = vector.load %arg11[%c0_44, %c0_45] : memref<32x64xbf16, #tpu.memory_space<vmem>>, vector<32x64xbf16>
    %cst_46 = arith.constant dense<0.000000e+00> : vector<8x64xf32>
    %105 = tpu.matmul %103, %104, %cst_46 {dimension_numbers = #tpu.dot_dimension_numbers<[1], [0], [0], [1], [0, 0, 1, 1], [], []>} : vector<8x32xbf16>, vector<32x64xbf16>, vector<8x64xf32> -> vector<8x64xf32>
    %106 = vector.broadcast %6 : vector<1x64xf32> to vector<8x64xf32>
    %107 = arith.addf %105, %106 : vector<8x64xf32>
    %cst_47 = arith.constant 0.000000e+00 : f32
    %108 = vector.broadcast %cst_47 : f32 to vector<8x64xf32>
    %109 = arith.maximumf %107, %108 : vector<8x64xf32>
    %110 = arith.truncf %109 : vector<8x64xf32> to vector<8x64xbf16>
    %c0_48 = arith.constant 0 : index
    %c0_49 = arith.constant 0 : index
    %111 = vector.load %arg13[%c0_48, %c0_49] : memref<64x32xbf16, #tpu.memory_space<vmem>>, vector<64x32xbf16>
    %cst_50 = arith.constant dense<0.000000e+00> : vector<8x32xf32>
    %112 = tpu.matmul %110, %111, %cst_50 {dimension_numbers = #tpu.dot_dimension_numbers<[1], [0], [0], [1], [0, 0, 1, 1], [], []>} : vector<8x64xbf16>, vector<64x32xbf16>, vector<8x32xf32> -> vector<8x32xf32>
    %113 = vector.broadcast %7 : vector<1x32xf32> to vector<8x32xf32>
    %114 = arith.addf %112, %113 : vector<8x32xf32>
    %115 = arith.addf %82, %114 : vector<8x32xf32>
    %c0_51 = arith.constant 0 : index
    %c0_52 = arith.constant 0 : index
    %c0_53 = arith.constant 0 : index
    %116 = vector.load %arg19[%c0_51, %c0_52, %c0_53] : memref<1x8x32xf32, #tpu.memory_space<vmem>>, vector<1x8x32xf32>
    %117 = vector.shape_cast %116 : vector<1x8x32xf32> to vector<8x32xf32>
    %118 = vector.shape_cast %115 : vector<8x32xf32> to vector<1x8x32xf32>
    tpu.vector_store %arg19[%c0_51, %c0_52, %c0_53], %118 {strides = array<i32>} : memref<1x8x32xf32, #tpu.memory_space<vmem>>, vector<1x8x32xf32>,
    return
  }
  func.func @transform_0(%arg0: i32, %arg1: i32) -> (i32, i32, i32) {
    %c0_i32 = arith.constant 0 : i32
    %c0_i32_0 = arith.constant 0 : i32
    %c0_i32_1 = arith.constant 0 : i32
    return %arg0, %c0_i32, %c0_i32_0 : i32, i32, i32
  }
  func.func @transform_1(%arg0: i32, %arg1: i32) -> (i32, i32) {
    %c0_i32 = arith.constant 0 : i32
    %c0_i32_0 = arith.constant 0 : i32
    %c0_i32_1 = arith.constant 0 : i32
    return %c0_i32, %c0_i32_0 : i32, i32
  }
  func.func @transform_2(%arg0: i32, %arg1: i32) -> (i32, i32) {
    %c0_i32 = arith.constant 0 : i32
    %c0_i32_0 = arith.constant 0 : i32
    %c0_i32_1 = arith.constant 0 : i32
    return %c0_i32, %c0_i32_0 : i32, i32
  }
  func.func @transform_3(%arg0: i32, %arg1: i32) -> (i32, i32) {
    %c0_i32 = arith.constant 0 : i32
    %c0_i32_0 = arith.constant 0 : i32
    %c0_i32_1 = arith.constant 0 : i32
    return %c0_i32, %c0_i32_0 : i32, i32
  }
  func.func @transform_4(%arg0: i32, %arg1: i32) -> (i32, i32) {
    %c0_i32 = arith.constant 0 : i32
    %c0_i32_0 = arith.constant 0 : i32
    %c0_i32_1 = arith.constant 0 : i32
    return %c0_i32, %c0_i32_0 : i32, i32
  }
  func.func @transform_5(%arg0: i32, %arg1: i32) -> (i32, i32) {
    %c0_i32 = arith.constant 0 : i32
    %c0_i32_0 = arith.constant 0 : i32
    %c0_i32_1 = arith.constant 0 : i32
    return %c0_i32, %c0_i32_0 : i32, i32
  }
  func.func @transform_6(%arg0: i32, %arg1: i32) -> (i32, i32) {
    %c0_i32 = arith.constant 0 : i32
    %c0_i32_0 = arith.constant 0 : i32
    %c0_i32_1 = arith.constant 0 : i32
    return %c0_i32, %c0_i32_0 : i32, i32
  }
  func.func @transform_7(%arg0: i32, %arg1: i32) -> (i32, i32) {
    %c0_i32 = arith.constant 0 : i32
    %c0_i32_0 = arith.constant 0 : i32
    %c0_i32_1 = arith.constant 0 : i32
    return %c0_i32, %c0_i32_0 : i32, i32
  }
  func.func @transform_8(%arg0: i32, %arg1: i32) -> (i32, i32) {
    %c0_i32 = arith.constant 0 : i32
    %c0_i32_0 = arith.constant 0 : i32
    %c0_i32_1 = arith.constant 0 : i32
    return %c0_i32, %c0_i32_0 : i32, i32
  }
  func.func @transform_9(%arg0: i32, %arg1: i32) -> (i32, i32) {
    %c0_i32 = arith.constant 0 : i32
    %c0_i32_0 = arith.constant 0 : i32
    %c0_i32_1 = arith.constant 0 : i32
    return %c0_i32, %c0_i32_0 : i32, i32
  }
  func.func @transform_10(%arg0: i32, %arg1: i32) -> (i32, i32) {
    %c0_i32 = arith.constant 0 : i32
    %c0_i32_0 = arith.constant 0 : i32
    %c0_i32_1 = arith.constant 0 : i32
    return %c0_i32, %c0_i32_0 : i32, i32
  }
  func.func @transform_11(%arg0: i32, %arg1: i32) -> (i32, i32) {
    %c0_i32 = arith.constant 0 : i32
    %c0_i32_0 = arith.constant 0 : i32
    %c0_i32_1 = arith.constant 0 : i32
    return %c0_i32, %c0_i32_0 : i32, i32
  }
  func.func @transform_12(%arg0: i32, %arg1: i32) -> (i32, i32) {
    %c0_i32 = arith.constant 0 : i32
    %c0_i32_0 = arith.constant 0 : i32
    %c0_i32_1 = arith.constant 0 : i32
    return %c0_i32, %c0_i32_0 : i32, i32
  }
  func.func @transform_13(%arg0: i32, %arg1: i32) -> (i32, i32) {
    %c0_i32 = arith.constant 0 : i32
    %c0_i32_0 = arith.constant 0 : i32
    %c0_i32_1 = arith.constant 0 : i32
    return %c0_i32, %c0_i32_0 : i32, i32
  }
  func.func @transform_14(%arg0: i32, %arg1: i32) -> (i32, i32) {
    %c0_i32 = arith.constant 0 : i32
    %c0_i32_0 = arith.constant 0 : i32
    %c0_i32_1 = arith.constant 0 : i32
    return %c0_i32, %c0_i32_0 : i32, i32
  }
  func.func @transform_15(%arg0: i32, %arg1: i32) -> (i32, i32) {
    %c0_i32 = arith.constant 0 : i32
    %c0_i32_0 = arith.constant 0 : i32
    %c0_i32_1 = arith.constant 0 : i32
    return %c0_i32, %c0_i32_0 : i32, i32
  }
  func.func @transform_16(%arg0: i32, %arg1: i32) -> (i32, i32) {
    %c0_i32 = arith.constant 0 : i32
    %c0_i32_0 = arith.constant 0 : i32
    %c0_i32_1 = arith.constant 0 : i32
    return %c0_i32, %c0_i32_0 : i32, i32
  }
  func.func @transform_17(%arg0: i32, %arg1: i32) -> (i32, i32, i32) {
    %c0_i32 = arith.constant 0 : i32
    %c0_i32_0 = arith.constant 0 : i32
    return %arg0, %arg1, %c0_i32 : i32, i32, i32
  }
}

</mosaic_0001>

<llo_original>
// kernel: tpu_custom_call.1
$region0: #{tpu_custom_call.1}
  #allocation0 [shape = 'u32[]', space=smem, size = 0x4, offset = 0x4, fixed_abs, tag = 'smem constant byte address 0x4 - core index']
  #allocation1 [shape = 'u32[144,128]{1,0:T(1,128)}', space=vmem, size = 0x12000, scoped, tag = 'internal scratch']
  #allocation2 [shape = 'bf16[4,16,8]{2,1,0:T(8,128)(2,1)}', space=vmem, size = 0x4000, scoped, tag = 'scratch operand']
  #allocation3 [shape = 'bf16[4,16,8]{2,1,0:T(8,128)(2,1)}', space=vmem, size = 0x4000, scoped, tag = 'scratch operand']
  %s0 = inlined_call_operand.vmem [shape: f32[2,16,32], index: 0, kind: input, shape index: {}]
  %s1 = inlined_call_operand.vmem [shape: bf16[32,32], index: 1, kind: input, shape index: {}]
  %s2 = inlined_call_operand.vmem [shape: f32[1,32], index: 2, kind: input, shape index: {}]
  %s3 = inlined_call_operand.hbm [shape: bf16[32,32], index: 3, kind: input, shape index: {}]
  %s4 = inlined_call_operand.vmem [shape: f32[1,32], index: 4, kind: input, shape index: {}]
  %s5 = inlined_call_operand.hbm [shape: bf16[32,32], index: 5, kind: input, shape index: {}]
  %s6 = inlined_call_operand.vmem [shape: f32[1,32], index: 6, kind: input, shape index: {}]
  %s7 = inlined_call_operand.hbm [shape: bf16[32,32], index: 7, kind: input, shape index: {}]
  %s8 = inlined_call_operand.vmem [shape: f32[1,32], index: 8, kind: input, shape index: {}]
  %s9 = inlined_call_operand.hbm [shape: bf16[32,64], index: 9, kind: input, shape index: {}]
  %s10 = inlined_call_operand.hbm [shape: f32[1,64], index: 10, kind: input, shape index: {}]
  %s11 = inlined_call_operand.vmem [shape: bf16[64,32], index: 11, kind: input, shape index: {}]
  %s12 = inlined_call_operand.vmem [shape: f32[1,32], index: 12, kind: input, shape index: {}]
  %s13 = inlined_call_operand.vmem [shape: f32[1,32], index: 13, kind: input, shape index: {}]
  %s14 = inlined_call_operand.vmem [shape: f32[1,32], index: 14, kind: input, shape index: {}]
  %s15 = inlined_call_operand.vmem [shape: f32[1,32], index: 15, kind: input, shape index: {}]
  %s16 = inlined_call_operand.vmem [shape: f32[1,32], index: 16, kind: input, shape index: {}]
  %s17 = inlined_call_operand.hbm [shape: f32[2,16,32], index: 17, kind: output, shape index: {}]
  %s18 = sld [smem:[#allocation0]]
  $region125: #{tpu_custom_call.1} parent=0
    _
  %s20 = ssub.s32 1, %s18
  %s21 = scalar_select 0, %s20, %s18
  $region1: #{tpu_custom_call.1} parent=0
    #allocation4 [shape = 'u8[8192]{0}', space=vmem, size = 0x2000, scoped, tag = 'input window, operand 3, single buffered']
    #allocation5 [shape = 's32[2]{0}', space=sflag, size = 0x8, scoped, tag = 'scoped memory for tpu_custom_call.1']
    #allocation6 [shape = 's32[2]{0}', space=sflag, size = 0x8, scoped, tag = 'scoped memory for tpu_custom_call.1']
    #allocation7 [shape = 'u8[8192]{0}', space=vmem, size = 0x2000, scoped, tag = 'input window, operand 5, single buffered']
    #allocation8 [shape = 's32[1]{0}', space=sflag, size = 0x4, scoped, tag = 'scoped memory for tpu_custom_call.1']
    #allocation9 [shape = 'u8[8192]{0}', space=vmem, size = 0x2000, scoped, tag = 'input window, operand 7, single buffered']
    #allocation10 [shape = 'u8[8192]{0}', space=vmem, size = 0x2000, scoped, tag = 'input window, operand 9, single buffered']
    #allocation11 [shape = 's32[1]{0}', space=sflag, size = 0x4, scoped, tag = 'scoped memory for tpu_custom_call.1']
    #allocation12 [shape = 'u8[512]{0}', space=vmem, size = 0x400, scoped, tag = 'input window, operand 10, single buffered']
    #allocation13 [shape = 'u8[8192]{0}', space=vmem, size = 0x2000, scoped, tag = 'output window, operand 0']
    %22 = vsyncpa [#allocation5], 0
    %23 = vsyncpa [#allocation8], 0
    %24 = vsyncpa [#allocation11], 0
    %25 = vsyncpa [#allocation6], 0
    %s26 = scalar_lea.sflag [#allocation6], 1
    %27 = vsyncpa %s26, 0
    loop: start=0, step=1, limit=6
    $region2: #{tpu_custom_call.1} parent=1 // loop_pre_header
      _
    $region3: #{tpu_custom_call.1} parent=1 // loop_header
      %s29 = sphi 0, %s33
      %p30 = scmp.ge.s32.totalorder %s29, 6
      %s36 = sphi 0, %s48
      %s37 = sphi 0, %s44
      %s38 = sphi 0, %s36
      %s39 = sphi 0, %s37
      %s40 = sphi 0, %s38
      %s41 = sphi 0, %s39
      %s51 = sphi 0, %s53
      %s54 = sphi 0, %s51
      %s55 = sphi 0, %s54
      %s71 = sphi 0, %s55
      %s75 = sphi 0, %s75
      %s77 = sphi 0, %s75
      %s78 = sphi 0, %s77
      %s92 = sphi 0, %s78
      %s96 = sphi 0, %s96
      %s98 = sphi 0, %s96
      %s99 = sphi 0, %s98
      %s113 = sphi 0, %s99
      %s117 = sphi 0, %s117
      %s119 = sphi 0, %s117
      %s120 = sphi 0, %s119
      %s134 = sphi 0, %s120
      %s138 = sphi 0, %s138
      %s140 = sphi 0, %s138
      %s141 = sphi 0, %s140
      %s155 = sphi 0, %s141
      %s159 = sphi 0, %s159
      %s161 = sphi 0, %s159
      %s162 = sphi 0, %s161
      %s176 = sphi 0, %s162
      %s180 = sphi 0, %s180
      %s182 = sphi 0, %s180
      %s183 = sphi 0, %s182
      %s197 = sphi 0, %s183
      %s201 = sphi 0, %s201
      %s203 = sphi 0, %s201
      %s204 = sphi 0, %s203
      %s218 = sphi 0, %s204
      %s222 = sphi 0, %s222
      %s224 = sphi 0, %s222
      %s225 = sphi 0, %s224
      %s239 = sphi 0, %s225
      %s243 = sphi 0, %s243
      %s245 = sphi 0, %s243
      %s246 = sphi 0, %s245
      %s260 = sphi 0, %s246
      %s264 = sphi 0, %s264
      %s266 = sphi 0, %s264
      %s267 = sphi 0, %s266
      %s281 = sphi 0, %s267
      %s285 = sphi 0, %s285
      %s287 = sphi 0, %s285
      %s288 = sphi 0, %s287
      %s302 = sphi 0, %s288
      %s306 = sphi 0, %s306
      %s308 = sphi 0, %s306
      %s309 = sphi 0, %s308
      %s323 = sphi 0, %s309
      %s327 = sphi 0, %s327
      %s329 = sphi 0, %s327
      %s330 = sphi 0, %s329
      %s344 = sphi 0, %s330
      %s348 = sphi 0, %s348
      %s350 = sphi 0, %s348
      %s351 = sphi 0, %s350
      %s365 = sphi 0, %s351
      %s369 = sphi 0, %s369
      %s371 = sphi 0, %s369
      %s372 = sphi 0, %s371
      %s386 = sphi 0, %s372
      %s390 = sphi 0, %s390
      %s392 = sphi 0, %s390
      %s393 = sphi 0, %s392
      %s407 = sphi 0, %s393
      %s415 = sphi 0, %s417
      %s418 = sphi 0, %s415
      %s419 = sphi 0, %s418
      %s435 = sphi 0, %s419
    $region4: #{tpu_custom_call.1} parent=1 // loop_header_branch
      %32 = sbr.rel (%p30) target = $region8
    $region5: #{tpu_custom_call.1} parent=1 // loop_body
      %s34 = ssub.s32 %s29, 1
      %s35 = ssub.s32 %s29, 2
      %s42 = sadd.s32 1, %s37
      %p43 = scmp.ge.s32.totalorder %s42, 2
      %s44 = scalar_select %p43, 0, %s42
      %s45 = sadd.s32 1, %s36
      %s46 = scalar_select %p43, %s45, %s36
      %p47 = scmp.ge.s32.totalorder %s46, 2
      %s48 = scalar_select %p47, 0, %s46
      %s49 = ssub.s32 %s36, %s48
      %p50 = scmp.eq.s32.totalorder %s49, 0
      %s52 = sadd.s32 %s51, 1
      %s53 = scalar_select %p50, %s51, %s52
      %p56 = pneg %p50
      %p57 = scmp.eq.s32.totalorder %s29, 3
      %p58 = por %p56, %p57
      %p59 = scmp.ne.s32.totalorder %s51, %s54
      %p60 = scmp.eq.s32.totalorder %s29, 0
      %p61 = por %p59, %p60
      %p62 = scmp.ne.s32.totalorder %s51, %s54
      %p63 = scmp.eq.s32.totalorder %s34, 3
      %p64 = por %p62, %p63
      %p65 = scmp.ne.s32.totalorder %s54, %s55
      %p66 = scmp.eq.s32.totalorder %s34, 0
      %p67 = por %p65, %p66
      %p68 = scmp.ne.s32.totalorder %s54, %s55
      %p69 = scmp.eq.s32.totalorder %s35, 3
      %p70 = por %p68, %p69
      %p72 = scmp.ne.s32.totalorder %s55, %s71
      %p73 = scmp.eq.s32.totalorder %s35, 0
      %p74 = por %p72, %p73
      %s76 = sadd.s32 %s75, 1
      %p79 = scmp.eq.s32.totalorder %s29, 3
      %p80 = scmp.ne.s32.totalorder %s75, %s77
      %p81 = scmp.eq.s32.totalorder %s29, 0
      %p82 = por %p80, %p81
      %p83 = scmp.ne.s32.totalorder %s75, %s77
      %p84 = scmp.eq.s32.totalorder %s34, 3
      %p85 = por %p83, %p84
      %p86 = scmp.ne.s32.totalorder %s77, %s78
      %p87 = scmp.eq.s32.totalorder %s34, 0
      %p88 = por %p86, %p87
      %p89 = scmp.ne.s32.totalorder %s77, %s78
      %p90 = scmp.eq.s32.totalorder %s35, 3
      %p91 = por %p89, %p90
      %p93 = scmp.ne.s32.totalorder %s78, %s92
      %p94 = scmp.eq.s32.totalorder %s35, 0
      %p95 = por %p93, %p94
      %s97 = sadd.s32 %s96, 1
      %p100 = scmp.eq.s32.totalorder %s29, 3
      %p101 = scmp.ne.s32.totalorder %s96, %s98
      %p102 = scmp.eq.s32.totalorder %s29, 0
      %p103 = por %p101, %p102
      %p104 = scmp.ne.s32.totalorder %s96, %s98
      %p105 = scmp.eq.s32.totalorder %s34, 3
      %p106 = por %p104, %p105
      %p107 = scmp.ne.s32.totalorder %s98, %s99
      %p108 = scmp.eq.s32.totalorder %s34, 0
      %p109 = por %p107, %p108
      %p110 = scmp.ne.s32.totalorder %s98, %s99
      %p111 = scmp.eq.s32.totalorder %s35, 3
      %p112 = por %p110, %p111
      %p114 = scmp.ne.s32.totalorder %s99, %s113
      %p115 = scmp.eq.s32.totalorder %s35, 0
      %p116 = por %p114, %p115
      %s118 = sadd.s32 %s117, 1
      %p121 = scmp.eq.s32.totalorder %s29, 3
      %p122 = scmp.ne.s32.totalorder %s117, %s119
      %p123 = scmp.eq.s32.totalorder %s29, 0
      %p124 = por %p122, %p123
      %p125 = scmp.ne.s32.totalorder %s117, %s119
      %p126 = scmp.eq.s32.totalorder %s34, 3
      %p127 = por %p125, %p126
      %p128 = scmp.ne.s32.totalorder %s119, %s120
      %p129 = scmp.eq.s32.totalorder %s34, 0
      %p130 = por %p128, %p129
      %p131 = scmp.ne.s32.totalorder %s119, %s120
      %p132 = scmp.eq.s32.totalorder %s35, 3
      %p133 = por %p131, %p132
      %p135 = scmp.ne.s32.totalorder %s120, %s134
      %p136 = scmp.eq.s32.totalorder %s35, 0
      %p137 = por %p135, %p136
      %s139 = sadd.s32 %s138, 1
      %p142 = scmp.eq.s32.totalorder %s29, 3
      %p143 = scmp.ne.s32.totalorder %s138, %s140
      %p144 = scmp.eq.s32.totalorder %s29, 0
      %p145 = por %p143, %p144
      %p146 = scmp.ne.s32.totalorder %s138, %s140
      %p147 = scmp.eq.s32.totalorder %s34, 3
      %p148 = por %p146, %p147
      %p149 = scmp.ne.s32.totalorder %s140, %s141
      %p150 = scmp.eq.s32.totalorder %s34, 0
      %p151 = por %p149, %p150
      %p152 = scmp.ne.s32.totalorder %s140, %s141
      %p153 = scmp.eq.s32.totalorder %s35, 3
      %p154 = por %p152, %p153
      %p156 = scmp.ne.s32.totalorder %s141, %s155
      %p157 = scmp.eq.s32.totalorder %s35, 0
      %p158 = por %p156, %p157
      %s160 = sadd.s32 %s159, 1
      %p163 = scmp.eq.s32.totalorder %s29, 3
      %p164 = scmp.ne.s32.totalorder %s159, %s161
      %p165 = scmp.eq.s32.totalorder %s29, 0
      %p166 = por %p164, %p165
      %p167 = scmp.ne.s32.totalorder %s159, %s161
      %p168 = scmp.eq.s32.totalorder %s34, 3
      %p169 = por %p167, %p168
      %p170 = scmp.ne.s32.totalorder %s161, %s162
      %p171 = scmp.eq.s32.totalorder %s34, 0
      %p172 = por %p170, %p171
      %p173 = scmp.ne.s32.totalorder %s161, %s162
      %p174 = scmp.eq.s32.totalorder %s35, 3
      %p175 = por %p173, %p174
      %p177 = scmp.ne.s32.totalorder %s162, %s176
      %p178 = scmp.eq.s32.totalorder %s35, 0
      %p179 = por %p177, %p178
      %s181 = sadd.s32 %s180, 1
      %p184 = scmp.eq.s32.totalorder %s29, 3
      %p185 = scmp.ne.s32.totalorder %s180, %s182
      %p186 = scmp.eq.s32.totalorder %s29, 0
      %p187 = por %p185, %p186
      %p188 = scmp.ne.s32.totalorder %s180, %s182
      %p189 = scmp.eq.s32.totalorder %s34, 3
      %p190 = por %p188, %p189
      %p191 = scmp.ne.s32.totalorder %s182, %s183
      %p192 = scmp.eq.s32.totalorder %s34, 0
      %p193 = por %p191, %p192
      %p194 = scmp.ne.s32.totalorder %s182, %s183
      %p195 = scmp.eq.s32.totalorder %s35, 3
      %p196 = por %p194, %p195
      %p198 = scmp.ne.s32.totalorder %s183, %s197
      %p199 = scmp.eq.s32.totalorder %s35, 0
      %p200 = por %p198, %p199
      %s202 = sadd.s32 %s201, 1
      %p205 = scmp.eq.s32.totalorder %s29, 3
      %p206 = scmp.ne.s32.totalorder %s201, %s203
      %p207 = scmp.eq.s32.totalorder %s29, 0
      %p208 = por %p206, %p207
      %p209 = scmp.ne.s32.totalorder %s201, %s203
      %p210 = scmp.eq.s32.totalorder %s34, 3
      %p211 = por %p209, %p210
      %p212 = scmp.ne.s32.totalorder %s203, %s204
      %p213 = scmp.eq.s32.totalorder %s34, 0
      %p214 = por %p212, %p213
      %p215 = scmp.ne.s32.totalorder %s203, %s204
      %p216 = scmp.eq.s32.totalorder %s35, 3
      %p217 = por %p215, %p216
      %p219 = scmp.ne.s32.totalorder %s204, %s218
      %p220 = scmp.eq.s32.totalorder %s35, 0
      %p221 = por %p219, %p220
      %s223 = sadd.s32 %s222, 1
      %p226 = scmp.eq.s32.totalorder %s29, 3
      %p227 = scmp.ne.s32.totalorder %s222, %s224
      %p228 = scmp.eq.s32.totalorder %s29, 0
      %p229 = por %p227, %p228
      %p230 = scmp.ne.s32.totalorder %s222, %s224
      %p231 = scmp.eq.s32.totalorder %s34, 3
      %p232 = por %p230, %p231
      %p233 = scmp.ne.s32.totalorder %s224, %s225
      %p234 = scmp.eq.s32.totalorder %s34, 0
      %p235 = por %p233, %p234
      %p236 = scmp.ne.s32.totalorder %s224, %s225
      %p237 = scmp.eq.s32.totalorder %s35, 3
      %p238 = por %p236, %p237
      %p240 = scmp.ne.s32.totalorder %s225, %s239
      %p241 = scmp.eq.s32.totalorder %s35, 0
      %p242 = por %p240, %p241
      %s244 = sadd.s32 %s243, 1
      %p247 = scmp.eq.s32.totalorder %s29, 3
      %p248 = scmp.ne.s32.totalorder %s243, %s245
      %p249 = scmp.eq.s32.totalorder %s29, 0
      %p250 = por %p248, %p249
      %p251 = scmp.ne.s32.totalorder %s243, %s245
      %p252 = scmp.eq.s32.totalorder %s34, 3
      %p253 = por %p251, %p252
      %p254 = scmp.ne.s32.totalorder %s245, %s246
      %p255 = scmp.eq.s32.totalorder %s34, 0
      %p256 = por %p254, %p255
      %p257 = scmp.ne.s32.totalorder %s245, %s246
      %p258 = scmp.eq.s32.totalorder %s35, 3
      %p259 = por %p257, %p258
      %p261 = scmp.ne.s32.totalorder %s246, %s260
      %p262 = scmp.eq.s32.totalorder %s35, 0
      %p263 = por %p261, %p262
      %s265 = sadd.s32 %s264, 1
      %p268 = scmp.eq.s32.totalorder %s29, 3
      %p269 = scmp.ne.s32.totalorder %s264, %s266
      %p270 = scmp.eq.s32.totalorder %s29, 0
      %p271 = por %p269, %p270
      %p272 = scmp.ne.s32.totalorder %s264, %s266
      %p273 = scmp.eq.s32.totalorder %s34, 3
      %p274 = por %p272, %p273
      %p275 = scmp.ne.s32.totalorder %s266, %s267
      %p276 = scmp.eq.s32.totalorder %s34, 0
      %p277 = por %p275, %p276
      %p278 = scmp.ne.s32.totalorder %s266, %s267
      %p279 = scmp.eq.s32.totalorder %s35, 3
      %p280 = por %p278, %p279
      %p282 = scmp.ne.s32.totalorder %s267, %s281
      %p283 = scmp.eq.s32.totalorder %s35, 0
      %p284 = por %p282, %p283
      %s286 = sadd.s32 %s285, 1
      %p289 = scmp.eq.s32.totalorder %s29, 3
      %p290 = scmp.ne.s32.totalorder %s285, %s287
      %p291 = scmp.eq.s32.totalorder %s29, 0
      %p292 = por %p290, %p291
      %p293 = scmp.ne.s32.totalorder %s285, %s287
      %p294 = scmp.eq.s32.totalorder %s34, 3
      %p295 = por %p293, %p294
      %p296 = scmp.ne.s32.totalorder %s287, %s288
      %p297 = scmp.eq.s32.totalorder %s34, 0
      %p298 = por %p296, %p297
      %p299 = scmp.ne.s32.totalorder %s287, %s288
      %p300 = scmp.eq.s32.totalorder %s35, 3
      %p301 = por %p299, %p300
      %p303 = scmp.ne.s32.totalorder %s288, %s302
      %p304 = scmp.eq.s32.totalorder %s35, 0
      %p305 = por %p303, %p304
      %s307 = sadd.s32 %s306, 1
      %p310 = scmp.eq.s32.totalorder %s29, 3
      %p311 = scmp.ne.s32.totalorder %s306, %s308
      %p312 = scmp.eq.s32.totalorder %s29, 0
      %p313 = por %p311, %p312
      %p314 = scmp.ne.s32.totalorder %s306, %s308
      %p315 = scmp.eq.s32.totalorder %s34, 3
      %p316 = por %p314, %p315
      %p317 = scmp.ne.s32.totalorder %s308, %s309
      %p318 = scmp.eq.s32.totalorder %s34, 0
      %p319 = por %p317, %p318
      %p320 = scmp.ne.s32.totalorder %s308, %s309
      %p321 = scmp.eq.s32.totalorder %s35, 3
      %p322 = por %p320, %p321
      %p324 = scmp.ne.s32.totalorder %s309, %s323
      %p325 = scmp.eq.s32.totalorder %s35, 0
      %p326 = por %p324, %p325
      %s328 = sadd.s32 %s327, 1
      %p331 = scmp.eq.s32.totalorder %s29, 3
      %p332 = scmp.ne.s32.totalorder %s327, %s329
      %p333 = scmp.eq.s32.totalorder %s29, 0
      %p334 = por %p332, %p333
      %p335 = scmp.ne.s32.totalorder %s327, %s329
      %p336 = scmp.eq.s32.totalorder %s34, 3
      %p337 = por %p335, %p336
      %p338 = scmp.ne.s32.totalorder %s329, %s330
      %p339 = scmp.eq.s32.totalorder %s34, 0
      %p340 = por %p338, %p339
      %p341 = scmp.ne.s32.totalorder %s329, %s330
      %p342 = scmp.eq.s32.totalorder %s35, 3
      %p343 = por %p341, %p342
      %p345 = scmp.ne.s32.totalorder %s330, %s344
      %p346 = scmp.eq.s32.totalorder %s35, 0
      %p347 = por %p345, %p346
      %s349 = sadd.s32 %s348, 1
      %p352 = scmp.eq.s32.totalorder %s29, 3
      %p353 = scmp.ne.s32.totalorder %s348, %s350
      %p354 = scmp.eq.s32.totalorder %s29, 0
      %p355 = por %p353, %p354
      %p356 = scmp.ne.s32.totalorder %s348, %s350
      %p357 = scmp.eq.s32.totalorder %s34, 3
      %p358 = por %p356, %p357
      %p359 = scmp.ne.s32.totalorder %s350, %s351
      %p360 = scmp.eq.s32.totalorder %s34, 0
      %p361 = por %p359, %p360
      %p362 = scmp.ne.s32.totalorder %s350, %s351
      %p363 = scmp.eq.s32.totalorder %s35, 3
      %p364 = por %p362, %p363
      %p366 = scmp.ne.s32.totalorder %s351, %s365
      %p367 = scmp.eq.s32.totalorder %s35, 0
      %p368 = por %p366, %p367
      %s370 = sadd.s32 %s369, 1
      %p373 = scmp.eq.s32.totalorder %s29, 3
      %p374 = scmp.ne.s32.totalorder %s369, %s371
      %p375 = scmp.eq.s32.totalorder %s29, 0
      %p376 = por %p374, %p375
      %p377 = scmp.ne.s32.totalorder %s369, %s371
      %p378 = scmp.eq.s32.totalorder %s34, 3
      %p379 = por %p377, %p378
      %p380 = scmp.ne.s32.totalorder %s371, %s372
      %p381 = scmp.eq.s32.totalorder %s34, 0
      %p382 = por %p380, %p381
      %p383 = scmp.ne.s32.totalorder %s371, %s372
      %p384 = scmp.eq.s32.totalorder %s35, 3
      %p385 = por %p383, %p384
      %p387 = scmp.ne.s32.totalorder %s372, %s386
      %p388 = scmp.eq.s32.totalorder %s35, 0
      %p389 = por %p387, %p388
      %s391 = sadd.s32 %s390, 1
      %p394 = scmp.eq.s32.totalorder %s29, 3
      %p395 = scmp.ne.s32.totalorder %s390, %s392
      %p396 = scmp.eq.s32.totalorder %s29, 0
      %p397 = por %p395, %p396
      %p398 = scmp.ne.s32.totalorder %s390, %s392
      %p399 = scmp.eq.s32.totalorder %s34, 3
      %p400 = por %p398, %p399
      %p401 = scmp.ne.s32.totalorder %s392, %s393
      %p402 = scmp.eq.s32.totalorder %s34, 0
      %p403 = por %p401, %p402
      %p404 = scmp.ne.s32.totalorder %s392, %s393
      %p405 = scmp.eq.s32.totalorder %s35, 3
      %p406 = por %p404, %p405
      %p408 = scmp.ne.s32.totalorder %s393, %s407
      %p409 = scmp.eq.s32.totalorder %s35, 0
      %p410 = por %p408, %p409
      %s411 = ssub.s32 %s36, %s48
      %s412 = ssub.s32 %s37, %s44
      %s413 = sor.u32 %s411, %s412
      %p414 = scmp.eq.s32.totalorder %s413, 0
      %s416 = sadd.s32 %s415, 1
      %s417 = scalar_select %p414, %s415, %s416
      %p420 = pneg %p414
      %p421 = scmp.eq.s32.totalorder %s29, 3
      %p422 = por %p420, %p421
      %p423 = scmp.ne.s32.totalorder %s415, %s418
      %p424 = scmp.eq.s32.totalorder %s29, 0
      %p425 = por %p423, %p424
      %p426 = scmp.ne.s32.totalorder %s415, %s418
      %p427 = scmp.eq.s32.totalorder %s34, 3
      %p428 = por %p426, %p427
      %p429 = scmp.ne.s32.totalorder %s418, %s419
      %p430 = scmp.eq.s32.totalorder %s34, 0
      %p431 = por %p429, %p430
      %p432 = scmp.ne.s32.totalorder %s418, %s419
      %p433 = scmp.eq.s32.totalorder %s35, 3
      %p434 = por %p432, %p433
      %p436 = scmp.ne.s32.totalorder %s419, %s435
      %p437 = scmp.eq.s32.totalorder %s35, 0
      %p438 = por %p436, %p437
      %p439 = scmp.le.s32.totalorder 1, %s29
      %p440 = scmp.lt.s32.totalorder %s29, 5
      %p441 = pnand %p439, %p440
      %p442 = pneg %p441
      // Predicated region
      $region9: #{tpu_custom_call.1} parent=5 // pred_check
        _
      $region10: #{tpu_custom_call.1} parent=5 // pred_check_branch
        %444 = sbr.rel (%p441) target = $region12
      $region11: #{tpu_custom_call.1} parent=5 // pred_region
        %s445 = ssub.s32 %s29, 1
        // Predicated region
        $region13: #{tpu_custom_call.1} parent=11 // pred_check
          %p446 = pneg %p67
        $region14: #{tpu_custom_call.1} parent=11 // pred_check_branch
          %448 = sbr.rel (%p446) target = $region16
        $region15: #{tpu_custom_call.1} parent=11 // pred_region
          %p449 = scmp.lt.s32.totalorder %s38, 1
          %s450 = scalar_select %p449, %s38, 1
          %s451 = smul.addr %s450, 2
          %s452 = smul.addr %s451, 8
          %s453 = scalar_lea.vmem %s0, %s452
        $region16: #{tpu_custom_call.1} parent=11 // pred_fallthru
          _
        // Predicated region
        $region17: #{tpu_custom_call.1} parent=11 // pred_check
          %p454 = pneg %p88
        $region18: #{tpu_custom_call.1} parent=11 // pred_check_branch
          %456 = sbr.rel (%p454) target = $region20
        $region19: #{tpu_custom_call.1} parent=11 // pred_region
          _
        $region20: #{tpu_custom_call.1} parent=11 // pred_fallthru
          _
        // Predicated region
        $region21: #{tpu_custom_call.1} parent=11 // pred_check
          %p457 = pneg %p109
        $region22: #{tpu_custom_call.1} parent=11 // pred_check_branch
          %459 = sbr.rel (%p457) target = $region24
        $region23: #{tpu_custom_call.1} parent=11 // pred_region
          _
        $region24: #{tpu_custom_call.1} parent=11 // pred_fallthru
          _
        // Predicated region
        $region25: #{tpu_custom_call.1} parent=11 // pred_check
          %p460 = pneg %p130
        $region26: #{tpu_custom_call.1} parent=11 // pred_check_branch
          %462 = sbr.rel (%p460) target = $region28
        $region27: #{tpu_custom_call.1} parent=11 // pred_region
          %s464 = ssub.s32 256, 256
          %465 = vsyncadd [#allocation5], %s464
          %s466 = sshll.u32 [#allocation4], 4
          %s467 = int_to_ptr.vmem [resolvable:$true] %s466
          %472 = dma.hbm_to_vmem [thread:$0]  %s3, 256, %s467, [#allocation5], 64, 64, 4
        $region28: #{tpu_custom_call.1} parent=11 // pred_fallthru
          _
        // Predicated region
        $region29: #{tpu_custom_call.1} parent=11 // pred_check
          %p473 = pneg %p151
        $region30: #{tpu_custom_call.1} parent=11 // pred_check_branch
          %475 = sbr.rel (%p473) target = $region32
        $region31: #{tpu_custom_call.1} parent=11 // pred_region
          _
        $region32: #{tpu_custom_call.1} parent=11 // pred_fallthru
          _
        // Predicated region
        $region33: #{tpu_custom_call.1} parent=11 // pred_check
          %p476 = pneg %p172
        $region34: #{tpu_custom_call.1} parent=11 // pred_check_branch
          %478 = sbr.rel (%p476) target = $region36
        $region35: #{tpu_custom_call.1} parent=11 // pred_region
          %s480 = ssub.s32 256, 256
          %481 = vsyncadd [#allocation8], %s480
          %s482 = sshll.u32 [#allocation7], 4
          %s483 = int_to_ptr.vmem [resolvable:$true] %s482
          %488 = dma.hbm_to_vmem [thread:$0]  %s5, 256, %s483, [#allocation8], 64, 64, 4
        $region36: #{tpu_custom_call.1} parent=11 // pred_fallthru
          _
        // Predicated region
        $region37: #{tpu_custom_call.1} parent=11 // pred_check
          %p489 = pneg %p193
        $region38: #{tpu_custom_call.1} parent=11 // pred_check_branch
          %491 = sbr.rel (%p489) target = $region40
        $region39: #{tpu_custom_call.1} parent=11 // pred_region
          _
        $region40: #{tpu_custom_call.1} parent=11 // pred_fallthru
          _
        // Predicated region
        $region41: #{tpu_custom_call.1} parent=11 // pred_check
          %p492 = pneg %p214
        $region42: #{tpu_custom_call.1} parent=11 // pred_check_branch
          %494 = sbr.rel (%p492) target = $region44
        $region43: #{tpu_custom_call.1} parent=11 // pred_region
          %s496 = ssub.s32 256, 256
          %497 = vsyncadd [#allocation8], %s496
          %s498 = sshll.u32 [#allocation9], 4
          %s499 = int_to_ptr.vmem [resolvable:$true] %s498
          %504 = dma.hbm_to_vmem [thread:$0]  %s7, 256, %s499, [#allocation8], 64, 64, 4
        $region44: #{tpu_custom_call.1} parent=11 // pred_fallthru
          _
        // Predicated region
        $region45: #{tpu_custom_call.1} parent=11 // pred_check
          %p505 = pneg %p235
        $region46: #{tpu_custom_call.1} parent=11 // pred_check_branch
          %507 = sbr.rel (%p505) target = $region48
        $region47: #{tpu_custom_call.1} parent=11 // pred_region
          _
        $region48: #{tpu_custom_call.1} parent=11 // pred_fallthru
          _
        // Predicated region
        $region49: #{tpu_custom_call.1} parent=11 // pred_check
          %p508 = pneg %p256
        $region50: #{tpu_custom_call.1} parent=11 // pred_check_branch
          %510 = sbr.rel (%p508) target = $region52
        $region51: #{tpu_custom_call.1} parent=11 // pred_region
          %s512 = ssub.s32 256, 256
          %513 = vsyncadd [#allocation11], %s512
          %s514 = sshll.u32 [#allocation10], 4
          %s515 = int_to_ptr.vmem [resolvable:$true] %s514
          %520 = dma.hbm_to_vmem [thread:$0]  %s9, 256, %s515, [#allocation11], 64, 64, 4
        $region52: #{tpu_custom_call.1} parent=11 // pred_fallthru
          _
        // Predicated region
        $region53: #{tpu_custom_call.1} parent=11 // pred_check
          %p521 = pneg %p277
        $region54: #{tpu_custom_call.1} parent=11 // pred_check_branch
          %523 = sbr.rel (%p521) target = $region56
        $region55: #{tpu_custom_call.1} parent=11 // pred_region
          %s525 = ssub.s32 16, 16
          %526 = vsyncadd [#allocation11], %s525
          %s528 = sshll.u32 [#allocation12], 4
          %s529 = int_to_ptr.vmem [resolvable:$true] %s528
          %531 = dma.hbm_to_vmem [thread:$0]  %s10, 16, %s529, [#allocation11]
        $region56: #{tpu_custom_call.1} parent=11 // pred_fallthru
          _
        // Predicated region
        $region57: #{tpu_custom_call.1} parent=11 // pred_check
          %p532 = pneg %p298
        $region58: #{tpu_custom_call.1} parent=11 // pred_check_branch
          %534 = sbr.rel (%p532) target = $region60
        $region59: #{tpu_custom_call.1} parent=11 // pred_region
          _
        $region60: #{tpu_custom_call.1} parent=11 // pred_fallthru
          _
        // Predicated region
        $region61: #{tpu_custom_call.1} parent=11 // pred_check
          %p535 = pneg %p319
        $region62: #{tpu_custom_call.1} parent=11 // pred_check_branch
          %537 = sbr.rel (%p535) target = $region64
        $region63: #{tpu_custom_call.1} parent=11 // pred_region
          _
        $region64: #{tpu_custom_call.1} parent=11 // pred_fallthru
          _
        // Predicated region
        $region65: #{tpu_custom_call.1} parent=11 // pred_check
          %p538 = pneg %p340
        $region66: #{tpu_custom_call.1} parent=11 // pred_check_branch
          %540 = sbr.rel (%p538) target = $region68
        $region67: #{tpu_custom_call.1} parent=11 // pred_region
          _
        $region68: #{tpu_custom_call.1} parent=11 // pred_fallthru
          _
        // Predicated region
        $region69: #{tpu_custom_call.1} parent=11 // pred_check
          %p541 = pneg %p361
        $region70: #{tpu_custom_call.1} parent=11 // pred_check_branch
          %543 = sbr.rel (%p541) target = $region72
        $region71: #{tpu_custom_call.1} parent=11 // pred_region
          _
        $region72: #{tpu_custom_call.1} parent=11 // pred_fallthru
          _
        // Predicated region
        $region73: #{tpu_custom_call.1} parent=11 // pred_check
          %p544 = pneg %p382
        $region74: #{tpu_custom_call.1} parent=11 // pred_check_branch
          %546 = sbr.rel (%p544) target = $region76
        $region75: #{tpu_custom_call.1} parent=11 // pred_region
          _
        $region76: #{tpu_custom_call.1} parent=11 // pred_fallthru
          _
        // Predicated region
        $region77: #{tpu_custom_call.1} parent=11 // pred_check
          %p547 = pneg %p403
        $region78: #{tpu_custom_call.1} parent=11 // pred_check_branch
          %549 = sbr.rel (%p547) target = $region80
        $region79: #{tpu_custom_call.1} parent=11 // pred_region
          _
        $region80: #{tpu_custom_call.1} parent=11 // pred_fallthru
          _
      $region12: #{tpu_custom_call.1} parent=5 // pred_fallthru
        _
      %p550 = scmp.lt.s32.totalorder %s29, 4
      // Predicated region
      $region81: #{tpu_custom_call.1} parent=5 // pred_check
        %p551 = pneg %p550
      $region82: #{tpu_custom_call.1} parent=5 // pred_check_branch
        %553 = sbr.rel (%p551) target = $region84
      $region83: #{tpu_custom_call.1} parent=5 // pred_region
        _
      $region84: #{tpu_custom_call.1} parent=5 // pred_fallthru
        _
      %p554 = scmp.le.s32.totalorder 1, %s29
      %p555 = scmp.lt.s32.totalorder %s29, 5
      %p556 = pnand %p554, %p555
      %p557 = pneg %p556
      // Predicated region
      $region85: #{tpu_custom_call.1} parent=5 // pred_check
        _
      $region86: #{tpu_custom_call.1} parent=5 // pred_check_branch
        %559 = sbr.rel (%p556) target = $region88
      $region87: #{tpu_custom_call.1} parent=5 // pred_region
        %s560 = ssub.s32 %s29, 1
        // Predicated region
        $region89: #{tpu_custom_call.1} parent=87 // pred_check
          %p561 = pneg %p130
        $region90: #{tpu_custom_call.1} parent=87 // pred_check_branch
          %563 = sbr.rel (%p561) target = $region92
        $region91: #{tpu_custom_call.1} parent=87 // pred_region
          %564 = dma.done [#allocation5], 256
        $region92: #{tpu_custom_call.1} parent=87 // pred_fallthru
          _
        // Predicated region
        $region93: #{tpu_custom_call.1} parent=87 // pred_check
          %p565 = pneg %p172
        $region94: #{tpu_custom_call.1} parent=87 // pred_check_branch
          %567 = sbr.rel (%p565) target = $region96
        $region95: #{tpu_custom_call.1} parent=87 // pred_region
          %568 = dma.done [#allocation8], 256
        $region96: #{tpu_custom_call.1} parent=87 // pred_fallthru
          _
        // Predicated region
        $region97: #{tpu_custom_call.1} parent=87 // pred_check
          %p569 = pneg %p214
        $region98: #{tpu_custom_call.1} parent=87 // pred_check_branch
          %571 = sbr.rel (%p569) target = $region100
        $region99: #{tpu_custom_call.1} parent=87 // pred_region
          %572 = dma.done [#allocation8], 256
        $region100: #{tpu_custom_call.1} parent=87 // pred_fallthru
          _
        // Predicated region
        $region101: #{tpu_custom_call.1} parent=87 // pred_check
          %p573 = pneg %p256
        $region102: #{tpu_custom_call.1} parent=87 // pred_check_branch
          %575 = sbr.rel (%p573) target = $region104
        $region103: #{tpu_custom_call.1} parent=87 // pred_region
          %576 = dma.done [#allocation11], 256
        $region104: #{tpu_custom_call.1} parent=87 // pred_fallthru
          _
        // Predicated region
        $region105: #{tpu_custom_call.1} parent=87 // pred_check
          %p577 = pneg %p277
        $region106: #{tpu_custom_call.1} parent=87 // pred_check_branch
          %579 = sbr.rel (%p577) target = $region108
        $region107: #{tpu_custom_call.1} parent=87 // pred_region
          %580 = dma.done [#allocation11], 16
        $region108: #{tpu_custom_call.1} parent=87 // pred_fallthru
          _
        %p581 = scmp.lt.s32.totalorder %s38, 1
        %s582 = scalar_select %p581, %s38, 1
        %s583 = smul.addr %s582, 2
        %s584 = smul.addr %s583, 8
        %s585 = scalar_lea.vmem %s0, %s584
        %p586 = pneg %p67
        %p587 = pneg %p64
        %p588 = pneg %p88
        %p589 = pneg %p85
        %p590 = pneg %p109
        %p591 = pneg %p106
        %p592 = pneg %p130
        %p593 = pneg %p127
        %p594 = pneg %p151
        %p595 = pneg %p148
        %p596 = pneg %p172
        %p597 = pneg %p169
        %p598 = pneg %p193
        %p599 = pneg %p190
        %p600 = pneg %p214
        %p601 = pneg %p211
        %p602 = pneg %p235
        %p603 = pneg %p232
        %p604 = pneg %p256
        %p605 = pneg %p253
        %p606 = pneg %p277
        %p607 = pneg %p274
        %p608 = pneg %p298
        %p609 = pneg %p295
        %p610 = pneg %p319
        %p611 = pneg %p316
        %p612 = pneg %p340
        %p613 = pneg %p337
        %p614 = pneg %p361
        %p615 = pneg %p358
        %p616 = pneg %p382
        %p617 = pneg %p379
        %p618 = pneg %p403
        %p619 = pneg %p400
        %p620 = pneg %p431
        %p621 = pneg %p428
        %s622 = sand.u32 %s418, 1
        %s623 = scalar_lea.sflag [#allocation6], %s622
        %s624 = sand.u32 %s418, 1
        %s625 = smul.addr %s624, 8
        %s626 = scalar_lea.vmem [#allocation13], %s625
        %p627 = scmp.lt.s32.totalorder %s38, 1
        %s628 = scalar_select %p627, %s38, 1
        %s629 = smul.addr %s628, 2
        %s630 = smul.addr %s629, 8
        %s631 = scalar_lea.vmem %s0, %s630
        %v633 = vld [vmem:[%s13] sm:$0x1]
        %v634 = vld [vmem:[%s14] sm:$0x1]
        %v635 = vld [vmem:[%s15] sm:$0x1]
        %v636 = vld [vmem:[%s16] sm:$0x1]
        %v637 = vld [vmem:[%s2] sm:$0x1]
        %v638 = vld [vmem:[%s8] sm:$0x1]
        %v639 = vld [vmem:[#allocation12] sm:$0x1]
        %v640 = vld [vmem:[%s12] sm:$0x1]
        %p641 = scmp.eq.s32.totalorder %s39, 0
        // Predicated region
        $region109: #{tpu_custom_call.1} parent=87 // pred_check
          %p642 = pneg %p641
        $region110: #{tpu_custom_call.1} parent=87 // pred_check_branch
          %644 = sbr.rel (%p642) target = $region112
        $region111: #{tpu_custom_call.1} parent=87 // pred_region
          %v645 = vld [vmem:[%s631] sm:$0xff]
          %v646 = vld [vmem:[%s631 + $0x8] sm:$0xff]
          %vm647 = vcmask 261120
          %v648 = vsel %vm647, %v645, 0.0
          %649 = vadd.xlane.f32.xlu0 %v648
          %v650 = vpop.xlane.xlu0 %649
          %v651 = vsel %vm647, %v646, 0.0
          %652 = vadd.xlane.f32.xlu0 %v651
          %v653 = vpop.xlane.xlu0 %652
          %v654 = vrcp.pop 32.0
          %v655 = vmul.f32 %v650, %v654
          %v656 = vmul.f32 %v653, %v654
          %v657 = vsub.f32 %v645, %v655
          %v658 = vsub.f32 %v646, %v656
          %v659 = vmul.f32 %v657, %v657
          %v660 = vmul.f32 %v658, %v658
          %v661 = vsel %vm647, %v659, 0.0
          %662 = vadd.xlane.f32.xlu0 %v661
          %v663 = vpop.xlane.xlu0 %662
          %v664 = vsel %vm647, %v660, 0.0
          %665 = vadd.xlane.f32.xlu0 %v664
          %v666 = vpop.xlane.xlu0 %665
          %v667 = vmul.f32 %v663, %v654
          %v668 = vmul.f32 %v666, %v654
          %v669 = vadd.f32 %v667, 1e-05
          %v670 = vadd.f32 %v668, 1e-05
          %v671 = vrsqrt.pop %v669
          %v672 = vrsqrt.pop %v670
          %v673 = vmul.f32 %v657, %v671
          %v674 = vmul.f32 %v658, %v672
          %v676 = vlaneseq
          %v677 = vshrl.u32 %v676, 7
          %v678 = vsub.s32 0, %v677
          %v679 = vrot.slane %v633, %v678
          %v681 = vmul.f32 %v673, %v679
          %v682 = vmul.f32 %v674, %v679
          %v684 = vlaneseq
          %v685 = vshrl.u32 %v684, 7
          %v686 = vsub.s32 0, %v685
          %v687 = vrot.slane %v634, %v686
          %v689 = vadd.f32 %v681, %v687
          %v690 = vadd.f32 %v682, %v687
          %v691 = vpack.c.bf16 %v690, %v689
          %v692 = vld [vmem:[#allocation4] sm:$0xf]
          %v693 = vld [vmem:[#allocation4 + $0x4] sm:$0xf]
          %v694 = vld [vmem:[#allocation4 + $0x8] sm:$0xf]
          %v695 = vld [vmem:[#allocation4 + $0xc] sm:$0xf]
          %v696 = vld [vmem:[%s4] sm:$0x1]
          %v698 = vlaneseq
          %v699 = vshrl.u32 %v698, 7
          %v700 = vsub.s32 0, %v699
          %v701 = vrot.slane %v696, %v700
          %v707 = vunpack.c.l.b16 %v692
          %v708 = vunpack.c.l.b16 %v693
          %v709 = vunpack.c.l.b16 %v694
          %v710 = vunpack.c.l.b16 %v695
          %v711 = vpack.c.b16 %v708, %v707
          %v712 = vpack.c.b16 %v710, %v709
          %v716 = vsel %vm647, %v691, 0
          %718 = vmatprep.subr.bf16.mxu0 0
          %719 = vmatpush1.bf16.msra.mxu0 0
          %720 = vmatprep.subr.bf16.mxu0 0
          %721 = vmatpush1.bf16.msra.mxu0 0
          %722 = vmatprep.subr.bf16.mxu0 0
          %723 = vmatpush1.bf16.msra.mxu0 0
          %724 = vmatprep.subr.bf16.mxu0 0
          %725 = vmatpush1.bf16.msra.mxu0 0
          %726 = vmatprep.subr.bf16.mxu0 0
          %727 = vmatpush1.bf16.msra.mxu0 0
          %728 = vmatprep.subr.bf16.mxu0 0
          %729 = vmatpush1.bf16.msra.mxu0 0
          %730 = vmatprep.subr.bf16.mxu0 0
          %731 = vmatpush1.bf16.msra.mxu0 %v712
          %732 = vmatprep.subr.bf16.mxu0 0
          %733 = vmatpush1.bf16.msra.mxu0 %v711
          %734 = vmatprep.subr.bf16.mxu0 0
          %735 = vmatpush2.bf16.msra.mxu0 0
          %736 = vmatprep.subr.bf16.mxu0 0
          %737 = vmatpush2.bf16.msra.mxu0 0
          %738 = vmatprep.subr.bf16.mxu0 0
          %739 = vmatpush2.bf16.msra.mxu0 0
          %740 = vmatprep.subr.bf16.mxu0 0
          %741 = vmatpush2.bf16.msra.mxu0 0
          %742 = vmatprep.subr.bf16.mxu0 0
          %743 = vmatpush2.bf16.msra.mxu0 0
          %744 = vmatprep.subr.bf16.mxu0 0
          %745 = vmatpush2.bf16.msra.mxu0 0
          %746 = vmatprep.subr.bf16.mxu0 0
          %747 = vmatpush2.bf16.msra.mxu0 0
          %748 = vmatprep.subr.bf16.mxu0 0
          %749 = vmatpush2.bf16.msra.mxu0 0
          %750 = vmatprep.mubr.bf16.mxu0 0
          %751 = vmatmul.mubr.bf16.gmra.mxu0 %v716
          %v752 = vpop.f32.mrf.mxu0
          %v753 = vadd.f32 %v701, %v752
          %v754 = vpop.f32.mrf.mxu0
          %v755 = vpop.f32.mrf.mxu0
          %v756 = vadd.f32 %v701, %v755
          %v757 = vpop.f32.mrf.mxu0
          %758 = vdwg.mxu0
          %v759 = vld [vmem:[#allocation7] sm:$0xf]
          %v760 = vld [vmem:[#allocation7 + $0x4] sm:$0xf]
          %v761 = vld [vmem:[#allocation7 + $0x8] sm:$0xf]
          %v762 = vld [vmem:[#allocation7 + $0xc] sm:$0xf]
          %v763 = vld [vmem:[%s6] sm:$0x1]
          %v765 = vlaneseq
          %v766 = vshrl.u32 %v765, 7
          %v767 = vsub.s32 0, %v766
          %v768 = vrot.slane %v763, %v767
          %v774 = vunpack.c.l.b16 %v759
          %v775 = vunpack.c.l.b16 %v760
          %v776 = vunpack.c.l.b16 %v761
          %v777 = vunpack.c.l.b16 %v762
          %v778 = vpack.c.b16 %v775, %v774
          %v779 = vpack.c.b16 %v777, %v776
          %782 = vmatprep.subr.bf16.mxu0 0
          %783 = vmatpush1.bf16.msra.mxu0 0
          %784 = vmatprep.subr.bf16.mxu0 0
          %785 = vmatpush1.bf16.msra.mxu0 0
          %786 = vmatprep.subr.bf16.mxu0 0
          %787 = vmatpush1.bf16.msra.mxu0 0
          %788 = vmatprep.subr.bf16.mxu0 0
          %789 = vmatpush1.bf16.msra.mxu0 0
          %790 = vmatprep.subr.bf16.mxu0 0
          %791 = vmatpush1.bf16.msra.mxu0 0
          %792 = vmatprep.subr.bf16.mxu0 0
          %793 = vmatpush1.bf16.msra.mxu0 0
          %794 = vmatprep.subr.bf16.mxu0 0
          %795 = vmatpush1.bf16.msra.mxu0 %v779
          %796 = vmatprep.subr.bf16.mxu0 0
          %797 = vmatpush1.bf16.msra.mxu0 %v778
          %798 = vmatprep.subr.bf16.mxu0 0
          %799 = vmatpush2.bf16.msra.mxu0 0
          %800 = vmatprep.subr.bf16.mxu0 0
          %801 = vmatpush2.bf16.msra.mxu0 0
          %802 = vmatprep.subr.bf16.mxu0 0
          %803 = vmatpush2.bf16.msra.mxu0 0
          %804 = vmatprep.subr.bf16.mxu0 0
          %805 = vmatpush2.bf16.msra.mxu0 0
          %806 = vmatprep.subr.bf16.mxu0 0
          %807 = vmatpush2.bf16.msra.mxu0 0
          %808 = vmatprep.subr.bf16.mxu0 0
          %809 = vmatpush2.bf16.msra.mxu0 0
          %810 = vmatprep.subr.bf16.mxu0 0
          %811 = vmatpush2.bf16.msra.mxu0 0
          %812 = vmatprep.subr.bf16.mxu0 0
          %813 = vmatpush2.bf16.msra.mxu0 0
          %814 = vmatprep.mubr.bf16.mxu0 0
          %815 = vmatmul.mubr.bf16.gmra.mxu0 %v716
          %v816 = vpop.f32.mrf.mxu0
          %v817 = vadd.f32 %v768, %v816
          %v818 = vpop.f32.mrf.mxu0
          %v819 = vpop.f32.mrf.mxu0
          %v820 = vadd.f32 %v768, %v819
          %v821 = vpop.f32.mrf.mxu0
          %822 = vdwg.mxu0
          %825 = vrot.lane.b32.xlu0 %v753, 120
          %v826 = vpop.permute.xlu0 %825
          %827 = vrot.lane.b32.xlu0 %v756, 120
          %v828 = vpop.permute.xlu0 %827
          %831 = vrot.lane.b32.xlu0 %v753, 112
          %v832 = vpop.permute.xlu0 %831
          %833 = vrot.lane.b32.xlu0 %v756, 112
          %v834 = vpop.permute.xlu0 %833
          %837 = vrot.lane.b32.xlu0 %v753, 104
          %v838 = vpop.permute.xlu0 %837
          %839 = vrot.lane.b32.xlu0 %v756, 104
          %v840 = vpop.permute.xlu0 %839
          %v843 = vpack.c.bf16 %v756, %v753
          %v844 = vpack.c.bf16 %v828, %v826
          %v845 = vpack.c.bf16 %v834, %v832
          %v846 = vpack.c.bf16 %v840, %v838
          %v851 = vunpack.c.l.b16 %v843
          %v852 = vunpack.c.h.b16 %v843
          %v853 = vunpack.c.l.b16 %v844
          %v854 = vunpack.c.h.b16 %v844
          %v855 = vunpack.c.l.b16 %v845
          %v856 = vunpack.c.h.b16 %v845
          %v857 = vunpack.c.l.b16 %v846
          %v858 = vunpack.c.h.b16 %v846
          %v859 = vpack.c.b16 %v851, %v851
          %v860 = vpack.c.b16 %v852, %v852
          %v861 = vpack.c.b16 %v853, %v853
          %v862 = vpack.c.b16 %v854, %v854
          %v863 = vpack.c.b16 %v855, %v855
          %v864 = vpack.c.b16 %v856, %v856
          %v865 = vpack.c.b16 %v857, %v857
          %v866 = vpack.c.b16 %v858, %v858
          %vm875 = vcmask 60416
          %876 = vst.msk [vmem:[#allocation2] sm:$0xf] %vm875, %v859
          %877 = vst.msk [vmem:[#allocation2 + $0x4] sm:$0xf] %vm875, %v860
          %878 = vst.msk [vmem:[#allocation2 + $0x8] sm:$0xf] %vm875, %v861
          %879 = vst.msk [vmem:[#allocation2 + $0xc] sm:$0xf] %vm875, %v862
          %880 = vst.msk [vmem:[#allocation2 + $0x10] sm:$0xf] %vm875, %v863
          %881 = vst.msk [vmem:[#allocation2 + $0x14] sm:$0xf] %vm875, %v864
          %882 = vst.msk [vmem:[#allocation2 + $0x18] sm:$0xf] %vm875, %v865
          %883 = vst.msk [vmem:[#allocation2 + $0x1c] sm:$0xf] %vm875, %v866
          %886 = vrot.lane.b32.xlu0 %v817, 120
          %v887 = vpop.permute.xlu0 %886
          %888 = vrot.lane.b32.xlu0 %v820, 120
          %v889 = vpop.permute.xlu0 %888
          %892 = vrot.lane.b32.xlu0 %v817, 112
          %v893 = vpop.permute.xlu0 %892
          %894 = vrot.lane.b32.xlu0 %v820, 112
          %v895 = vpop.permute.xlu0 %894
          %898 = vrot.lane.b32.xlu0 %v817, 104
          %v899 = vpop.permute.xlu0 %898
          %900 = vrot.lane.b32.xlu0 %v820, 104
          %v901 = vpop.permute.xlu0 %900
          %v904 = vpack.c.bf16 %v820, %v817
          %v905 = vpack.c.bf16 %v889, %v887
          %v906 = vpack.c.bf16 %v895, %v893
          %v907 = vpack.c.bf16 %v901, %v899
          %v912 = vunpack.c.l.b16 %v904
          %v913 = vunpack.c.h.b16 %v904
          %v914 = vunpack.c.l.b16 %v905
          %v915 = vunpack.c.h.b16 %v905
          %v916 = vunpack.c.l.b16 %v906
          %v917 = vunpack.c.h.b16 %v906
          %v918 = vunpack.c.l.b16 %v907
          %v919 = vunpack.c.h.b16 %v907
          %v920 = vpack.c.b16 %v912, %v912
          %v921 = vpack.c.b16 %v913, %v913
          %v922 = vpack.c.b16 %v914, %v914
          %v923 = vpack.c.b16 %v915, %v915
          %v924 = vpack.c.b16 %v916, %v916
          %v925 = vpack.c.b16 %v917, %v917
          %v926 = vpack.c.b16 %v918, %v918
          %v927 = vpack.c.b16 %v919, %v919
          %936 = vst.msk [vmem:[#allocation3] sm:$0xf] %vm875, %v920
          %937 = vst.msk [vmem:[#allocation3 + $0x4] sm:$0xf] %vm875, %v921
          %938 = vst.msk [vmem:[#allocation3 + $0x8] sm:$0xf] %vm875, %v922
          %939 = vst.msk [vmem:[#allocation3 + $0xc] sm:$0xf] %vm875, %v923
          %940 = vst.msk [vmem:[#allocation3 + $0x10] sm:$0xf] %vm875, %v924
          %941 = vst.msk [vmem:[#allocation3 + $0x14] sm:$0xf] %vm875, %v925
          %942 = vst.msk [vmem:[#allocation3 + $0x18] sm:$0xf] %vm875, %v926
          %943 = vst.msk [vmem:[#allocation3 + $0x1c] sm:$0xf] %vm875, %v927
        $region112: #{tpu_custom_call.1} parent=87 // pred_fallthru
          _
        %s944 = smul.u32 %s39, 8
        %s945 = scalar_lea.vmem %s631, %s944
        %v946 = vld [vmem:[%s945] sm:$0xff]
        %vm947 = vcmask 261120
        %v948 = vsel %vm947, %v946, 0.0
        %949 = vadd.xlane.f32.xlu0 %v948
        %v950 = vpop.xlane.xlu0 %949
        %v951 = vrcp.pop 32.0
        %v952 = vmul.f32 %v950, %v951
        %v953 = vsub.f32 %v946, %v952
        %v954 = vmul.f32 %v953, %v953
        %v955 = vsel %vm947, %v954, 0.0
        %956 = vadd.xlane.f32.xlu0 %v955
        %v957 = vpop.xlane.xlu0 %956
        %v958 = vmul.f32 %v957, %v951
        %v959 = vadd.f32 %v958, 1e-05
        %v960 = vrsqrt.pop %v959
        %v961 = vmul.f32 %v953, %v960
        %v963 = vlaneseq
        %v964 = vshrl.u32 %v963, 7
        %v965 = vsub.s32 0, %v964
        %v966 = vrot.slane %v633, %v965
        %v968 = vmul.f32 %v961, %v966
        %v970 = vlaneseq
        %v971 = vshrl.u32 %v970, 7
        %v972 = vsub.s32 0, %v971
        %v973 = vrot.slane %v634, %v972
        %v975 = vadd.f32 %v968, %v973
        %v976 = vpack.c.bf16 %v975, %v975
        %v977 = vld [vmem:[%s1] sm:$0xf]
        %v978 = vld [vmem:[%s1 + $0x4] sm:$0xf]
        %v979 = vld [vmem:[%s1 + $0x8] sm:$0xf]
        %v980 = vld [vmem:[%s1 + $0xc] sm:$0xf]
        %v982 = vlaneseq
        %v983 = vshrl.u32 %v982, 7
        %v984 = vsub.s32 0, %v983
        %v985 = vrot.slane %v637, %v984
        %v991 = vunpack.c.l.b16 %v977
        %v992 = vunpack.c.l.b16 %v978
        %v993 = vunpack.c.l.b16 %v979
        %v994 = vunpack.c.l.b16 %v980
        %v995 = vpack.c.b16 %v992, %v991
        %v996 = vpack.c.b16 %v994, %v993
        %v1000 = vsel %vm947, %v976, 0
        %1002 = vmatprep.subr.bf16.mxu0 0
        %1003 = vmatpush1.bf16.msra.mxu0 0
        %1004 = vmatprep.subr.bf16.mxu0 0
        %1005 = vmatpush1.bf16.msra.mxu0 0
        %1006 = vmatprep.subr.bf16.mxu0 0
        %1007 = vmatpush1.bf16.msra.mxu0 0
        %1008 = vmatprep.subr.bf16.mxu0 0
        %1009 = vmatpush1.bf16.msra.mxu0 0
        %1010 = vmatprep.subr.bf16.mxu0 0
        %1011 = vmatpush1.bf16.msra.mxu0 0
        %1012 = vmatprep.subr.bf16.mxu0 0
        %1013 = vmatpush1.bf16.msra.mxu0 0
        %1014 = vmatprep.subr.bf16.mxu0 0
        %1015 = vmatpush1.bf16.msra.mxu0 %v996
        %1016 = vmatprep.subr.bf16.mxu0 0
        %1017 = vmatpush1.bf16.msra.mxu0 %v995
        %1018 = vmatprep.subr.bf16.mxu0 0
        %1019 = vmatpush2.bf16.msra.mxu0 0
        %1020 = vmatprep.subr.bf16.mxu0 0
        %1021 = vmatpush2.bf16.msra.mxu0 0
        %1022 = vmatprep.subr.bf16.mxu0 0
        %1023 = vmatpush2.bf16.msra.mxu0 0
        %1024 = vmatprep.subr.bf16.mxu0 0
        %1025 = vmatpush2.bf16.msra.mxu0 0
        %1026 = vmatprep.subr.bf16.mxu0 0
        %1027 = vmatpush2.bf16.msra.mxu0 0
        %1028 = vmatprep.subr.bf16.mxu0 0
        %1029 = vmatpush2.bf16.msra.mxu0 0
        %1030 = vmatprep.subr.bf16.mxu0 0
        %1031 = vmatpush2.bf16.msra.mxu0 0
        %1032 = vmatprep.subr.bf16.mxu0 0
        %1033 = vmatpush2.bf16.msra.mxu0 0
        %1034 = vmatprep.mubr.bf16.mxu0 0
        %1035 = vmatmul.mubr.bf16.gmra.mxu0 %v1000
        %v1036 = vpop.f32.mrf.mxu0
        %v1037 = vadd.f32 %v985, %v1036
        %v1038 = vpop.f32.mrf.mxu0
        %v1039 = vpop.f32.mrf.mxu0
        %v1040 = vpop.f32.mrf.mxu0
        %1041 = vdwg.mxu0
        %v1042 = vmul.f32 %v1037, 0.35355338
        %1044 = vrot.lane.b32.xlu0 %v1042, 120
        %v1045 = vpop.permute.xlu0 %1044
        %1047 = vrot.lane.b32.xlu0 %v1042, 112
        %v1048 = vpop.permute.xlu0 %1047
        %1050 = vrot.lane.b32.xlu0 %v1042, 104
        %v1051 = vpop.permute.xlu0 %1050
        %v1053 = vpack.c.bf16 %v1042, %v1042
        %v1054 = vpack.c.bf16 %v1045, %v1045
        %v1055 = vpack.c.bf16 %v1048, %v1048
        %v1056 = vpack.c.bf16 %v1051, %v1051
        %v1057 = vld [vmem:[#allocation2] sm:$0xf]
        %v1058 = vld [vmem:[#allocation2 + $0x4] sm:$0xf]
        %v1059 = vld [vmem:[#allocation2 + $0x8] sm:$0xf]
        %v1060 = vld [vmem:[#allocation2 + $0xc] sm:$0xf]
        %v1061 = vld [vmem:[#allocation2 + $0x10] sm:$0xf]
        %v1062 = vld [vmem:[#allocation2 + $0x14] sm:$0xf]
        %v1063 = vld [vmem:[#allocation2 + $0x18] sm:$0xf]
        %v1064 = vld [vmem:[#allocation2 + $0x1c] sm:$0xf]
        %v1065 = vld [vmem:[#allocation3] sm:$0xf]
        %v1066 = vld [vmem:[#allocation3 + $0x4] sm:$0xf]
        %v1067 = vld [vmem:[#allocation3 + $0x8] sm:$0xf]
        %v1068 = vld [vmem:[#allocation3 + $0xc] sm:$0xf]
        %v1069 = vld [vmem:[#allocation3 + $0x10] sm:$0xf]
        %v1070 = vld [vmem:[#allocation3 + $0x14] sm:$0xf]
        %v1071 = vld [vmem:[#allocation3 + $0x18] sm:$0xf]
        %v1072 = vld [vmem:[#allocation3 + $0x1c] sm:$0xf]
        %v1075 = vunpack.c.l.b16 %v1057
        %v1076 = vunpack.c.l.b16 %v1058
        %v1077 = vpack.c.b16 %v1076, %v1075
        %vm1078 = vcmask 64512
        %v1080 = vsel %vm1078, %v1053, 0
        %v1083 = vsel %vm1078, %v1077, 0
        %1085 = vmatprep.subr.bf16.mxu0 0
        %1086 = vmatpush1.bf16.xpose.msra.mxu0 0
        %1087 = vmatprep.subr.bf16.mxu0 0
        %1088 = vmatpush1.bf16.xpose.msra.mxu0 0
        %1089 = vmatprep.subr.bf16.mxu0 0
        %1090 = vmatpush1.bf16.xpose.msra.mxu0 0
        %1091 = vmatprep.subr.bf16.mxu0 0
        %1092 = vmatpush1.bf16.xpose.msra.mxu0 0
        %1093 = vmatprep.subr.bf16.mxu0 0
        %1094 = vmatpush1.bf16.xpose.msra.mxu0 0
        %1095 = vmatprep.subr.bf16.mxu0 0
        %1096 = vmatpush1.bf16.xpose.msra.mxu0 0
        %1097 = vmatprep.subr.bf16.mxu0 0
        %1098 = vmatpush1.bf16.xpose.msra.mxu0 0
        %1099 = vmatprep.subr.bf16.mxu0 0
        %1100 = vmatpush1.bf16.xpose.msra.mxu0 %v1083
        %1101 = vmatprep.subr.bf16.mxu0 0
        %1102 = vmatpush2.bf16.xpose.msra.mxu0 0
        %1103 = vmatprep.subr.bf16.mxu0 0
        %1104 = vmatpush2.bf16.xpose.msra.mxu0 0
        %1105 = vmatprep.subr.bf16.mxu0 0
        %1106 = vmatpush2.bf16.xpose.msra.mxu0 0
        %1107 = vmatprep.subr.bf16.mxu0 0
        %1108 = vmatpush2.bf16.xpose.msra.mxu0 0
        %1109 = vmatprep.subr.bf16.mxu0 0
        %1110 = vmatpush2.bf16.xpose.msra.mxu0 0
        %1111 = vmatprep.subr.bf16.mxu0 0
        %1112 = vmatpush2.bf16.xpose.msra.mxu0 0
        %1113 = vmatprep.subr.bf16.mxu0 0
        %1114 = vmatpush2.bf16.xpose.msra.mxu0 0
        %1115 = vmatprep.subr.bf16.mxu0 0
        %1116 = vmatpush2.bf16.xpose.msra.mxu0 0
        %1117 = vmatprep.mubr.bf16.mxu0 0
        %1118 = vmatmul.mubr.bf16.gmra.mxu0 %v1080
        %v1119 = vpop.f32.mrf.mxu0
        %v1120 = vadd.f32 0.0, %v1119
        %v1121 = vpop.f32.mrf.mxu0
        %v1122 = vpop.f32.mrf.mxu0
        %v1123 = vpop.f32.mrf.mxu0
        %1124 = vdwg.mxu0
        %v1127 = vunpack.c.l.b16 %v1059
        %v1128 = vunpack.c.l.b16 %v1060
        %v1129 = vpack.c.b16 %v1128, %v1127
        %v1131 = vsel %vm1078, %v1054, 0
        %v1134 = vsel %vm1078, %v1129, 0
        %1136 = vmatprep.subr.bf16.mxu0 0
        %1137 = vmatpush1.bf16.xpose.msra.mxu0 0
        %1138 = vmatprep.subr.bf16.mxu0 0
        %1139 = vmatpush1.bf16.xpose.msra.mxu0 0
        %1140 = vmatprep.subr.bf16.mxu0 0
        %1141 = vmatpush1.bf16.xpose.msra.mxu0 0
        %1142 = vmatprep.subr.bf16.mxu0 0
        %1143 = vmatpush1.bf16.xpose.msra.mxu0 0
        %1144 = vmatprep.subr.bf16.mxu0 0
        %1145 = vmatpush1.bf16.xpose.msra.mxu0 0
        %1146 = vmatprep.subr.bf16.mxu0 0
        %1147 = vmatpush1.bf16.xpose.msra.mxu0 0
        %1148 = vmatprep.subr.bf16.mxu0 0
        %1149 = vmatpush1.bf16.xpose.msra.mxu0 0
        %1150 = vmatprep.subr.bf16.mxu0 0
        %1151 = vmatpush1.bf16.xpose.msra.mxu0 %v1134
        %1152 = vmatprep.subr.bf16.mxu0 0
        %1153 = vmatpush2.bf16.xpose.msra.mxu0 0
        %1154 = vmatprep.subr.bf16.mxu0 0
        %1155 = vmatpush2.bf16.xpose.msra.mxu0 0
        %1156 = vmatprep.subr.bf16.mxu0 0
        %1157 = vmatpush2.bf16.xpose.msra.mxu0 0
        %1158 = vmatprep.subr.bf16.mxu0 0
        %1159 = vmatpush2.bf16.xpose.msra.mxu0 0
        %1160 = vmatprep.subr.bf16.mxu0 0
        %1161 = vmatpush2.bf16.xpose.msra.mxu0 0
        %1162 = vmatprep.subr.bf16.mxu0 0
        %1163 = vmatpush2.bf16.xpose.msra.mxu0 0
        %1164 = vmatprep.subr.bf16.mxu0 0
        %1165 = vmatpush2.bf16.xpose.msra.mxu0 0
        %1166 = vmatprep.subr.bf16.mxu0 0
        %1167 = vmatpush2.bf16.xpose.msra.mxu0 0
        %1168 = vmatprep.mubr.bf16.mxu0 0
        %1169 = vmatmul.mubr.bf16.gmra.mxu0 %v1131
        %v1170 = vpop.f32.mrf.mxu0
        %v1171 = vadd.f32 0.0, %v1170
        %v1172 = vpop.f32.mrf.mxu0
        %v1173 = vpop.f32.mrf.mxu0
        %v1174 = vpop.f32.mrf.mxu0
        %1175 = vdwg.mxu0
        %v1178 = vunpack.c.l.b16 %v1061
        %v1179 = vunpack.c.l.b16 %v1062
        %v1180 = vpack.c.b16 %v1179, %v1178
        %v1182 = vsel %vm1078, %v1055, 0
        %v1185 = vsel %vm1078, %v1180, 0
        %1187 = vmatprep.subr.bf16.mxu0 0
        %1188 = vmatpush1.bf16.xpose.msra.mxu0 0
        %1189 = vmatprep.subr.bf16.mxu0 0
        %1190 = vmatpush1.bf16.xpose.msra.mxu0 0
        %1191 = vmatprep.subr.bf16.mxu0 0
        %1192 = vmatpush1.bf16.xpose.msra.mxu0 0
        %1193 = vmatprep.subr.bf16.mxu0 0
        %1194 = vmatpush1.bf16.xpose.msra.mxu0 0
        %1195 = vmatprep.subr.bf16.mxu0 0
        %1196 = vmatpush1.bf16.xpose.msra.mxu0 0
        %1197 = vmatprep.subr.bf16.mxu0 0
        %1198 = vmatpush1.bf16.xpose.msra.mxu0 0
        %1199 = vmatprep.subr.bf16.mxu0 0
        %1200 = vmatpush1.bf16.xpose.msra.mxu0 0
        %1201 = vmatprep.subr.bf16.mxu0 0
        %1202 = vmatpush1.bf16.xpose.msra.mxu0 %v1185
        %1203 = vmatprep.subr.bf16.mxu0 0
        %1204 = vmatpush2.bf16.xpose.msra.mxu0 0
        %1205 = vmatprep.subr.bf16.mxu0 0
        %1206 = vmatpush2.bf16.xpose.msra.mxu0 0
        %1207 = vmatprep.subr.bf16.mxu0 0
        %1208 = vmatpush2.bf16.xpose.msra.mxu0 0
        %1209 = vmatprep.subr.bf16.mxu0 0
        %1210 = vmatpush2.bf16.xpose.msra.mxu0 0
        %1211 = vmatprep.subr.bf16.mxu0 0
        %1212 = vmatpush2.bf16.xpose.msra.mxu0 0
        %1213 = vmatprep.subr.bf16.mxu0 0
        %1214 = vmatpush2.bf16.xpose.msra.mxu0 0
        %1215 = vmatprep.subr.bf16.mxu0 0
        %1216 = vmatpush2.bf16.xpose.msra.mxu0 0
        %1217 = vmatprep.subr.bf16.mxu0 0
        %1218 = vmatpush2.bf16.xpose.msra.mxu0 0
        %1219 = vmatprep.mubr.bf16.mxu0 0
        %1220 = vmatmul.mubr.bf16.gmra.mxu0 %v1182
        %v1221 = vpop.f32.mrf.mxu0
        %v1222 = vadd.f32 0.0, %v1221
        %v1223 = vpop.f32.mrf.mxu0
        %v1224 = vpop.f32.mrf.mxu0
        %v1225 = vpop.f32.mrf.mxu0
        %1226 = vdwg.mxu0
        %v1229 = vunpack.c.l.b16 %v1063
        %v1230 = vunpack.c.l.b16 %v1064
        %v1231 = vpack.c.b16 %v1230, %v1229
        %v1233 = vsel %vm1078, %v1056, 0
        %v1236 = vsel %vm1078, %v1231, 0
        %1238 = vmatprep.subr.bf16.mxu0 0
        %1239 = vmatpush1.bf16.xpose.msra.mxu0 0
        %1240 = vmatprep.subr.bf16.mxu0 0
        %1241 = vmatpush1.bf16.xpose.msra.mxu0 0
        %1242 = vmatprep.subr.bf16.mxu0 0
        %1243 = vmatpush1.bf16.xpose.msra.mxu0 0
        %1244 = vmatprep.subr.bf16.mxu0 0
        %1245 = vmatpush1.bf16.xpose.msra.mxu0 0
        %1246 = vmatprep.subr.bf16.mxu0 0
        %1247 = vmatpush1.bf16.xpose.msra.mxu0 0
        %1248 = vmatprep.subr.bf16.mxu0 0
        %1249 = vmatpush1.bf16.xpose.msra.mxu0 0
        %1250 = vmatprep.subr.bf16.mxu0 0
        %1251 = vmatpush1.bf16.xpose.msra.mxu0 0
        %1252 = vmatprep.subr.bf16.mxu0 0
        %1253 = vmatpush1.bf16.xpose.msra.mxu0 %v1236
        %1254 = vmatprep.subr.bf16.mxu0 0
        %1255 = vmatpush2.bf16.xpose.msra.mxu0 0
        %1256 = vmatprep.subr.bf16.mxu0 0
        %1257 = vmatpush2.bf16.xpose.msra.mxu0 0
        %1258 = vmatprep.subr.bf16.mxu0 0
        %1259 = vmatpush2.bf16.xpose.msra.mxu0 0
        %1260 = vmatprep.subr.bf16.mxu0 0
        %1261 = vmatpush2.bf16.xpose.msra.mxu0 0
        %1262 = vmatprep.subr.bf16.mxu0 0
        %1263 = vmatpush2.bf16.xpose.msra.mxu0 0
        %1264 = vmatprep.subr.bf16.mxu0 0
        %1265 = vmatpush2.bf16.xpose.msra.mxu0 0
        %1266 = vmatprep.subr.bf16.mxu0 0
        %1267 = vmatpush2.bf16.xpose.msra.mxu0 0
        %1268 = vmatprep.subr.bf16.mxu0 0
        %1269 = vmatpush2.bf16.xpose.msra.mxu0 0
        %1270 = vmatprep.mubr.bf16.mxu0 0
        %1271 = vmatmul.mubr.bf16.gmra.mxu0 %v1233
        %v1272 = vpop.f32.mrf.mxu0
        %v1273 = vadd.f32 0.0, %v1272
        %v1274 = vpop.f32.mrf.mxu0
        %v1275 = vpop.f32.mrf.mxu0
        %v1276 = vpop.f32.mrf.mxu0
        %1277 = vdwg.mxu0
        %vm1278 = vcmask 130048
        %v1279 = vsel %vm1278, %v1120, -inf
        %1280 = vmax.xlane.f32.xlu0 %v1279
        %v1281 = vpop.xlane.xlu0 %1280
        %v1282 = vsel %vm1278, %v1171, -inf
        %1283 = vmax.xlane.f32.xlu0 %v1282
        %v1284 = vpop.xlane.xlu0 %1283
        %v1285 = vsel %vm1278, %v1222, -inf
        %1286 = vmax.xlane.f32.xlu0 %v1285
        %v1287 = vpop.xlane.xlu0 %1286
        %v1288 = vsel %vm1278, %v1273, -inf
        %1289 = vmax.xlane.f32.xlu0 %v1288
        %v1290 = vpop.xlane.xlu0 %1289
        %v1291 = vsub.f32 %v1120, %v1281
        %v1292 = vsub.f32 %v1171, %v1284
        %v1293 = vsub.f32 %v1222, %v1287
        %v1294 = vsub.f32 %v1273, %v1290
        %v1295 = vmul.f32 %v1291, 1.442695
        %v1296 = vpow.pop %v1295
        %v1297 = vmul.f32 %v1292, 1.442695
        %v1298 = vpow.pop %v1297
        %v1299 = vmul.f32 %v1293, 1.442695
        %v1300 = vpow.pop %v1299
        %v1301 = vmul.f32 %v1294, 1.442695
        %v1302 = vpow.pop %v1301
        %v1303 = vsel %vm1278, %v1296, 0.0
        %1304 = vadd.xlane.f32.xlu0 %v1303
        %v1305 = vpop.xlane.xlu0 %1304
        %v1306 = vsel %vm1278, %v1298, 0.0
        %1307 = vadd.xlane.f32.xlu0 %v1306
        %v1308 = vpop.xlane.xlu0 %1307
        %v1309 = vsel %vm1278, %v1300, 0.0
        %1310 = vadd.xlane.f32.xlu0 %v1309
        %v1311 = vpop.xlane.xlu0 %1310
        %v1312 = vsel %vm1278, %v1302, 0.0
        %1313 = vadd.xlane.f32.xlu0 %v1312
        %v1314 = vpop.xlane.xlu0 %1313
        %v1315 = vrcp.pop %v1305
        %v1316 = vrcp.pop %v1308
        %v1317 = vrcp.pop %v1311
        %v1318 = vrcp.pop %v1314
        %v1319 = vmul.f32 %v1296, %v1315
        %v1320 = vmul.f32 %v1298, %v1316
        %v1321 = vmul.f32 %v1300, %v1317
        %v1322 = vmul.f32 %v1302, %v1318
        %v1323 = vpack.c.bf16 %v1319, %v1319
        %v1324 = vpack.c.bf16 %v1320, %v1320
        %v1325 = vpack.c.bf16 %v1321, %v1321
        %v1326 = vpack.c.bf16 %v1322, %v1322
        %v1329 = vunpack.c.l.b16 %v1065
        %v1330 = vunpack.c.l.b16 %v1066
        %v1331 = vpack.c.b16 %v1330, %v1329
        %v1334 = vsel %vm1278, %v1323, 0
        %1336 = vmatprep.subr.bf16.mxu0 0
        %1337 = vmatpush1.bf16.msra.mxu0 0
        %1338 = vmatprep.subr.bf16.mxu0 0
        %1339 = vmatpush1.bf16.msra.mxu0 0
        %1340 = vmatprep.subr.bf16.mxu0 0
        %1341 = vmatpush1.bf16.msra.mxu0 0
        %1342 = vmatprep.subr.bf16.mxu0 0
        %1343 = vmatpush1.bf16.msra.mxu0 0
        %1344 = vmatprep.subr.bf16.mxu0 0
        %1345 = vmatpush1.bf16.msra.mxu0 0
        %1346 = vmatprep.subr.bf16.mxu0 0
        %1347 = vmatpush1.bf16.msra.mxu0 0
        %1348 = vmatprep.subr.bf16.mxu0 0
        %1349 = vmatpush1.bf16.msra.mxu0 0
        %1350 = vmatprep.subr.bf16.mxu0 0
        %1351 = vmatpush1.bf16.msra.mxu0 %v1331
        %1352 = vmatprep.subr.bf16.mxu0 0
        %1353 = vmatpush2.bf16.msra.mxu0 0
        %1354 = vmatprep.subr.bf16.mxu0 0
        %1355 = vmatpush2.bf16.msra.mxu0 0
        %1356 = vmatprep.subr.bf16.mxu0 0
        %1357 = vmatpush2.bf16.msra.mxu0 0
        %1358 = vmatprep.subr.bf16.mxu0 0
        %1359 = vmatpush2.bf16.msra.mxu0 0
        %1360 = vmatprep.subr.bf16.mxu0 0
        %1361 = vmatpush2.bf16.msra.mxu0 0
        %1362 = vmatprep.subr.bf16.mxu0 0
        %1363 = vmatpush2.bf16.msra.mxu0 0
        %1364 = vmatprep.subr.bf16.mxu0 0
        %1365 = vmatpush2.bf16.msra.mxu0 0
        %1366 = vmatprep.subr.bf16.mxu0 0
        %1367 = vmatpush2.bf16.msra.mxu0 0
        %1368 = vmatprep.mubr.bf16.mxu0 0
        %1369 = vmatmul.mubr.bf16.gmra.mxu0 %v1334
        %v1370 = vpop.f32.mrf.mxu0
        %v1371 = vadd.f32 0.0, %v1370
        %v1372 = vpop.f32.mrf.mxu0
        %v1373 = vpop.f32.mrf.mxu0
        %v1374 = vpop.f32.mrf.mxu0
        %1375 = vdwg.mxu0
        %v1378 = vunpack.c.l.b16 %v1067
        %v1379 = vunpack.c.l.b16 %v1068
        %v1380 = vpack.c.b16 %v1379, %v1378
        %v1383 = vsel %vm1278, %v1324, 0
        %1385 = vmatprep.subr.bf16.mxu0 0
        %1386 = vmatpush1.bf16.msra.mxu0 0
        %1387 = vmatprep.subr.bf16.mxu0 0
        %1388 = vmatpush1.bf16.msra.mxu0 0
        %1389 = vmatprep.subr.bf16.mxu0 0
        %1390 = vmatpush1.bf16.msra.mxu0 0
        %1391 = vmatprep.subr.bf16.mxu0 0
        %1392 = vmatpush1.bf16.msra.mxu0 0
        %1393 = vmatprep.subr.bf16.mxu0 0
        %1394 = vmatpush1.bf16.msra.mxu0 0
        %1395 = vmatprep.subr.bf16.mxu0 0
        %1396 = vmatpush1.bf16.msra.mxu0 0
        %1397 = vmatprep.subr.bf16.mxu0 0
        %1398 = vmatpush1.bf16.msra.mxu0 0
        %1399 = vmatprep.subr.bf16.mxu0 0
        %1400 = vmatpush1.bf16.msra.mxu0 %v1380
        %1401 = vmatprep.subr.bf16.mxu0 0
        %1402 = vmatpush2.bf16.msra.mxu0 0
        %1403 = vmatprep.subr.bf16.mxu0 0
        %1404 = vmatpush2.bf16.msra.mxu0 0
        %1405 = vmatprep.subr.bf16.mxu0 0
        %1406 = vmatpush2.bf16.msra.mxu0 0
        %1407 = vmatprep.subr.bf16.mxu0 0
        %1408 = vmatpush2.bf16.msra.mxu0 0
        %1409 = vmatprep.subr.bf16.mxu0 0
        %1410 = vmatpush2.bf16.msra.mxu0 0
        %1411 = vmatprep.subr.bf16.mxu0 0
        %1412 = vmatpush2.bf16.msra.mxu0 0
        %1413 = vmatprep.subr.bf16.mxu0 0
        %1414 = vmatpush2.bf16.msra.mxu0 0
        %1415 = vmatprep.subr.bf16.mxu0 0
        %1416 = vmatpush2.bf16.msra.mxu0 0
        %1417 = vmatprep.mubr.bf16.mxu0 0
        %1418 = vmatmul.mubr.bf16.gmra.mxu0 %v1383
        %v1419 = vpop.f32.mrf.mxu0
        %v1420 = vadd.f32 0.0, %v1419
        %v1421 = vpop.f32.mrf.mxu0
        %v1422 = vpop.f32.mrf.mxu0
        %v1423 = vpop.f32.mrf.mxu0
        %1424 = vdwg.mxu0
        %v1427 = vunpack.c.l.b16 %v1069
        %v1428 = vunpack.c.l.b16 %v1070
        %v1429 = vpack.c.b16 %v1428, %v1427
        %v1432 = vsel %vm1278, %v1325, 0
        %1434 = vmatprep.subr.bf16.mxu0 0
        %1435 = vmatpush1.bf16.msra.mxu0 0
        %1436 = vmatprep.subr.bf16.mxu0 0
        %1437 = vmatpush1.bf16.msra.mxu0 0
        %1438 = vmatprep.subr.bf16.mxu0 0
        %1439 = vmatpush1.bf16.msra.mxu0 0
        %1440 = vmatprep.subr.bf16.mxu0 0
        %1441 = vmatpush1.bf16.msra.mxu0 0
        %1442 = vmatprep.subr.bf16.mxu0 0
        %1443 = vmatpush1.bf16.msra.mxu0 0
        %1444 = vmatprep.subr.bf16.mxu0 0
        %1445 = vmatpush1.bf16.msra.mxu0 0
        %1446 = vmatprep.subr.bf16.mxu0 0
        %1447 = vmatpush1.bf16.msra.mxu0 0
        %1448 = vmatprep.subr.bf16.mxu0 0
        %1449 = vmatpush1.bf16.msra.mxu0 %v1429
        %1450 = vmatprep.subr.bf16.mxu0 0
        %1451 = vmatpush2.bf16.msra.mxu0 0
        %1452 = vmatprep.subr.bf16.mxu0 0
        %1453 = vmatpush2.bf16.msra.mxu0 0
        %1454 = vmatprep.subr.bf16.mxu0 0
        %1455 = vmatpush2.bf16.msra.mxu0 0
        %1456 = vmatprep.subr.bf16.mxu0 0
        %1457 = vmatpush2.bf16.msra.mxu0 0
        %1458 = vmatprep.subr.bf16.mxu0 0
        %1459 = vmatpush2.bf16.msra.mxu0 0
        %1460 = vmatprep.subr.bf16.mxu0 0
        %1461 = vmatpush2.bf16.msra.mxu0 0
        %1462 = vmatprep.subr.bf16.mxu0 0
        %1463 = vmatpush2.bf16.msra.mxu0 0
        %1464 = vmatprep.subr.bf16.mxu0 0
        %1465 = vmatpush2.bf16.msra.mxu0 0
        %1466 = vmatprep.mubr.bf16.mxu0 0
        %1467 = vmatmul.mubr.bf16.gmra.mxu0 %v1432
        %v1468 = vpop.f32.mrf.mxu0
        %v1469 = vadd.f32 0.0, %v1468
        %v1470 = vpop.f32.mrf.mxu0
        %v1471 = vpop.f32.mrf.mxu0
        %v1472 = vpop.f32.mrf.mxu0
        %1473 = vdwg.mxu0
        %v1476 = vunpack.c.l.b16 %v1071
        %v1477 = vunpack.c.l.b16 %v1072
        %v1478 = vpack.c.b16 %v1477, %v1476
        %v1481 = vsel %vm1278, %v1326, 0
        %1483 = vmatprep.subr.bf16.mxu0 0
        %1484 = vmatpush1.bf16.msra.mxu0 0
        %1485 = vmatprep.subr.bf16.mxu0 0
        %1486 = vmatpush1.bf16.msra.mxu0 0
        %1487 = vmatprep.subr.bf16.mxu0 0
        %1488 = vmatpush1.bf16.msra.mxu0 0
        %1489 = vmatprep.subr.bf16.mxu0 0
        %1490 = vmatpush1.bf16.msra.mxu0 0
        %1491 = vmatprep.subr.bf16.mxu0 0
        %1492 = vmatpush1.bf16.msra.mxu0 0
        %1493 = vmatprep.subr.bf16.mxu0 0
        %1494 = vmatpush1.bf16.msra.mxu0 0
        %1495 = vmatprep.subr.bf16.mxu0 0
        %1496 = vmatpush1.bf16.msra.mxu0 0
        %1497 = vmatprep.subr.bf16.mxu0 0
        %1498 = vmatpush1.bf16.msra.mxu0 %v1478
        %1499 = vmatprep.subr.bf16.mxu0 0
        %1500 = vmatpush2.bf16.msra.mxu0 0
        %1501 = vmatprep.subr.bf16.mxu0 0
        %1502 = vmatpush2.bf16.msra.mxu0 0
        %1503 = vmatprep.subr.bf16.mxu0 0
        %1504 = vmatpush2.bf16.msra.mxu0 0
        %1505 = vmatprep.subr.bf16.mxu0 0
        %1506 = vmatpush2.bf16.msra.mxu0 0
        %1507 = vmatprep.subr.bf16.mxu0 0
        %1508 = vmatpush2.bf16.msra.mxu0 0
        %1509 = vmatprep.subr.bf16.mxu0 0
        %1510 = vmatpush2.bf16.msra.mxu0 0
        %1511 = vmatprep.subr.bf16.mxu0 0
        %1512 = vmatpush2.bf16.msra.mxu0 0
        %1513 = vmatprep.subr.bf16.mxu0 0
        %1514 = vmatpush2.bf16.msra.mxu0 0
        %1515 = vmatprep.mubr.bf16.mxu0 0
        %1516 = vmatmul.mubr.bf16.gmra.mxu0 %v1481
        %v1517 = vpop.f32.mrf.mxu0
        %v1518 = vadd.f32 0.0, %v1517
        %v1519 = vpop.f32.mrf.mxu0
        %v1520 = vpop.f32.mrf.mxu0
        %v1521 = vpop.f32.mrf.mxu0
        %1522 = vdwg.mxu0
        %1524 = vrot.lane.b32.xlu0 %v1420, 8
        %v1525 = vpop.permute.xlu0 %1524
        %1528 = vrot.lane.b32.xlu0 %v1469, 16
        %v1529 = vpop.permute.xlu0 %1528
        %1532 = vrot.lane.b32.xlu0 %v1518, 24
        %v1533 = vpop.permute.xlu0 %1532
        %v1535 = vsel %vm1078, %v1371, %v1525
        %v1536 = vsel %vm1278, %v1535, %v1529
        %vm1537 = vcmask 195584
        %v1538 = vsel %vm1537, %v1536, %v1533
        %v1539 = vpack.c.bf16 %v1538, %v1538
        %v1540 = vld [vmem:[#allocation9] sm:$0xf]
        %v1541 = vld [vmem:[#allocation9 + $0x4] sm:$0xf]
        %v1542 = vld [vmem:[#allocation9 + $0x8] sm:$0xf]
        %v1543 = vld [vmem:[#allocation9 + $0xc] sm:$0xf]
        %v1545 = vlaneseq
        %v1546 = vshrl.u32 %v1545, 7
        %v1547 = vsub.s32 0, %v1546
        %v1548 = vrot.slane %v638, %v1547
        %v1554 = vunpack.c.l.b16 %v1540
        %v1555 = vunpack.c.l.b16 %v1541
        %v1556 = vunpack.c.l.b16 %v1542
        %v1557 = vunpack.c.l.b16 %v1543
        %v1558 = vpack.c.b16 %v1555, %v1554
        %v1559 = vpack.c.b16 %v1557, %v1556
        %v1563 = vsel %vm947, %v1539, 0
        %1565 = vmatprep.subr.bf16.mxu0 0
        %1566 = vmatpush1.bf16.msra.mxu0 0
        %1567 = vmatprep.subr.bf16.mxu0 0
        %1568 = vmatpush1.bf16.msra.mxu0 0
        %1569 = vmatprep.subr.bf16.mxu0 0
        %1570 = vmatpush1.bf16.msra.mxu0 0
        %1571 = vmatprep.subr.bf16.mxu0 0
        %1572 = vmatpush1.bf16.msra.mxu0 0
        %1573 = vmatprep.subr.bf16.mxu0 0
        %1574 = vmatpush1.bf16.msra.mxu0 0
        %1575 = vmatprep.subr.bf16.mxu0 0
        %1576 = vmatpush1.bf16.msra.mxu0 0
        %1577 = vmatprep.subr.bf16.mxu0 0
        %1578 = vmatpush1.bf16.msra.mxu0 %v1559
        %1579 = vmatprep.subr.bf16.mxu0 0
        %1580 = vmatpush1.bf16.msra.mxu0 %v1558
        %1581 = vmatprep.subr.bf16.mxu0 0
        %1582 = vmatpush2.bf16.msra.mxu0 0
        %1583 = vmatprep.subr.bf16.mxu0 0
        %1584 = vmatpush2.bf16.msra.mxu0 0
        %1585 = vmatprep.subr.bf16.mxu0 0
        %1586 = vmatpush2.bf16.msra.mxu0 0
        %1587 = vmatprep.subr.bf16.mxu0 0
        %1588 = vmatpush2.bf16.msra.mxu0 0
        %1589 = vmatprep.subr.bf16.mxu0 0
        %1590 = vmatpush2.bf16.msra.mxu0 0
        %1591 = vmatprep.subr.bf16.mxu0 0
        %1592 = vmatpush2.bf16.msra.mxu0 0
        %1593 = vmatprep.subr.bf16.mxu0 0
        %1594 = vmatpush2.bf16.msra.mxu0 0
        %1595 = vmatprep.subr.bf16.mxu0 0
        %1596 = vmatpush2.bf16.msra.mxu0 0
        %1597 = vmatprep.mubr.bf16.mxu0 0
        %1598 = vmatmul.mubr.bf16.gmra.mxu0 %v1563
        %v1599 = vpop.f32.mrf.mxu0
        %v1600 = vadd.f32 %v1548, %v1599
        %v1601 = vpop.f32.mrf.mxu0
        %v1602 = vpop.f32.mrf.mxu0
        %v1603 = vpop.f32.mrf.mxu0
        %1604 = vdwg.mxu0
        %v1605 = vadd.f32 %v946, %v1600
        %v1606 = vsel %vm947, %v1605, 0.0
        %1607 = vadd.xlane.f32.xlu0 %v1606
        %v1608 = vpop.xlane.xlu0 %1607
        %v1609 = vmul.f32 %v1608, %v951
        %v1610 = vsub.f32 %v1605, %v1609
        %v1611 = vmul.f32 %v1610, %v1610
        %v1612 = vsel %vm947, %v1611, 0.0
        %1613 = vadd.xlane.f32.xlu0 %v1612
        %v1614 = vpop.xlane.xlu0 %1613
        %v1615 = vmul.f32 %v1614, %v951
        %v1616 = vadd.f32 %v1615, 1e-05
        %v1617 = vrsqrt.pop %v1616
        %v1618 = vmul.f32 %v1610, %v1617
        %v1620 = vlaneseq
        %v1621 = vshrl.u32 %v1620, 7
        %v1622 = vsub.s32 0, %v1621
        %v1623 = vrot.slane %v635, %v1622
        %v1625 = vmul.f32 %v1618, %v1623
        %v1627 = vlaneseq
        %v1628 = vshrl.u32 %v1627, 7
        %v1629 = vsub.s32 0, %v1628
        %v1630 = vrot.slane %v636, %v1629
        %v1632 = vadd.f32 %v1625, %v1630
        %v1633 = vpack.c.bf16 %v1632, %v1632
        %v1634 = vld [vmem:[#allocation10] sm:$0xf]
        %v1635 = vld [vmem:[#allocation10 + $0x4] sm:$0xf]
        %v1636 = vld [vmem:[#allocation10 + $0x8] sm:$0xf]
        %v1637 = vld [vmem:[#allocation10 + $0xc] sm:$0xf]
        %v1639 = vlaneseq
        %v1640 = vshrl.u32 %v1639, 7
        %v1641 = vsub.s32 0, %v1640
        %v1642 = vrot.slane %v639, %v1641
        %v1648 = vunpack.c.l.b16 %v1634
        %v1649 = vunpack.c.l.b16 %v1635
        %v1650 = vunpack.c.l.b16 %v1636
        %v1651 = vunpack.c.l.b16 %v1637
        %v1652 = vpack.c.b16 %v1649, %v1648
        %v1653 = vpack.c.b16 %v1651, %v1650
        %v1657 = vsel %vm947, %v1633, 0
        %1659 = vmatprep.subr.bf16.mxu0 0
        %1660 = vmatpush1.bf16.msra.mxu0 0
        %1661 = vmatprep.subr.bf16.mxu0 0
        %1662 = vmatpush1.bf16.msra.mxu0 0
        %1663 = vmatprep.subr.bf16.mxu0 0
        %1664 = vmatpush1.bf16.msra.mxu0 0
        %1665 = vmatprep.subr.bf16.mxu0 0
        %1666 = vmatpush1.bf16.msra.mxu0 0
        %1667 = vmatprep.subr.bf16.mxu0 0
        %1668 = vmatpush1.bf16.msra.mxu0 0
        %1669 = vmatprep.subr.bf16.mxu0 0
        %1670 = vmatpush1.bf16.msra.mxu0 0
        %1671 = vmatprep.subr.bf16.mxu0 0
        %1672 = vmatpush1.bf16.msra.mxu0 %v1653
        %1673 = vmatprep.subr.bf16.mxu0 0
        %1674 = vmatpush1.bf16.msra.mxu0 %v1652
        %1675 = vmatprep.subr.bf16.mxu0 0
        %1676 = vmatpush2.bf16.msra.mxu0 0
        %1677 = vmatprep.subr.bf16.mxu0 0
        %1678 = vmatpush2.bf16.msra.mxu0 0
        %1679 = vmatprep.subr.bf16.mxu0 0
        %1680 = vmatpush2.bf16.msra.mxu0 0
        %1681 = vmatprep.subr.bf16.mxu0 0
        %1682 = vmatpush2.bf16.msra.mxu0 0
        %1683 = vmatprep.subr.bf16.mxu0 0
        %1684 = vmatpush2.bf16.msra.mxu0 0
        %1685 = vmatprep.subr.bf16.mxu0 0
        %1686 = vmatpush2.bf16.msra.mxu0 0
        %1687 = vmatprep.subr.bf16.mxu0 0
        %1688 = vmatpush2.bf16.msra.mxu0 0
        %1689 = vmatprep.subr.bf16.mxu0 0
        %1690 = vmatpush2.bf16.msra.mxu0 0
        %1691 = vmatprep.mubr.bf16.mxu0 0
        %1692 = vmatmul.mubr.bf16.gmra.mxu0 %v1657
        %v1693 = vpop.f32.mrf.mxu0
        %v1694 = vadd.f32 %v1642, %v1693
        %v1695 = vpop.f32.mrf.mxu0
        %v1696 = vpop.f32.mrf.mxu0
        %v1697 = vpop.f32.mrf.mxu0
        %1698 = vdwg.mxu0
        %v1699 = vmax.f32 %v1694, 0.0
        %v1700 = vpack.c.bf16 %v1699, %v1699
        %v1701 = vld [vmem:[%s11] sm:$0xf]
        %v1702 = vld [vmem:[%s11 + $0x4] sm:$0xf]
        %v1703 = vld [vmem:[%s11 + $0x8] sm:$0xf]
        %v1704 = vld [vmem:[%s11 + $0xc] sm:$0xf]
        %v1705 = vld [vmem:[%s11 + $0x10] sm:$0xf]
        %v1706 = vld [vmem:[%s11 + $0x14] sm:$0xf]
        %v1707 = vld [vmem:[%s11 + $0x18] sm:$0xf]
        %v1708 = vld [vmem:[%s11 + $0x1c] sm:$0xf]
        %v1710 = vlaneseq
        %v1711 = vshrl.u32 %v1710, 7
        %v1712 = vsub.s32 0, %v1711
        %v1713 = vrot.slane %v640, %v1712
        %v1723 = vunpack.c.l.b16 %v1701
        %v1724 = vunpack.c.l.b16 %v1702
        %v1725 = vunpack.c.l.b16 %v1703
        %v1726 = vunpack.c.l.b16 %v1704
        %v1727 = vunpack.c.l.b16 %v1705
        %v1728 = vunpack.c.l.b16 %v1706
        %v1729 = vunpack.c.l.b16 %v1707
        %v1730 = vunpack.c.l.b16 %v1708
        %v1731 = vpack.c.b16 %v1724, %v1723
        %v1732 = vpack.c.b16 %v1726, %v1725
        %v1733 = vpack.c.b16 %v1728, %v1727
        %v1734 = vpack.c.b16 %v1730, %v1729
        %vm1739 = vcmask 523264
        %v1741 = vsel %vm1739, %v1700, 0
        %1743 = vmatprep.subr.bf16.mxu0 0
        %1744 = vmatpush1.bf16.msra.mxu0 0
        %1745 = vmatprep.subr.bf16.mxu0 0
        %1746 = vmatpush1.bf16.msra.mxu0 0
        %1747 = vmatprep.subr.bf16.mxu0 0
        %1748 = vmatpush1.bf16.msra.mxu0 0
        %1749 = vmatprep.subr.bf16.mxu0 0
        %1750 = vmatpush1.bf16.msra.mxu0 0
        %1751 = vmatprep.subr.bf16.mxu0 0
        %1752 = vmatpush1.bf16.msra.mxu0 %v1734
        %1753 = vmatprep.subr.bf16.mxu0 0
        %1754 = vmatpush1.bf16.msra.mxu0 %v1733
        %1755 = vmatprep.subr.bf16.mxu0 0
        %1756 = vmatpush1.bf16.msra.mxu0 %v1732
        %1757 = vmatprep.subr.bf16.mxu0 0
        %1758 = vmatpush1.bf16.msra.mxu0 %v1731
        %1759 = vmatprep.subr.bf16.mxu0 0
        %1760 = vmatpush2.bf16.msra.mxu0 0
        %1761 = vmatprep.subr.bf16.mxu0 0
        %1762 = vmatpush2.bf16.msra.mxu0 0
        %1763 = vmatprep.subr.bf16.mxu0 0
        %1764 = vmatpush2.bf16.msra.mxu0 0
        %1765 = vmatprep.subr.bf16.mxu0 0
        %1766 = vmatpush2.bf16.msra.mxu0 0
        %1767 = vmatprep.subr.bf16.mxu0 0
        %1768 = vmatpush2.bf16.msra.mxu0 0
        %1769 = vmatprep.subr.bf16.mxu0 0
        %1770 = vmatpush2.bf16.msra.mxu0 0
        %1771 = vmatprep.subr.bf16.mxu0 0
        %1772 = vmatpush2.bf16.msra.mxu0 0
        %1773 = vmatprep.subr.bf16.mxu0 0
        %1774 = vmatpush2.bf16.msra.mxu0 0
        %1775 = vmatprep.mubr.bf16.mxu0 0
        %1776 = vmatmul.mubr.bf16.gmra.mxu0 %v1741
        %v1777 = vpop.f32.mrf.mxu0
        %v1778 = vadd.f32 %v1713, %v1777
        %v1779 = vpop.f32.mrf.mxu0
        %v1780 = vpop.f32.mrf.mxu0
        %v1781 = vpop.f32.mrf.mxu0
        %1782 = vdwg.mxu0
        %v1783 = vadd.f32 %v1605, %v1778
        %1784 = vst.msk [vmem:[%s626] sm:$0xff] %vm947, %v1783
        %s1785 = sand.u32 %s418, 1
        %s1786 = scalar_lea.sflag [#allocation6], %s1785
        %s1787 = sand.u32 %s418, 1
        %s1788 = smul.addr %s1787, 8
        %s1789 = scalar_lea.vmem [#allocation13], %s1788
        // Predicated region
        $region113: #{tpu_custom_call.1} parent=87 // pred_check
          %p1790 = pneg %p428
        $region114: #{tpu_custom_call.1} parent=87 // pred_check_branch
          %1792 = sbr.rel (%p1790) target = $region116
        $region115: #{tpu_custom_call.1} parent=87 // pred_region
          %s1794 = ssub.s32 128, 128
          %1795 = vsyncadd %s1786, %s1794
          %s1796 = smul.addr %s38, 2
          %s1797 = sadd.s32 %s39, %s1796
          %s1798 = smul.addr %s1797, 128
          %s1799 = scalar_lea.hbm %s17, %s1798
          %s1801 = sshll.u32 %s1789, 4
          %s1802 = int_to_ptr.vmem [resolvable:$true] %s1801
          %1804 = dma.vmem_to_hbm [thread:$0]  %s1802, 128, %s1799, %s1786
        $region116: #{tpu_custom_call.1} parent=87 // pred_fallthru
          _
      $region88: #{tpu_custom_call.1} parent=5 // pred_fallthru
        _
      %p1805 = scmp.le.s32.totalorder 2, %s29
      // Predicated region
      $region117: #{tpu_custom_call.1} parent=5 // pred_check
        %p1806 = pneg %p1805
      $region118: #{tpu_custom_call.1} parent=5 // pred_check_branch
        %1808 = sbr.rel (%p1806) target = $region120
      $region119: #{tpu_custom_call.1} parent=5 // pred_region
        %s1809 = ssub.s32 %s29, 2
        // Predicated region
        $region121: #{tpu_custom_call.1} parent=119 // pred_check
          %p1810 = pneg %p434
        $region122: #{tpu_custom_call.1} parent=119 // pred_check_branch
          %1812 = sbr.rel (%p1810) target = $region124
        $region123: #{tpu_custom_call.1} parent=119 // pred_region
          %s1813 = sand.u32 %s419, 1
          %s1814 = scalar_lea.sflag [#allocation6], %s1813
          %s1815 = sand.u32 %s419, 1
          %s1816 = smul.addr %s1815, 8
          %s1817 = scalar_lea.vmem [#allocation13], %s1816
          %1818 = dma.done %s1814, 128
        $region124: #{tpu_custom_call.1} parent=119 // pred_fallthru
          _
      $region120: #{tpu_custom_call.1} parent=5 // pred_fallthru
        _
    $region6: #{tpu_custom_call.1} parent=1 // loop_footer
      %s33 = sadd.s32 1, %s29
    $region7: #{tpu_custom_call.1} parent=1 // loop_footer_branch
      %28 = sbr.rel target = $region3
    $region8: #{tpu_custom_call.1} parent=1 // loop_exit
      _
    %1819 = vsyncpa [#allocation5], 1
    %s1820 = scalar_lea.sflag [#allocation5], 1
    %1821 = vsyncpa %s1820, 1
    %1822 = vsyncpa [#allocation8], 1
    %1823 = vsyncpa [#allocation11], 1
    %1824 = vsyncpa [#allocation6], 1
    %s1825 = scalar_lea.sflag [#allocation6], 1
    %1826 = vsyncpa %s1825, 1

// kernel: tpu_custom_call.1
$region0: #{tpu_custom_call.1}
  #allocation0 [shape = 'u32[]', space=smem, size = 0x4, offset = 0x4, fixed_abs, tag = 'smem constant byte address 0x4 - core index']
  #allocation1 [shape = 'u32[144,128]{1,0:T(1,128)}', space=vmem, size = 0x12000, scoped, tag = 'internal scratch']
  #allocation2 [shape = 'bf16[4,16,8]{2,1,0:T(8,128)(2,1)}', space=vmem, size = 0x4000, scoped, tag = 'scratch operand']
  #allocation3 [shape = 'bf16[4,16,8]{2,1,0:T(8,128)(2,1)}', space=vmem, size = 0x4000, scoped, tag = 'scratch operand']
  %s0 = inlined_call_operand.vmem [shape: f32[2,16,32], index: 0, kind: input, shape index: {}]
  %s1 = inlined_call_operand.vmem [shape: bf16[32,32], index: 1, kind: input, shape index: {}]
  %s2 = inlined_call_operand.vmem [shape: f32[1,32], index: 2, kind: input, shape index: {}]
  %s3 = inlined_call_operand.hbm [shape: bf16[32,32], index: 3, kind: input, shape index: {}]
  %s4 = inlined_call_operand.vmem [shape: f32[1,32], index: 4, kind: input, shape index: {}]
  %s5 = inlined_call_operand.hbm [shape: bf16[32,32], index: 5, kind: input, shape index: {}]
  %s6 = inlined_call_operand.vmem [shape: f32[1,32], index: 6, kind: input, shape index: {}]
  %s7 = inlined_call_operand.hbm [shape: bf16[32,32], index: 7, kind: input, shape index: {}]
  %s8 = inlined_call_operand.vmem [shape: f32[1,32], index: 8, kind: input, shape index: {}]
  %s9 = inlined_call_operand.hbm [shape: bf16[32,64], index: 9, kind: input, shape index: {}]
  %s10 = inlined_call_operand.hbm [shape: f32[1,64], index: 10, kind: input, shape index: {}]
  %s11 = inlined_call_operand.vmem [shape: bf16[64,32], index: 11, kind: input, shape index: {}]
  %s12 = inlined_call_operand.vmem [shape: f32[1,32], index: 12, kind: input, shape index: {}]
  %s13 = inlined_call_operand.vmem [shape: f32[1,32], index: 13, kind: input, shape index: {}]
  %s14 = inlined_call_operand.vmem [shape: f32[1,32], index: 14, kind: input, shape index: {}]
  %s15 = inlined_call_operand.vmem [shape: f32[1,32], index: 15, kind: input, shape index: {}]
  %s16 = inlined_call_operand.vmem [shape: f32[1,32], index: 16, kind: input, shape index: {}]
  %s17 = inlined_call_operand.hbm [shape: f32[2,16,32], index: 17, kind: output, shape index: {}]
  %s18 = sld [smem:[#allocation0]]
  $region125: #{tpu_custom_call.1} parent=0
    _
  %s20 = ssub.s32 1, %s18
  %s21 = scalar_select 0, %s20, %s18
  $region1: #{tpu_custom_call.1} parent=0
    #allocation4 [shape = 'u8[8192]{0}', space=vmem, size = 0x2000, scoped, tag = 'input window, operand 3, single buffered']
    #allocation5 [shape = 's32[2]{0}', space=sflag, size = 0x8, scoped, tag = 'scoped memory for tpu_custom_call.1']
    #allocation6 [shape = 's32[2]{0}', space=sflag, size = 0x8, scoped, tag = 'scoped memory for tpu_custom_call.1']
    #allocation7 [shape = 'u8[8192]{0}', space=vmem, size = 0x2000, scoped, tag = 'input window, operand 5, single buffered']
    #allocation8 [shape = 's32[1]{0}', space=sflag, size = 0x4, scoped, tag = 'scoped memory for tpu_custom_call.1']
    #allocation9 [shape = 'u8[8192]{0}', space=vmem, size = 0x2000, scoped, tag = 'input window, operand 7, single buffered']
    #allocation10 [shape = 'u8[8192]{0}', space=vmem, size = 0x2000, scoped, tag = 'input window, operand 9, single buffered']
    #allocation11 [shape = 's32[1]{0}', space=sflag, size = 0x4, scoped, tag = 'scoped memory for tpu_custom_call.1']
    #allocation12 [shape = 'u8[512]{0}', space=vmem, size = 0x400, scoped, tag = 'input window, operand 10, single buffered']
    #allocation13 [shape = 'u8[8192]{0}', space=vmem, size = 0x2000, scoped, tag = 'output window, operand 0']
    %22 = vsyncpa [#allocation5], 0
    %23 = vsyncpa [#allocation8], 0
    %24 = vsyncpa [#allocation11], 0
    %25 = vsyncpa [#allocation6], 0
    %s26 = scalar_lea.sflag [#allocation6], 1
    %27 = vsyncpa %s26, 0
    loop: start=0, step=1, limit=6
    $region2: #{tpu_custom_call.1} parent=1 // loop_pre_header
      _
    $region3: #{tpu_custom_call.1} parent=1 // loop_header
      %s29 = sphi 0, %s33
      %p30 = scmp.ge.s32.totalorder %s29, 6
      %s36 = sphi 0, %s48
      %s37 = sphi 0, %s44
      %s38 = sphi 0, %s36
      %s39 = sphi 0, %s37
      %s40 = sphi 0, %s38
      %s41 = sphi 0, %s39
      %s51 = sphi 0, %s53
      %s54 = sphi 0, %s51
      %s55 = sphi 0, %s54
      %s71 = sphi 0, %s55
      %s75 = sphi 0, %s75
      %s77 = sphi 0, %s75
      %s78 = sphi 0, %s77
      %s92 = sphi 0, %s78
      %s96 = sphi 0, %s96
      %s98 = sphi 0, %s96
      %s99 = sphi 0, %s98
      %s113 = sphi 0, %s99
      %s117 = sphi 0, %s117
      %s119 = sphi 0, %s117
      %s120 = sphi 0, %s119
      %s134 = sphi 0, %s120
      %s138 = sphi 0, %s138
      %s140 = sphi 0, %s138
      %s141 = sphi 0, %s140
      %s155 = sphi 0, %s141
      %s159 = sphi 0, %s159
      %s161 = sphi 0, %s159
      %s162 = sphi 0, %s161
      %s176 = sphi 0, %s162
      %s180 = sphi 0, %s180
      %s182 = sphi 0, %s180
      %s183 = sphi 0, %s182
      %s197 = sphi 0, %s183
      %s201 = sphi 0, %s201
      %s203 = sphi 0, %s201
      %s204 = sphi 0, %s203
      %s218 = sphi 0, %s204
      %s222 = sphi 0, %s222
      %s224 = sphi 0, %s222
      %s225 = sphi 0, %s224
      %s239 = sphi 0, %s225
      %s243 = sphi 0, %s243
      %s245 = sphi 0, %s243
      %s246 = sphi 0, %s245
      %s260 = sphi 0, %s246
      %s264 = sphi 0, %s264
      %s266 = sphi 0, %s264
      %s267 = sphi 0, %s266
      %s281 = sphi 0, %s267
      %s285 = sphi 0, %s285
      %s287 = sphi 0, %s285
      %s288 = sphi 0, %s287
      %s302 = sphi 0, %s288
      %s306 = sphi 0, %s306
      %s308 = sphi 0, %s306
      %s309 = sphi 0, %s308
      %s323 = sphi 0, %s309
      %s327 = sphi 0, %s327
      %s329 = sphi 0, %s327
      %s330 = sphi 0, %s329
      %s344 = sphi 0, %s330
      %s348 = sphi 0, %s348
      %s350 = sphi 0, %s348
      %s351 = sphi 0, %s350
      %s365 = sphi 0, %s351
      %s369 = sphi 0, %s369
      %s371 = sphi 0, %s369
      %s372 = sphi 0, %s371
      %s386 = sphi 0, %s372
      %s390 = sphi 0, %s390
      %s392 = sphi 0, %s390
      %s393 = sphi 0, %s392
      %s407 = sphi 0, %s393
      %s415 = sphi 0, %s417
      %s418 = sphi 0, %s415
      %s419 = sphi 0, %s418
      %s435 = sphi 0, %s419
    $region4: #{tpu_custom_call.1} parent=1 // loop_header_branch
      %32 = sbr.rel (%p30) target = $region8
    $region5: #{tpu_custom_call.1} parent=1 // loop_body
      %s34 = ssub.s32 %s29, 1
      %s35 = ssub.s32 %s29, 2
      %s42 = sadd.s32 1, %s37
      %p43 = scmp.ge.s32.totalorder %s42, 2
      %s44 = scalar_select %p43, 0, %s42
      %s45 = sadd.s32 1, %s36
      %s46 = scalar_select %p43, %s45, %s36
      %p47 = scmp.ge.s32.totalorder %s46, 2
      %s48 = scalar_select %p47, 0, %s46
      %s49 = ssub.s32 %s36, %s48
      %p50 = scmp.eq.s32.totalorder %s49, 0
      %s52 = sadd.s32 %s51, 1
      %s53 = scalar_select %p50, %s51, %s52
      %p56 = pneg %p50
      %p57 = scmp.eq.s32.totalorder %s29, 3
      %p58 = por %p56, %p57
      %p59 = scmp.ne.s32.totalorder %s51, %s54
      %p60 = scmp.eq.s32.totalorder %s29, 0
      %p61 = por %p59, %p60
      %p62 = scmp.ne.s32.totalorder %s51, %s54
      %p63 = scmp.eq.s32.totalorder %s34, 3
      %p64 = por %p62, %p63
      %p65 = scmp.ne.s32.totalorder %s54, %s55
      %p66 = scmp.eq.s32.totalorder %s34, 0
      %p67 = por %p65, %p66
      %p68 = scmp.ne.s32.totalorder %s54, %s55
      %p69 = scmp.eq.s32.totalorder %s35, 3
      %p70 = por %p68, %p69
      %p72 = scmp.ne.s32.totalorder %s55, %s71
      %p73 = scmp.eq.s32.totalorder %s35, 0
      %p74 = por %p72, %p73
      %s76 = sadd.s32 %s75, 1
      %p79 = scmp.eq.s32.totalorder %s29, 3
      %p80 = scmp.ne.s32.totalorder %s75, %s77
      %p81 = scmp.eq.s32.totalorder %s29, 0
      %p82 = por %p80, %p81
      %p83 = scmp.ne.s32.totalorder %s75, %s77
      %p84 = scmp.eq.s32.totalorder %s34, 3
      %p85 = por %p83, %p84
      %p86 = scmp.ne.s32.totalorder %s77, %s78
      %p87 = scmp.eq.s32.totalorder %s34, 0
      %p88 = por %p86, %p87
      %p89 = scmp.ne.s32.totalorder %s77, %s78
      %p90 = scmp.eq.s32.totalorder %s35, 3
      %p91 = por %p89, %p90
      %p93 = scmp.ne.s32.totalorder %s78, %s92
      %p94 = scmp.eq.s32.totalorder %s35, 0
      %p95 = por %p93, %p94
      %s97 = sadd.s32 %s96, 1
      %p100 = scmp.eq.s32.totalorder %s29, 3
      %p101 = scmp.ne.s32.totalorder %s96, %s98
      %p102 = scmp.eq.s32.totalorder %s29, 0
      %p103 = por %p101, %p102
      %p104 = scmp.ne.s32.totalorder %s96, %s98
      %p105 = scmp.eq.s32.totalorder %s34, 3
      %p106 = por %p104, %p105
      %p107 = scmp.ne.s32.totalorder %s98, %s99
      %p108 = scmp.eq.s32.totalorder %s34, 0
      %p109 = por %p107, %p108
      %p110 = scmp.ne.s32.totalorder %s98, %s99
      %p111 = scmp.eq.s32.totalorder %s35, 3
      %p112 = por %p110, %p111
      %p114 = scmp.ne.s32.totalorder %s99, %s113
      %p115 = scmp.eq.s32.totalorder %s35, 0
      %p116 = por %p114, %p115
      %s118 = sadd.s32 %s117, 1
      %p121 = scmp.eq.s32.totalorder %s29, 3
      %p122 = scmp.ne.s32.totalorder %s117, %s119
      %p123 = scmp.eq.s32.totalorder %s29, 0
      %p124 = por %p122, %p123
      %p125 = scmp.ne.s32.totalorder %s117, %s119
      %p126 = scmp.eq.s32.totalorder %s34, 3
      %p127 = por %p125, %p126
      %p128 = scmp.ne.s32.totalorder %s119, %s120
      %p129 = scmp.eq.s32.totalorder %s34, 0
      %p130 = por %p128, %p129
      %p131 = scmp.ne.s32.totalorder %s119, %s120
      %p132 = scmp.eq.s32.totalorder %s35, 3
      %p133 = por %p131, %p132
      %p135 = scmp.ne.s32.totalorder %s120, %s134
      %p136 = scmp.eq.s32.totalorder %s35, 0
      %p137 = por %p135, %p136
      %s139 = sadd.s32 %s138, 1
      %p142 = scmp.eq.s32.totalorder %s29, 3
      %p143 = scmp.ne.s32.totalorder %s138, %s140
      %p144 = scmp.eq.s32.totalorder %s29, 0
      %p145 = por %p143, %p144
      %p146 = scmp.ne.s32.totalorder %s138, %s140
      %p147 = scmp.eq.s32.totalorder %s34, 3
      %p148 = por %p146, %p147
      %p149 = scmp.ne.s32.totalorder %s140, %s141
      %p150 = scmp.eq.s32.totalorder %s34, 0
      %p151 = por %p149, %p150
      %p152 = scmp.ne.s32.totalorder %s140, %s141
      %p153 = scmp.eq.s32.totalorder %s35, 3
      %p154 = por %p152, %p153
      %p156 = scmp.ne.s32.totalorder %s141, %s155
      %p157 = scmp.eq.s32.totalorder %s35, 0
      %p158 = por %p156, %p157
      %s160 = sadd.s32 %s159, 1
      %p163 = scmp.eq.s32.totalorder %s29, 3
      %p164 = scmp.ne.s32.totalorder %s159, %s161
      %p165 = scmp.eq.s32.totalorder %s29, 0
      %p166 = por %p164, %p165
      %p167 = scmp.ne.s32.totalorder %s159, %s161
      %p168 = scmp.eq.s32.totalorder %s34, 3
      %p169 = por %p167, %p168
      %p170 = scmp.ne.s32.totalorder %s161, %s162
      %p171 = scmp.eq.s32.totalorder %s34, 0
      %p172 = por %p170, %p171
      %p173 = scmp.ne.s32.totalorder %s161, %s162
      %p174 = scmp.eq.s32.totalorder %s35, 3
      %p175 = por %p173, %p174
      %p177 = scmp.ne.s32.totalorder %s162, %s176
      %p178 = scmp.eq.s32.totalorder %s35, 0
      %p179 = por %p177, %p178
      %s181 = sadd.s32 %s180, 1
      %p184 = scmp.eq.s32.totalorder %s29, 3
      %p185 = scmp.ne.s32.totalorder %s180, %s182
      %p186 = scmp.eq.s32.totalorder %s29, 0
      %p187 = por %p185, %p186
      %p188 = scmp.ne.s32.totalorder %s180, %s182
      %p189 = scmp.eq.s32.totalorder %s34, 3
      %p190 = por %p188, %p189
      %p191 = scmp.ne.s32.totalorder %s182, %s183
      %p192 = scmp.eq.s32.totalorder %s34, 0
      %p193 = por %p191, %p192
      %p194 = scmp.ne.s32.totalorder %s182, %s183
      %p195 = scmp.eq.s32.totalorder %s35, 3
      %p196 = por %p194, %p195
      %p198 = scmp.ne.s32.totalorder %s183, %s197
      %p199 = scmp.eq.s32.totalorder %s35, 0
      %p200 = por %p198, %p199
      %s202 = sadd.s32 %s201, 1
      %p205 = scmp.eq.s32.totalorder %s29, 3
      %p206 = scmp.ne.s32.totalorder %s201, %s203
      %p207 = scmp.eq.s32.totalorder %s29, 0
      %p208 = por %p206, %p207
      %p209 = scmp.ne.s32.totalorder %s201, %s203
      %p210 = scmp.eq.s32.totalorder %s34, 3
      %p211 = por %p209, %p210
      %p212 = scmp.ne.s32.totalorder %s203, %s204
      %p213 = scmp.eq.s32.totalorder %s34, 0
      %p214 = por %p212, %p213
      %p215 = scmp.ne.s32.totalorder %s203, %s204
      %p216 = scmp.eq.s32.totalorder %s35, 3
      %p217 = por %p215, %p216
      %p219 = scmp.ne.s32.totalorder %s204, %s218
      %p220 = scmp.eq.s32.totalorder %s35, 0
      %p221 = por %p219, %p220
      %s223 = sadd.s32 %s222, 1
      %p226 = scmp.eq.s32.totalorder %s29, 3
      %p227 = scmp.ne.s32.totalorder %s222, %s224
      %p228 = scmp.eq.s32.totalorder %s29, 0
      %p229 = por %p227, %p228
      %p230 = scmp.ne.s32.totalorder %s222, %s224
      %p231 = scmp.eq.s32.totalorder %s34, 3
      %p232 = por %p230, %p231
      %p233 = scmp.ne.s32.totalorder %s224, %s225
      %p234 = scmp.eq.s32.totalorder %s34, 0
      %p235 = por %p233, %p234
      %p236 = scmp.ne.s32.totalorder %s224, %s225
      %p237 = scmp.eq.s32.totalorder %s35, 3
      %p238 = por %p236, %p237
      %p240 = scmp.ne.s32.totalorder %s225, %s239
      %p241 = scmp.eq.s32.totalorder %s35, 0
      %p242 = por %p240, %p241
      %s244 = sadd.s32 %s243, 1
      %p247 = scmp.eq.s32.totalorder %s29, 3
      %p248 = scmp.ne.s32.totalorder %s243, %s245
      %p249 = scmp.eq.s32.totalorder %s29, 0
      %p250 = por %p248, %p249
      %p251 = scmp.ne.s32.totalorder %s243, %s245
      %p252 = scmp.eq.s32.totalorder %s34, 3
      %p253 = por %p251, %p252
      %p254 = scmp.ne.s32.totalorder %s245, %s246
      %p255 = scmp.eq.s32.totalorder %s34, 0
      %p256 = por %p254, %p255
      %p257 = scmp.ne.s32.totalorder %s245, %s246
      %p258 = scmp.eq.s32.totalorder %s35, 3
      %p259 = por %p257, %p258
      %p261 = scmp.ne.s32.totalorder %s246, %s260
      %p262 = scmp.eq.s32.totalorder %s35, 0
      %p263 = por %p261, %p262
      %s265 = sadd.s32 %s264, 1
      %p268 = scmp.eq.s32.totalorder %s29, 3
      %p269 = scmp.ne.s32.totalorder %s264, %s266
      %p270 = scmp.eq.s32.totalorder %s29, 0
      %p271 = por %p269, %p270
      %p272 = scmp.ne.s32.totalorder %s264, %s266
      %p273 = scmp.eq.s32.totalorder %s34, 3
      %p274 = por %p272, %p273
      %p275 = scmp.ne.s32.totalorder %s266, %s267
      %p276 = scmp.eq.s32.totalorder %s34, 0
      %p277 = por %p275, %p276
      %p278 = scmp.ne.s32.totalorder %s266, %s267
      %p279 = scmp.eq.s32.totalorder %s35, 3
      %p280 = por %p278, %p279
      %p282 = scmp.ne.s32.totalorder %s267, %s281
      %p283 = scmp.eq.s32.totalorder %s35, 0
      %p284 = por %p282, %p283
      %s286 = sadd.s32 %s285, 1
      %p289 = scmp.eq.s32.totalorder %s29, 3
      %p290 = scmp.ne.s32.totalorder %s285, %s287
      %p291 = scmp.eq.s32.totalorder %s29, 0
      %p292 = por %p290, %p291
      %p293 = scmp.ne.s32.totalorder %s285, %s287
      %p294 = scmp.eq.s32.totalorder %s34, 3
      %p295 = por %p293, %p294
      %p296 = scmp.ne.s32.totalorder %s287, %s288
      %p297 = scmp.eq.s32.totalorder %s34, 0
      %p298 = por %p296, %p297
      %p299 = scmp.ne.s32.totalorder %s287, %s288
      %p300 = scmp.eq.s32.totalorder %s35, 3
      %p301 = por %p299, %p300
      %p303 = scmp.ne.s32.totalorder %s288, %s302
      %p304 = scmp.eq.s32.totalorder %s35, 0
      %p305 = por %p303, %p304
      %s307 = sadd.s32 %s306, 1
      %p310 = scmp.eq.s32.totalorder %s29, 3
      %p311 = scmp.ne.s32.totalorder %s306, %s308
      %p312 = scmp.eq.s32.totalorder %s29, 0
      %p313 = por %p311, %p312
      %p314 = scmp.ne.s32.totalorder %s306, %s308
      %p315 = scmp.eq.s32.totalorder %s34, 3
      %p316 = por %p314, %p315
      %p317 = scmp.ne.s32.totalorder %s308, %s309
      %p318 = scmp.eq.s32.totalorder %s34, 0
      %p319 = por %p317, %p318
      %p320 = scmp.ne.s32.totalorder %s308, %s309
      %p321 = scmp.eq.s32.totalorder %s35, 3
      %p322 = por %p320, %p321
      %p324 = scmp.ne.s32.totalorder %s309, %s323
      %p325 = scmp.eq.s32.totalorder %s35, 0
      %p326 = por %p324, %p325
      %s328 = sadd.s32 %s327, 1
      %p331 = scmp.eq.s32.totalorder %s29, 3
      %p332 = scmp.ne.s32.totalorder %s327, %s329
      %p333 = scmp.eq.s32.totalorder %s29, 0
      %p334 = por %p332, %p333
      %p335 = scmp.ne.s32.totalorder %s327, %s329
      %p336 = scmp.eq.s32.totalorder %s34, 3
      %p337 = por %p335, %p336
      %p338 = scmp.ne.s32.totalorder %s329, %s330
      %p339 = scmp.eq.s32.totalorder %s34, 0
      %p340 = por %p338, %p339
      %p341 = scmp.ne.s32.totalorder %s329, %s330
      %p342 = scmp.eq.s32.totalorder %s35, 3
      %p343 = por %p341, %p342
      %p345 = scmp.ne.s32.totalorder %s330, %s344
      %p346 = scmp.eq.s32.totalorder %s35, 0
      %p347 = por %p345, %p346
      %s349 = sadd.s32 %s348, 1
      %p352 = scmp.eq.s32.totalorder %s29, 3
      %p353 = scmp.ne.s32.totalorder %s348, %s350
      %p354 = scmp.eq.s32.totalorder %s29, 0
      %p355 = por %p353, %p354
      %p356 = scmp.ne.s32.totalorder %s348, %s350
      %p357 = scmp.eq.s32.totalorder %s34, 3
      %p358 = por %p356, %p357
      %p359 = scmp.ne.s32.totalorder %s350, %s351
      %p360 = scmp.eq.s32.totalorder %s34, 0
      %p361 = por %p359, %p360
      %p362 = scmp.ne.s32.totalorder %s350, %s351
      %p363 = scmp.eq.s32.totalorder %s35, 3
      %p364 = por %p362, %p363
      %p366 = scmp.ne.s32.totalorder %s351, %s365
      %p367 = scmp.eq.s32.totalorder %s35, 0
      %p368 = por %p366, %p367
      %s370 = sadd.s32 %s369, 1
      %p373 = scmp.eq.s32.totalorder %s29, 3
      %p374 = scmp.ne.s32.totalorder %s369, %s371
      %p375 = scmp.eq.s32.totalorder %s29, 0
      %p376 = por %p374, %p375
      %p377 = scmp.ne.s32.totalorder %s369, %s371
      %p378 = scmp.eq.s32.totalorder %s34, 3
      %p379 = por %p377, %p378
      %p380 = scmp.ne.s32.totalorder %s371, %s372
      %p381 = scmp.eq.s32.totalorder %s34, 0
      %p382 = por %p380, %p381
      %p383 = scmp.ne.s32.totalorder %s371, %s372
      %p384 = scmp.eq.s32.totalorder %s35, 3
      %p385 = por %p383, %p384
      %p387 = scmp.ne.s32.totalorder %s372, %s386
      %p388 = scmp.eq.s32.totalorder %s35, 0
      %p389 = por %p387, %p388
      %s391 = sadd.s32 %s390, 1
      %p394 = scmp.eq.s32.totalorder %s29, 3
      %p395 = scmp.ne.s32.totalorder %s390, %s392
      %p396 = scmp.eq.s32.totalorder %s29, 0
      %p397 = por %p395, %p396
      %p398 = scmp.ne.s32.totalorder %s390, %s392
      %p399 = scmp.eq.s32.totalorder %s34, 3
      %p400 = por %p398, %p399
      %p401 = scmp.ne.s32.totalorder %s392, %s393
      %p402 = scmp.eq.s32.totalorder %s34, 0
      %p403 = por %p401, %p402
      %p404 = scmp.ne.s32.totalorder %s392, %s393
      %p405 = scmp.eq.s32.totalorder %s35, 3
      %p406 = por %p404, %p405
      %p408 = scmp.ne.s32.totalorder %s393, %s407
      %p409 = scmp.eq.s32.totalorder %s35, 0
      %p410 = por %p408, %p409
      %s411 = ssub.s32 %s36, %s48
      %s412 = ssub.s32 %s37, %s44
      %s413 = sor.u32 %s411, %s412
      %p414 = scmp.eq.s32.totalorder %s413, 0
      %s416 = sadd.s32 %s415, 1
      %s417 = scalar_select %p414, %s415, %s416
      %p420 = pneg %p414
      %p421 = scmp.eq.s32.totalorder %s29, 3
      %p422 = por %p420, %p421
      %p423 = scmp.ne.s32.totalorder %s415, %s418
      %p424 = scmp.eq.s32.totalorder %s29, 0
      %p425 = por %p423, %p424
      %p426 = scmp.ne.s32.totalorder %s415, %s418
      %p427 = scmp.eq.s32.totalorder %s34, 3
      %p428 = por %p426, %p427
      %p429 = scmp.ne.s32.totalorder %s418, %s419
      %p430 = scmp.eq.s32.totalorder %s34, 0
      %p431 = por %p429, %p430
      %p432 = scmp.ne.s32.totalorder %s418, %s419
      %p433 = scmp.eq.s32.totalorder %s35, 3
      %p434 = por %p432, %p433
      %p436 = scmp.ne.s32.totalorder %s419, %s435
      %p437 = scmp.eq.s32.totalorder %s35, 0
      %p438 = por %p436, %p437
      %p439 = scmp.le.s32.totalorder 1, %s29
      %p440 = scmp.lt.s32.totalorder %s29, 5
      %p441 = pnand %p439, %p440
      %p442 = pneg %p441
      // Predicated region
      $region9: #{tpu_custom_call.1} parent=5 // pred_check
        _
      $region10: #{tpu_custom_call.1} parent=5 // pred_check_branch
        %444 = sbr.rel (%p441) target = $region12
      $region11: #{tpu_custom_call.1} parent=5 // pred_region
        %s445 = ssub.s32 %s29, 1
        // Predicated region
        $region13: #{tpu_custom_call.1} parent=11 // pred_check
          %p446 = pneg %p88
        $region14: #{tpu_custom_call.1} parent=11 // pred_check_branch
          %448 = sbr.rel (%p446) target = $region16
        $region15: #{tpu_custom_call.1} parent=11 // pred_region
          _
        $region16: #{tpu_custom_call.1} parent=11 // pred_fallthru
          _
        // Predicated region
        $region17: #{tpu_custom_call.1} parent=11 // pred_check
          %p449 = pneg %p109
        $region18: #{tpu_custom_call.1} parent=11 // pred_check_branch
          %451 = sbr.rel (%p449) target = $region20
        $region19: #{tpu_custom_call.1} parent=11 // pred_region
          _
        $region20: #{tpu_custom_call.1} parent=11 // pred_fallthru
          _
        // Predicated region
        $region21: #{tpu_custom_call.1} parent=11 // pred_check
          %p452 = pneg %p130
        $region22: #{tpu_custom_call.1} parent=11 // pred_check_branch
          %454 = sbr.rel (%p452) target = $region24
        $region23: #{tpu_custom_call.1} parent=11 // pred_region
          %s456 = ssub.s32 256, 256
          %457 = vsyncadd [#allocation5], %s456
          %s458 = sshll.u32 [#allocation4], 4
          %s459 = int_to_ptr.vmem [resolvable:$true] %s458
          %464 = dma.hbm_to_vmem [thread:$0]  %s3, 256, %s459, [#allocation5], 64, 64, 4
        $region24: #{tpu_custom_call.1} parent=11 // pred_fallthru
          _
        // Predicated region
        $region25: #{tpu_custom_call.1} parent=11 // pred_check
          %p465 = pneg %p151
        $region26: #{tpu_custom_call.1} parent=11 // pred_check_branch
          %467 = sbr.rel (%p465) target = $region28
        $region27: #{tpu_custom_call.1} parent=11 // pred_region
          _
        $region28: #{tpu_custom_call.1} parent=11 // pred_fallthru
          _
        // Predicated region
        $region29: #{tpu_custom_call.1} parent=11 // pred_check
          %p468 = pneg %p172
        $region30: #{tpu_custom_call.1} parent=11 // pred_check_branch
          %470 = sbr.rel (%p468) target = $region32
        $region31: #{tpu_custom_call.1} parent=11 // pred_region
          %s472 = ssub.s32 256, 256
          %473 = vsyncadd [#allocation8], %s472
          %s474 = sshll.u32 [#allocation7], 4
          %s475 = int_to_ptr.vmem [resolvable:$true] %s474
          %480 = dma.hbm_to_vmem [thread:$0]  %s5, 256, %s475, [#allocation8], 64, 64, 4
        $region32: #{tpu_custom_call.1} parent=11 // pred_fallthru
          _
        // Predicated region
        $region33: #{tpu_custom_call.1} parent=11 // pred_check
          %p481 = pneg %p193
        $region34: #{tpu_custom_call.1} parent=11 // pred_check_branch
          %483 = sbr.rel (%p481) target = $region36
        $region35: #{tpu_custom_call.1} parent=11 // pred_region
          _
        $region36: #{tpu_custom_call.1} parent=11 // pred_fallthru
          _
        // Predicated region
        $region37: #{tpu_custom_call.1} parent=11 // pred_check
          %p484 = pneg %p214
        $region38: #{tpu_custom_call.1} parent=11 // pred_check_branch
          %486 = sbr.rel (%p484) target = $region40
        $region39: #{tpu_custom_call.1} parent=11 // pred_region
          %s488 = ssub.s32 256, 256
          %489 = vsyncadd [#allocation8], %s488
          %s490 = sshll.u32 [#allocation9], 4
          %s491 = int_to_ptr.vmem [resolvable:$true] %s490
          %496 = dma.hbm_to_vmem [thread:$0]  %s7, 256, %s491, [#allocation8], 64, 64, 4
        $region40: #{tpu_custom_call.1} parent=11 // pred_fallthru
          _
        // Predicated region
        $region41: #{tpu_custom_call.1} parent=11 // pred_check
          %p497 = pneg %p235
        $region42: #{tpu_custom_call.1} parent=11 // pred_check_branch
          %499 = sbr.rel (%p497) target = $region44
        $region43: #{tpu_custom_call.1} parent=11 // pred_region
          _
        $region44: #{tpu_custom_call.1} parent=11 // pred_fallthru
          _
        // Predicated region
        $region45: #{tpu_custom_call.1} parent=11 // pred_check
          %p500 = pneg %p256
        $region46: #{tpu_custom_call.1} parent=11 // pred_check_branch
          %502 = sbr.rel (%p500) target = $region48
        $region47: #{tpu_custom_call.1} parent=11 // pred_region
          %s504 = ssub.s32 256, 256
          %505 = vsyncadd [#allocation11], %s504
          %s506 = sshll.u32 [#allocation10], 4
          %s507 = int_to_ptr.vmem [resolvable:$true] %s506
          %512 = dma.hbm_to_vmem [thread:$0]  %s9, 256, %s507, [#allocation11], 64, 64, 4
        $region48: #{tpu_custom_call.1} parent=11 // pred_fallthru
          _
        // Predicated region
        $region49: #{tpu_custom_call.1} parent=11 // pred_check
          %p513 = pneg %p277
        $region50: #{tpu_custom_call.1} parent=11 // pred_check_branch
          %515 = sbr.rel (%p513) target = $region52
        $region51: #{tpu_custom_call.1} parent=11 // pred_region
          %s517 = ssub.s32 16, 16
          %518 = vsyncadd [#allocation11], %s517
          %s520 = sshll.u32 [#allocation12], 4
          %s521 = int_to_ptr.vmem [resolvable:$true] %s520
          %523 = dma.hbm_to_vmem [thread:$0]  %s10, 16, %s521, [#allocation11]
        $region52: #{tpu_custom_call.1} parent=11 // pred_fallthru
          _
        // Predicated region
        $region53: #{tpu_custom_call.1} parent=11 // pred_check
          %p524 = pneg %p298
        $region54: #{tpu_custom_call.1} parent=11 // pred_check_branch
          %526 = sbr.rel (%p524) target = $region56
        $region55: #{tpu_custom_call.1} parent=11 // pred_region
          _
        $region56: #{tpu_custom_call.1} parent=11 // pred_fallthru
          _
        // Predicated region
        $region57: #{tpu_custom_call.1} parent=11 // pred_check
          %p527 = pneg %p319
        $region58: #{tpu_custom_call.1} parent=11 // pred_check_branch
          %529 = sbr.rel (%p527) target = $region60
        $region59: #{tpu_custom_call.1} parent=11 // pred_region
          _
        $region60: #{tpu_custom_call.1} parent=11 // pred_fallthru
          _
        // Predicated region
        $region61: #{tpu_custom_call.1} parent=11 // pred_check
          %p530 = pneg %p340
        $region62: #{tpu_custom_call.1} parent=11 // pred_check_branch
          %532 = sbr.rel (%p530) target = $region64
        $region63: #{tpu_custom_call.1} parent=11 // pred_region
          _
        $region64: #{tpu_custom_call.1} parent=11 // pred_fallthru
          _
        // Predicated region
        $region65: #{tpu_custom_call.1} parent=11 // pred_check
          %p533 = pneg %p361
        $region66: #{tpu_custom_call.1} parent=11 // pred_check_branch
          %535 = sbr.rel (%p533) target = $region68
        $region67: #{tpu_custom_call.1} parent=11 // pred_region
          _
        $region68: #{tpu_custom_call.1} parent=11 // pred_fallthru
          _
        // Predicated region
        $region69: #{tpu_custom_call.1} parent=11 // pred_check
          %p536 = pneg %p382
        $region70: #{tpu_custom_call.1} parent=11 // pred_check_branch
          %538 = sbr.rel (%p536) target = $region72
        $region71: #{tpu_custom_call.1} parent=11 // pred_region
          _
        $region72: #{tpu_custom_call.1} parent=11 // pred_fallthru
          _
        // Predicated region
        $region73: #{tpu_custom_call.1} parent=11 // pred_check
          %p539 = pneg %p403
        $region74: #{tpu_custom_call.1} parent=11 // pred_check_branch
          %541 = sbr.rel (%p539) target = $region76
        $region75: #{tpu_custom_call.1} parent=11 // pred_region
          _
        $region76: #{tpu_custom_call.1} parent=11 // pred_fallthru
          _
      $region12: #{tpu_custom_call.1} parent=5 // pred_fallthru
        _
      %p542 = scmp.lt.s32.totalorder %s29, 4
      // Predicated region
      $region77: #{tpu_custom_call.1} parent=5 // pred_check
        %p543 = pneg %p542
      $region78: #{tpu_custom_call.1} parent=5 // pred_check_branch
        %545 = sbr.rel (%p543) target = $region80
      $region79: #{tpu_custom_call.1} parent=5 // pred_region
        // Predicated region
        $region81: #{tpu_custom_call.1} parent=79 // pred_check
          %p546 = pneg %p61
        $region82: #{tpu_custom_call.1} parent=79 // pred_check_branch
          %548 = sbr.rel (%p546) target = $region84
        $region83: #{tpu_custom_call.1} parent=79 // pred_region
          %p549 = scmp.lt.s32.totalorder %s36, 1
          %s550 = scalar_select %p549, %s36, 1
          %s551 = smul.addr %s550, 2
          %s552 = smul.addr %s551, 8
          %s553 = scalar_lea.vmem %s0, %s552
        $region84: #{tpu_custom_call.1} parent=79 // pred_fallthru
          _
      $region80: #{tpu_custom_call.1} parent=5 // pred_fallthru
        _
      %p554 = scmp.le.s32.totalorder 1, %s29
      %p555 = scmp.lt.s32.totalorder %s29, 5
      %p556 = pnand %p554, %p555
      %p557 = pneg %p556
      // Predicated region
      $region85: #{tpu_custom_call.1} parent=5 // pred_check
        _
      $region86: #{tpu_custom_call.1} parent=5 // pred_check_branch
        %559 = sbr.rel (%p556) target = $region88
      $region87: #{tpu_custom_call.1} parent=5 // pred_region
        %s560 = ssub.s32 %s29, 1
        // Predicated region
        $region89: #{tpu_custom_call.1} parent=87 // pred_check
          %p561 = pneg %p130
        $region90: #{tpu_custom_call.1} parent=87 // pred_check_branch
          %563 = sbr.rel (%p561) target = $region92
        $region91: #{tpu_custom_call.1} parent=87 // pred_region
          %564 = dma.done [#allocation5], 256
        $region92: #{tpu_custom_call.1} parent=87 // pred_fallthru
          _
        // Predicated region
        $region93: #{tpu_custom_call.1} parent=87 // pred_check
          %p565 = pneg %p172
        $region94: #{tpu_custom_call.1} parent=87 // pred_check_branch
          %567 = sbr.rel (%p565) target = $region96
        $region95: #{tpu_custom_call.1} parent=87 // pred_region
          %568 = dma.done [#allocation8], 256
        $region96: #{tpu_custom_call.1} parent=87 // pred_fallthru
          _
        // Predicated region
        $region97: #{tpu_custom_call.1} parent=87 // pred_check
          %p569 = pneg %p214
        $region98: #{tpu_custom_call.1} parent=87 // pred_check_branch
          %571 = sbr.rel (%p569) target = $region100
        $region99: #{tpu_custom_call.1} parent=87 // pred_region
          %572 = dma.done [#allocation8], 256
        $region100: #{tpu_custom_call.1} parent=87 // pred_fallthru
          _
        // Predicated region
        $region101: #{tpu_custom_call.1} parent=87 // pred_check
          %p573 = pneg %p256
        $region102: #{tpu_custom_call.1} parent=87 // pred_check_branch
          %575 = sbr.rel (%p573) target = $region104
        $region103: #{tpu_custom_call.1} parent=87 // pred_region
          %576 = dma.done [#allocation11], 256
        $region104: #{tpu_custom_call.1} parent=87 // pred_fallthru
          _
        // Predicated region
        $region105: #{tpu_custom_call.1} parent=87 // pred_check
          %p577 = pneg %p277
        $region106: #{tpu_custom_call.1} parent=87 // pred_check_branch
          %579 = sbr.rel (%p577) target = $region108
        $region107: #{tpu_custom_call.1} parent=87 // pred_region
          %580 = dma.done [#allocation11], 16
        $region108: #{tpu_custom_call.1} parent=87 // pred_fallthru
          _
        %p581 = scmp.lt.s32.totalorder %s38, 1
        %s582 = scalar_select %p581, %s38, 1
        %s583 = smul.addr %s582, 2
        %s584 = smul.addr %s583, 8
        %s585 = scalar_lea.vmem %s0, %s584
        %p586 = pneg %p67
        %p587 = pneg %p64
        %p588 = pneg %p88
        %p589 = pneg %p85
        %p590 = pneg %p109
        %p591 = pneg %p106
        %p592 = pneg %p130
        %p593 = pneg %p127
        %p594 = pneg %p151
        %p595 = pneg %p148
        %p596 = pneg %p172
        %p597 = pneg %p169
        %p598 = pneg %p193
        %p599 = pneg %p190
        %p600 = pneg %p214
        %p601 = pneg %p211
        %p602 = pneg %p235
        %p603 = pneg %p232
        %p604 = pneg %p256
        %p605 = pneg %p253
        %p606 = pneg %p277
        %p607 = pneg %p274
        %p608 = pneg %p298
        %p609 = pneg %p295
        %p610 = pneg %p319
        %p611 = pneg %p316
        %p612 = pneg %p340
        %p613 = pneg %p337
        %p614 = pneg %p361
        %p615 = pneg %p358
        %p616 = pneg %p382
        %p617 = pneg %p379
        %p618 = pneg %p403
        %p619 = pneg %p400
        %p620 = pneg %p431
        %p621 = pneg %p428
        %s622 = sand.u32 %s418, 1
        %s623 = scalar_lea.sflag [#allocation6], %s622
        %s624 = sand.u32 %s418, 1
        %s625 = smul.addr %s624, 8
        %s626 = scalar_lea.vmem [#allocation13], %s625
        %p627 = scmp.lt.s32.totalorder %s38, 1
        %s628 = scalar_select %p627, %s38, 1
        %s629 = smul.addr %s628, 2
        %s630 = smul.addr %s629, 8
        %s631 = scalar_lea.vmem %s0, %s630
        %v633 = vld [vmem:[%s13] sm:$0x1]
        %v634 = vld [vmem:[%s14] sm:$0x1]
        %v635 = vld [vmem:[%s15] sm:$0x1]
        %v636 = vld [vmem:[%s16] sm:$0x1]
        %v637 = vld [vmem:[%s2] sm:$0x1]
        %v638 = vld [vmem:[%s8] sm:$0x1]
        %v639 = vld [vmem:[#allocation12] sm:$0x1]
        %v640 = vld [vmem:[%s12] sm:$0x1]
        %p641 = scmp.eq.s32.totalorder %s39, 0
        // Predicated region
        $region109: #{tpu_custom_call.1} parent=87 // pred_check
          %p642 = pneg %p641
        $region110: #{tpu_custom_call.1} parent=87 // pred_check_branch
          %644 = sbr.rel (%p642) target = $region112
        $region111: #{tpu_custom_call.1} parent=87 // pred_region
          %v645 = vld [vmem:[%s631] sm:$0xff]
          %v646 = vld [vmem:[%s631 + $0x8] sm:$0xff]
          %vm647 = vcmask 261120
          %v648 = vsel %vm647, %v645, 0.0
          %649 = vadd.xlane.f32.xlu0 %v648
          %v650 = vpop.xlane.xlu0 %649
          %v651 = vsel %vm647, %v646, 0.0
          %652 = vadd.xlane.f32.xlu0 %v651
          %v653 = vpop.xlane.xlu0 %652
          %v654 = vrcp.pop 32.0
          %v655 = vmul.f32 %v650, %v654
          %v656 = vmul.f32 %v653, %v654
          %v657 = vsub.f32 %v645, %v655
          %v658 = vsub.f32 %v646, %v656
          %v659 = vmul.f32 %v657, %v657
          %v660 = vmul.f32 %v658, %v658
          %v661 = vsel %vm647, %v659, 0.0
          %662 = vadd.xlane.f32.xlu0 %v661
          %v663 = vpop.xlane.xlu0 %662
          %v664 = vsel %vm647, %v660, 0.0
          %665 = vadd.xlane.f32.xlu0 %v664
          %v666 = vpop.xlane.xlu0 %665
          %v667 = vmul.f32 %v663, %v654
          %v668 = vmul.f32 %v666, %v654
          %v669 = vadd.f32 %v667, 1e-05
          %v670 = vadd.f32 %v668, 1e-05
          %v671 = vrsqrt.pop %v669
          %v672 = vrsqrt.pop %v670
          %v673 = vmul.f32 %v657, %v671
          %v674 = vmul.f32 %v658, %v672
          %v676 = vlaneseq
          %v677 = vshrl.u32 %v676, 7
          %v678 = vsub.s32 0, %v677
          %v679 = vrot.slane %v633, %v678
          %v681 = vmul.f32 %v673, %v679
          %v682 = vmul.f32 %v674, %v679
          %v684 = vlaneseq
          %v685 = vshrl.u32 %v684, 7
          %v686 = vsub.s32 0, %v685
          %v687 = vrot.slane %v634, %v686
          %v689 = vadd.f32 %v681, %v687
          %v690 = vadd.f32 %v682, %v687
          %v691 = vpack.c.bf16 %v690, %v689
          %v692 = vld [vmem:[#allocation4] sm:$0xf]
          %v693 = vld [vmem:[#allocation4 + $0x4] sm:$0xf]
          %v694 = vld [vmem:[#allocation4 + $0x8] sm:$0xf]
          %v695 = vld [vmem:[#allocation4 + $0xc] sm:$0xf]
          %v696 = vld [vmem:[%s4] sm:$0x1]
          %v698 = vlaneseq
          %v699 = vshrl.u32 %v698, 7
          %v700 = vsub.s32 0, %v699
          %v701 = vrot.slane %v696, %v700
          %v707 = vunpack.c.l.b16 %v692
          %v708 = vunpack.c.l.b16 %v693
          %v709 = vunpack.c.l.b16 %v694
          %v710 = vunpack.c.l.b16 %v695
          %v711 = vpack.c.b16 %v708, %v707
          %v712 = vpack.c.b16 %v710, %v709
          %v716 = vsel %vm647, %v691, 0
          %718 = vmatprep.subr.bf16.mxu0 0
          %719 = vmatpush1.bf16.msra.mxu0 0
          %720 = vmatprep.subr.bf16.mxu0 0
          %721 = vmatpush1.bf16.msra.mxu0 0
          %722 = vmatprep.subr.bf16.mxu0 0
          %723 = vmatpush1.bf16.msra.mxu0 0
          %724 = vmatprep.subr.bf16.mxu0 0
          %725 = vmatpush1.bf16.msra.mxu0 0
          %726 = vmatprep.subr.bf16.mxu0 0
          %727 = vmatpush1.bf16.msra.mxu0 0
          %728 = vmatprep.subr.bf16.mxu0 0
          %729 = vmatpush1.bf16.msra.mxu0 0
          %730 = vmatprep.subr.bf16.mxu0 0
          %731 = vmatpush1.bf16.msra.mxu0 %v712
          %732 = vmatprep.subr.bf16.mxu0 0
          %733 = vmatpush1.bf16.msra.mxu0 %v711
          %734 = vmatprep.subr.bf16.mxu0 0
          %735 = vmatpush2.bf16.msra.mxu0 0
          %736 = vmatprep.subr.bf16.mxu0 0
          %737 = vmatpush2.bf16.msra.mxu0 0
          %738 = vmatprep.subr.bf16.mxu0 0
          %739 = vmatpush2.bf16.msra.mxu0 0
          %740 = vmatprep.subr.bf16.mxu0 0
          %741 = vmatpush2.bf16.msra.mxu0 0
          %742 = vmatprep.subr.bf16.mxu0 0
          %743 = vmatpush2.bf16.msra.mxu0 0
          %744 = vmatprep.subr.bf16.mxu0 0
          %745 = vmatpush2.bf16.msra.mxu0 0
          %746 = vmatprep.subr.bf16.mxu0 0
          %747 = vmatpush2.bf16.msra.mxu0 0
          %748 = vmatprep.subr.bf16.mxu0 0
          %749 = vmatpush2.bf16.msra.mxu0 0
          %750 = vmatprep.mubr.bf16.mxu0 0
          %751 = vmatmul.mubr.bf16.gmra.mxu0 %v716
          %v752 = vpop.f32.mrf.mxu0
          %v753 = vadd.f32 %v701, %v752
          %v754 = vpop.f32.mrf.mxu0
          %v755 = vpop.f32.mrf.mxu0
          %v756 = vadd.f32 %v701, %v755
          %v757 = vpop.f32.mrf.mxu0
          %758 = vdwg.mxu0
          %v759 = vld [vmem:[#allocation7] sm:$0xf]
          %v760 = vld [vmem:[#allocation7 + $0x4] sm:$0xf]
          %v761 = vld [vmem:[#allocation7 + $0x8] sm:$0xf]
          %v762 = vld [vmem:[#allocation7 + $0xc] sm:$0xf]
          %v763 = vld [vmem:[%s6] sm:$0x1]
          %v765 = vlaneseq
          %v766 = vshrl.u32 %v765, 7
          %v767 = vsub.s32 0, %v766
          %v768 = vrot.slane %v763, %v767
          %v774 = vunpack.c.l.b16 %v759
          %v775 = vunpack.c.l.b16 %v760
          %v776 = vunpack.c.l.b16 %v761
          %v777 = vunpack.c.l.b16 %v762
          %v778 = vpack.c.b16 %v775, %v774
          %v779 = vpack.c.b16 %v777, %v776
          %782 = vmatprep.subr.bf16.mxu0 0
          %783 = vmatpush1.bf16.msra.mxu0 0
          %784 = vmatprep.subr.bf16.mxu0 0
          %785 = vmatpush1.bf16.msra.mxu0 0
          %786 = vmatprep.subr.bf16.mxu0 0
          %787 = vmatpush1.bf16.msra.mxu0 0
          %788 = vmatprep.subr.bf16.mxu0 0
          %789 = vmatpush1.bf16.msra.mxu0 0
          %790 = vmatprep.subr.bf16.mxu0 0
          %791 = vmatpush1.bf16.msra.mxu0 0
          %792 = vmatprep.subr.bf16.mxu0 0
          %793 = vmatpush1.bf16.msra.mxu0 0
          %794 = vmatprep.subr.bf16.mxu0 0
          %795 = vmatpush1.bf16.msra.mxu0 %v779
          %796 = vmatprep.subr.bf16.mxu0 0
          %797 = vmatpush1.bf16.msra.mxu0 %v778
          %798 = vmatprep.subr.bf16.mxu0 0
          %799 = vmatpush2.bf16.msra.mxu0 0
          %800 = vmatprep.subr.bf16.mxu0 0
          %801 = vmatpush2.bf16.msra.mxu0 0
          %802 = vmatprep.subr.bf16.mxu0 0
          %803 = vmatpush2.bf16.msra.mxu0 0
          %804 = vmatprep.subr.bf16.mxu0 0
          %805 = vmatpush2.bf16.msra.mxu0 0
          %806 = vmatprep.subr.bf16.mxu0 0
          %807 = vmatpush2.bf16.msra.mxu0 0
          %808 = vmatprep.subr.bf16.mxu0 0
          %809 = vmatpush2.bf16.msra.mxu0 0
          %810 = vmatprep.subr.bf16.mxu0 0
          %811 = vmatpush2.bf16.msra.mxu0 0
          %812 = vmatprep.subr.bf16.mxu0 0
          %813 = vmatpush2.bf16.msra.mxu0 0
          %814 = vmatprep.mubr.bf16.mxu0 0
          %815 = vmatmul.mubr.bf16.gmra.mxu0 %v716
          %v816 = vpop.f32.mrf.mxu0
          %v817 = vadd.f32 %v768, %v816
          %v818 = vpop.f32.mrf.mxu0
          %v819 = vpop.f32.mrf.mxu0
          %v820 = vadd.f32 %v768, %v819
          %v821 = vpop.f32.mrf.mxu0
          %822 = vdwg.mxu0
          %825 = vrot.lane.b32.xlu0 %v753, 120
          %v826 = vpop.permute.xlu0 %825
          %827 = vrot.lane.b32.xlu0 %v756, 120
          %v828 = vpop.permute.xlu0 %827
          %831 = vrot.lane.b32.xlu0 %v753, 112
          %v832 = vpop.permute.xlu0 %831
          %833 = vrot.lane.b32.xlu0 %v756, 112
          %v834 = vpop.permute.xlu0 %833
          %837 = vrot.lane.b32.xlu0 %v753, 104
          %v838 = vpop.permute.xlu0 %837
          %839 = vrot.lane.b32.xlu0 %v756, 104
          %v840 = vpop.permute.xlu0 %839
          %v843 = vpack.c.bf16 %v756, %v753
          %v844 = vpack.c.bf16 %v828, %v826
          %v845 = vpack.c.bf16 %v834, %v832
          %v846 = vpack.c.bf16 %v840, %v838
          %v851 = vunpack.c.l.b16 %v843
          %v852 = vunpack.c.h.b16 %v843
          %v853 = vunpack.c.l.b16 %v844
          %v854 = vunpack.c.h.b16 %v844
          %v855 = vunpack.c.l.b16 %v845
          %v856 = vunpack.c.h.b16 %v845
          %v857 = vunpack.c.l.b16 %v846
          %v858 = vunpack.c.h.b16 %v846
          %v859 = vpack.c.b16 %v851, %v851
          %v860 = vpack.c.b16 %v852, %v852
          %v861 = vpack.c.b16 %v853, %v853
          %v862 = vpack.c.b16 %v854, %v854
          %v863 = vpack.c.b16 %v855, %v855
          %v864 = vpack.c.b16 %v856, %v856
          %v865 = vpack.c.b16 %v857, %v857
          %v866 = vpack.c.b16 %v858, %v858
          %vm875 = vcmask 60416
          %876 = vst.msk [vmem:[#allocation2] sm:$0xf] %vm875, %v859
          %877 = vst.msk [vmem:[#allocation2 + $0x4] sm:$0xf] %vm875, %v860
          %878 = vst.msk [vmem:[#allocation2 + $0x8] sm:$0xf] %vm875, %v861
          %879 = vst.msk [vmem:[#allocation2 + $0xc] sm:$0xf] %vm875, %v862
          %880 = vst.msk [vmem:[#allocation2 + $0x10] sm:$0xf] %vm875, %v863
          %881 = vst.msk [vmem:[#allocation2 + $0x14] sm:$0xf] %vm875, %v864
          %882 = vst.msk [vmem:[#allocation2 + $0x18] sm:$0xf] %vm875, %v865
          %883 = vst.msk [vmem:[#allocation2 + $0x1c] sm:$0xf] %vm875, %v866
          %886 = vrot.lane.b32.xlu0 %v817, 120
          %v887 = vpop.permute.xlu0 %886
          %888 = vrot.lane.b32.xlu0 %v820, 120
          %v889 = vpop.permute.xlu0 %888
          %892 = vrot.lane.b32.xlu0 %v817, 112
          %v893 = vpop.permute.xlu0 %892
          %894 = vrot.lane.b32.xlu0 %v820, 112
          %v895 = vpop.permute.xlu0 %894
          %898 = vrot.lane.b32.xlu0 %v817, 104
          %v899 = vpop.permute.xlu0 %898
          %900 = vrot.lane.b32.xlu0 %v820, 104
          %v901 = vpop.permute.xlu0 %900
          %v904 = vpack.c.bf16 %v820, %v817
          %v905 = vpack.c.bf16 %v889, %v887
          %v906 = vpack.c.bf16 %v895, %v893
          %v907 = vpack.c.bf16 %v901, %v899
          %v912 = vunpack.c.l.b16 %v904
          %v913 = vunpack.c.h.b16 %v904
          %v914 = vunpack.c.l.b16 %v905
          %v915 = vunpack.c.h.b16 %v905
          %v916 = vunpack.c.l.b16 %v906
          %v917 = vunpack.c.h.b16 %v906
          %v918 = vunpack.c.l.b16 %v907
          %v919 = vunpack.c.h.b16 %v907
          %v920 = vpack.c.b16 %v912, %v912
          %v921 = vpack.c.b16 %v913, %v913
          %v922 = vpack.c.b16 %v914, %v914
          %v923 = vpack.c.b16 %v915, %v915
          %v924 = vpack.c.b16 %v916, %v916
          %v925 = vpack.c.b16 %v917, %v917
          %v926 = vpack.c.b16 %v918, %v918
          %v927 = vpack.c.b16 %v919, %v919
          %936 = vst.msk [vmem:[#allocation3] sm:$0xf] %vm875, %v920
          %937 = vst.msk [vmem:[#allocation3 + $0x4] sm:$0xf] %vm875, %v921
          %938 = vst.msk [vmem:[#allocation3 + $0x8] sm:$0xf] %vm875, %v922
          %939 = vst.msk [vmem:[#allocation3 + $0xc] sm:$0xf] %vm875, %v923
          %940 = vst.msk [vmem:[#allocation3 + $0x10] sm:$0xf] %vm875, %v924
          %941 = vst.msk [vmem:[#allocation3 + $0x14] sm:$0xf] %vm875, %v925
          %942 = vst.msk [vmem:[#allocation3 + $0x18] sm:$0xf] %vm875, %v926
          %943 = vst.msk [vmem:[#allocation3 + $0x1c] sm:$0xf] %vm875, %v927
        $region112: #{tpu_custom_call.1} parent=87 // pred_fallthru
          _
        %s944 = smul.u32 %s39, 8
        %s945 = scalar_lea.vmem %s631, %s944
        %v946 = vld [vmem:[%s945] sm:$0xff]
        %vm947 = vcmask 261120
        %v948 = vsel %vm947, %v946, 0.0
        %949 = vadd.xlane.f32.xlu0 %v948
        %v950 = vpop.xlane.xlu0 %949
        %v951 = vrcp.pop 32.0
        %v952 = vmul.f32 %v950, %v951
        %v953 = vsub.f32 %v946, %v952
        %v954 = vmul.f32 %v953, %v953
        %v955 = vsel %vm947, %v954, 0.0
        %956 = vadd.xlane.f32.xlu0 %v955
        %v957 = vpop.xlane.xlu0 %956
        %v958 = vmul.f32 %v957, %v951
        %v959 = vadd.f32 %v958, 1e-05
        %v960 = vrsqrt.pop %v959
        %v961 = vmul.f32 %v953, %v960
        %v963 = vlaneseq
        %v964 = vshrl.u32 %v963, 7
        %v965 = vsub.s32 0, %v964
        %v966 = vrot.slane %v633, %v965
        %v968 = vmul.f32 %v961, %v966
        %v970 = vlaneseq
        %v971 = vshrl.u32 %v970, 7
        %v972 = vsub.s32 0, %v971
        %v973 = vrot.slane %v634, %v972
        %v975 = vadd.f32 %v968, %v973
        %v976 = vpack.c.bf16 %v975, %v975
        %v977 = vld [vmem:[%s1] sm:$0xf]
        %v978 = vld [vmem:[%s1 + $0x4] sm:$0xf]
        %v979 = vld [vmem:[%s1 + $0x8] sm:$0xf]
        %v980 = vld [vmem:[%s1 + $0xc] sm:$0xf]
        %v982 = vlaneseq
        %v983 = vshrl.u32 %v982, 7
        %v984 = vsub.s32 0, %v983
        %v985 = vrot.slane %v637, %v984
        %v991 = vunpack.c.l.b16 %v977
        %v992 = vunpack.c.l.b16 %v978
        %v993 = vunpack.c.l.b16 %v979
        %v994 = vunpack.c.l.b16 %v980
        %v995 = vpack.c.b16 %v992, %v991
        %v996 = vpack.c.b16 %v994, %v993
        %v1000 = vsel %vm947, %v976, 0
        %1002 = vmatprep.subr.bf16.mxu0 0
        %1003 = vmatpush1.bf16.msra.mxu0 0
        %1004 = vmatprep.subr.bf16.mxu0 0
        %1005 = vmatpush1.bf16.msra.mxu0 0
        %1006 = vmatprep.subr.bf16.mxu0 0
        %1007 = vmatpush1.bf16.msra.mxu0 0
        %1008 = vmatprep.subr.bf16.mxu0 0
        %1009 = vmatpush1.bf16.msra.mxu0 0
        %1010 = vmatprep.subr.bf16.mxu0 0
        %1011 = vmatpush1.bf16.msra.mxu0 0
        %1012 = vmatprep.subr.bf16.mxu0 0
        %1013 = vmatpush1.bf16.msra.mxu0 0
        %1014 = vmatprep.subr.bf16.mxu0 0
        %1015 = vmatpush1.bf16.msra.mxu0 %v996
        %1016 = vmatprep.subr.bf16.mxu0 0
        %1017 = vmatpush1.bf16.msra.mxu0 %v995
        %1018 = vmatprep.subr.bf16.mxu0 0
        %1019 = vmatpush2.bf16.msra.mxu0 0
        %1020 = vmatprep.subr.bf16.mxu0 0
        %1021 = vmatpush2.bf16.msra.mxu0 0
        %1022 = vmatprep.subr.bf16.mxu0 0
        %1023 = vmatpush2.bf16.msra.mxu0 0
        %1024 = vmatprep.subr.bf16.mxu0 0
        %1025 = vmatpush2.bf16.msra.mxu0 0
        %1026 = vmatprep.subr.bf16.mxu0 0
        %1027 = vmatpush2.bf16.msra.mxu0 0
        %1028 = vmatprep.subr.bf16.mxu0 0
        %1029 = vmatpush2.bf16.msra.mxu0 0
        %1030 = vmatprep.subr.bf16.mxu0 0
        %1031 = vmatpush2.bf16.msra.mxu0 0
        %1032 = vmatprep.subr.bf16.mxu0 0
        %1033 = vmatpush2.bf16.msra.mxu0 0
        %1034 = vmatprep.mubr.bf16.mxu0 0
        %1035 = vmatmul.mubr.bf16.gmra.mxu0 %v1000
        %v1036 = vpop.f32.mrf.mxu0
        %v1037 = vadd.f32 %v985, %v1036
        %v1038 = vpop.f32.mrf.mxu0
        %v1039 = vpop.f32.mrf.mxu0
        %v1040 = vpop.f32.mrf.mxu0
        %1041 = vdwg.mxu0
        %v1042 = vmul.f32 %v1037, 0.35355338
        %1044 = vrot.lane.b32.xlu0 %v1042, 120
        %v1045 = vpop.permute.xlu0 %1044
        %1047 = vrot.lane.b32.xlu0 %v1042, 112
        %v1048 = vpop.permute.xlu0 %1047
        %1050 = vrot.lane.b32.xlu0 %v1042, 104
        %v1051 = vpop.permute.xlu0 %1050
        %v1053 = vpack.c.bf16 %v1042, %v1042
        %v1054 = vpack.c.bf16 %v1045, %v1045
        %v1055 = vpack.c.bf16 %v1048, %v1048
        %v1056 = vpack.c.bf16 %v1051, %v1051
        %v1057 = vld [vmem:[#allocation2] sm:$0xf]
        %v1058 = vld [vmem:[#allocation2 + $0x4] sm:$0xf]
        %v1059 = vld [vmem:[#allocation2 + $0x8] sm:$0xf]
        %v1060 = vld [vmem:[#allocation2 + $0xc] sm:$0xf]
        %v1061 = vld [vmem:[#allocation2 + $0x10] sm:$0xf]
        %v1062 = vld [vmem:[#allocation2 + $0x14] sm:$0xf]
        %v1063 = vld [vmem:[#allocation2 + $0x18] sm:$0xf]
        %v1064 = vld [vmem:[#allocation2 + $0x1c] sm:$0xf]
        %v1065 = vld [vmem:[#allocation3] sm:$0xf]
        %v1066 = vld [vmem:[#allocation3 + $0x4] sm:$0xf]
        %v1067 = vld [vmem:[#allocation3 + $0x8] sm:$0xf]
        %v1068 = vld [vmem:[#allocation3 + $0xc] sm:$0xf]
        %v1069 = vld [vmem:[#allocation3 + $0x10] sm:$0xf]
        %v1070 = vld [vmem:[#allocation3 + $0x14] sm:$0xf]
        %v1071 = vld [vmem:[#allocation3 + $0x18] sm:$0xf]
        %v1072 = vld [vmem:[#allocation3 + $0x1c] sm:$0xf]
        %v1075 = vunpack.c.l.b16 %v1057
        %v1076 = vunpack.c.l.b16 %v1058
        %v1077 = vpack.c.b16 %v1076, %v1075
        %vm1078 = vcmask 64512
        %v1080 = vsel %vm1078, %v1053, 0
        %v1083 = vsel %vm1078, %v1077, 0
        %1085 = vmatprep.subr.bf16.mxu0 0
        %1086 = vmatpush1.bf16.xpose.msra.mxu0 0
        %1087 = vmatprep.subr.bf16.mxu0 0
        %1088 = vmatpush1.bf16.xpose.msra.mxu0 0
        %1089 = vmatprep.subr.bf16.mxu0 0
        %1090 = vmatpush1.bf16.xpose.msra.mxu0 0
        %1091 = vmatprep.subr.bf16.mxu0 0
        %1092 = vmatpush1.bf16.xpose.msra.mxu0 0
        %1093 = vmatprep.subr.bf16.mxu0 0
        %1094 = vmatpush1.bf16.xpose.msra.mxu0 0
        %1095 = vmatprep.subr.bf16.mxu0 0
        %1096 = vmatpush1.bf16.xpose.msra.mxu0 0
        %1097 = vmatprep.subr.bf16.mxu0 0
        %1098 = vmatpush1.bf16.xpose.msra.mxu0 0
        %1099 = vmatprep.subr.bf16.mxu0 0
        %1100 = vmatpush1.bf16.xpose.msra.mxu0 %v1083
        %1101 = vmatprep.subr.bf16.mxu0 0
        %1102 = vmatpush2.bf16.xpose.msra.mxu0 0
        %1103 = vmatprep.subr.bf16.mxu0 0
        %1104 = vmatpush2.bf16.xpose.msra.mxu0 0
        %1105 = vmatprep.subr.bf16.mxu0 0
        %1106 = vmatpush2.bf16.xpose.msra.mxu0 0
        %1107 = vmatprep.subr.bf16.mxu0 0
        %1108 = vmatpush2.bf16.xpose.msra.mxu0 0
        %1109 = vmatprep.subr.bf16.mxu0 0
        %1110 = vmatpush2.bf16.xpose.msra.mxu0 0
        %1111 = vmatprep.subr.bf16.mxu0 0
        %1112 = vmatpush2.bf16.xpose.msra.mxu0 0
        %1113 = vmatprep.subr.bf16.mxu0 0
        %1114 = vmatpush2.bf16.xpose.msra.mxu0 0
        %1115 = vmatprep.subr.bf16.mxu0 0
        %1116 = vmatpush2.bf16.xpose.msra.mxu0 0
        %1117 = vmatprep.mubr.bf16.mxu0 0
        %1118 = vmatmul.mubr.bf16.gmra.mxu0 %v1080
        %v1119 = vpop.f32.mrf.mxu0
        %v1120 = vadd.f32 0.0, %v1119
        %v1121 = vpop.f32.mrf.mxu0
        %v1122 = vpop.f32.mrf.mxu0
        %v1123 = vpop.f32.mrf.mxu0
        %1124 = vdwg.mxu0
        %v1127 = vunpack.c.l.b16 %v1059
        %v1128 = vunpack.c.l.b16 %v1060
        %v1129 = vpack.c.b16 %v1128, %v1127
        %v1131 = vsel %vm1078, %v1054, 0
        %v1134 = vsel %vm1078, %v1129, 0
        %1136 = vmatprep.subr.bf16.mxu0 0
        %1137 = vmatpush1.bf16.xpose.msra.mxu0 0
        %1138 = vmatprep.subr.bf16.mxu0 0
        %1139 = vmatpush1.bf16.xpose.msra.mxu0 0
        %1140 = vmatprep.subr.bf16.mxu0 0
        %1141 = vmatpush1.bf16.xpose.msra.mxu0 0
        %1142 = vmatprep.subr.bf16.mxu0 0
        %1143 = vmatpush1.bf16.xpose.msra.mxu0 0
        %1144 = vmatprep.subr.bf16.mxu0 0
        %1145 = vmatpush1.bf16.xpose.msra.mxu0 0
        %1146 = vmatprep.subr.bf16.mxu0 0
        %1147 = vmatpush1.bf16.xpose.msra.mxu0 0
        %1148 = vmatprep.subr.bf16.mxu0 0
        %1149 = vmatpush1.bf16.xpose.msra.mxu0 0
        %1150 = vmatprep.subr.bf16.mxu0 0
        %1151 = vmatpush1.bf16.xpose.msra.mxu0 %v1134
        %1152 = vmatprep.subr.bf16.mxu0 0
        %1153 = vmatpush2.bf16.xpose.msra.mxu0 0
        %1154 = vmatprep.subr.bf16.mxu0 0
        %1155 = vmatpush2.bf16.xpose.msra.mxu0 0
        %1156 = vmatprep.subr.bf16.mxu0 0
        %1157 = vmatpush2.bf16.xpose.msra.mxu0 0
        %1158 = vmatprep.subr.bf16.mxu0 0
        %1159 = vmatpush2.bf16.xpose.msra.mxu0 0
        %1160 = vmatprep.subr.bf16.mxu0 0
        %1161 = vmatpush2.bf16.xpose.msra.mxu0 0
        %1162 = vmatprep.subr.bf16.mxu0 0
        %1163 = vmatpush2.bf16.xpose.msra.mxu0 0
        %1164 = vmatprep.subr.bf16.mxu0 0
        %1165 = vmatpush2.bf16.xpose.msra.mxu0 0
        %1166 = vmatprep.subr.bf16.mxu0 0
        %1167 = vmatpush2.bf16.xpose.msra.mxu0 0
        %1168 = vmatprep.mubr.bf16.mxu0 0
        %1169 = vmatmul.mubr.bf16.gmra.mxu0 %v1131
        %v1170 = vpop.f32.mrf.mxu0
        %v1171 = vadd.f32 0.0, %v1170
        %v1172 = vpop.f32.mrf.mxu0
        %v1173 = vpop.f32.mrf.mxu0
        %v1174 = vpop.f32.mrf.mxu0
        %1175 = vdwg.mxu0
        %v1178 = vunpack.c.l.b16 %v1061
        %v1179 = vunpack.c.l.b16 %v1062
        %v1180 = vpack.c.b16 %v1179, %v1178
        %v1182 = vsel %vm1078, %v1055, 0
        %v1185 = vsel %vm1078, %v1180, 0
        %1187 = vmatprep.subr.bf16.mxu0 0
        %1188 = vmatpush1.bf16.xpose.msra.mxu0 0
        %1189 = vmatprep.subr.bf16.mxu0 0
        %1190 = vmatpush1.bf16.xpose.msra.mxu0 0
        %1191 = vmatprep.subr.bf16.mxu0 0
        %1192 = vmatpush1.bf16.xpose.msra.mxu0 0
        %1193 = vmatprep.subr.bf16.mxu0 0
        %1194 = vmatpush1.bf16.xpose.msra.mxu0 0
        %1195 = vmatprep.subr.bf16.mxu0 0
        %1196 = vmatpush1.bf16.xpose.msra.mxu0 0
        %1197 = vmatprep.subr.bf16.mxu0 0
        %1198 = vmatpush1.bf16.xpose.msra.mxu0 0
        %1199 = vmatprep.subr.bf16.mxu0 0
        %1200 = vmatpush1.bf16.xpose.msra.mxu0 0
        %1201 = vmatprep.subr.bf16.mxu0 0
        %1202 = vmatpush1.bf16.xpose.msra.mxu0 %v1185
        %1203 = vmatprep.subr.bf16.mxu0 0
        %1204 = vmatpush2.bf16.xpose.msra.mxu0 0
        %1205 = vmatprep.subr.bf16.mxu0 0
        %1206 = vmatpush2.bf16.xpose.msra.mxu0 0
        %1207 = vmatprep.subr.bf16.mxu0 0
        %1208 = vmatpush2.bf16.xpose.msra.mxu0 0
        %1209 = vmatprep.subr.bf16.mxu0 0
        %1210 = vmatpush2.bf16.xpose.msra.mxu0 0
        %1211 = vmatprep.subr.bf16.mxu0 0
        %1212 = vmatpush2.bf16.xpose.msra.mxu0 0
        %1213 = vmatprep.subr.bf16.mxu0 0
        %1214 = vmatpush2.bf16.xpose.msra.mxu0 0
        %1215 = vmatprep.subr.bf16.mxu0 0
        %1216 = vmatpush2.bf16.xpose.msra.mxu0 0
        %1217 = vmatprep.subr.bf16.mxu0 0
        %1218 = vmatpush2.bf16.xpose.msra.mxu0 0
        %1219 = vmatprep.mubr.bf16.mxu0 0
        %1220 = vmatmul.mubr.bf16.gmra.mxu0 %v1182
        %v1221 = vpop.f32.mrf.mxu0
        %v1222 = vadd.f32 0.0, %v1221
        %v1223 = vpop.f32.mrf.mxu0
        %v1224 = vpop.f32.mrf.mxu0
        %v1225 = vpop.f32.mrf.mxu0
        %1226 = vdwg.mxu0
        %v1229 = vunpack.c.l.b16 %v1063
        %v1230 = vunpack.c.l.b16 %v1064
        %v1231 = vpack.c.b16 %v1230, %v1229
        %v1233 = vsel %vm1078, %v1056, 0
        %v1236 = vsel %vm1078, %v1231, 0
        %1238 = vmatprep.subr.bf16.mxu0 0
        %1239 = vmatpush1.bf16.xpose.msra.mxu0 0
        %1240 = vmatprep.subr.bf16.mxu0 0
        %1241 = vmatpush1.bf16.xpose.msra.mxu0 0
        %1242 = vmatprep.subr.bf16.mxu0 0
        %1243 = vmatpush1.bf16.xpose.msra.mxu0 0
        %1244 = vmatprep.subr.bf16.mxu0 0
        %1245 = vmatpush1.bf16.xpose.msra.mxu0 0
        %1246 = vmatprep.subr.bf16.mxu0 0
        %1247 = vmatpush1.bf16.xpose.msra.mxu0 0
        %1248 = vmatprep.subr.bf16.mxu0 0
        %1249 = vmatpush1.bf16.xpose.msra.mxu0 0
        %1250 = vmatprep.subr.bf16.mxu0 0
        %1251 = vmatpush1.bf16.xpose.msra.mxu0 0
        %1252 = vmatprep.subr.bf16.mxu0 0
        %1253 = vmatpush1.bf16.xpose.msra.mxu0 %v1236
        %1254 = vmatprep.subr.bf16.mxu0 0
        %1255 = vmatpush2.bf16.xpose.msra.mxu0 0
        %1256 = vmatprep.subr.bf16.mxu0 0
        %1257 = vmatpush2.bf16.xpose.msra.mxu0 0
        %1258 = vmatprep.subr.bf16.mxu0 0
        %1259 = vmatpush2.bf16.xpose.msra.mxu0 0
        %1260 = vmatprep.subr.bf16.mxu0 0
        %1261 = vmatpush2.bf16.xpose.msra.mxu0 0
        %1262 = vmatprep.subr.bf16.mxu0 0
        %1263 = vmatpush2.bf16.xpose.msra.mxu0 0
        %1264 = vmatprep.subr.bf16.mxu0 0
        %1265 = vmatpush2.bf16.xpose.msra.mxu0 0
        %1266 = vmatprep.subr.bf16.mxu0 0
        %1267 = vmatpush2.bf16.xpose.msra.mxu0 0
        %1268 = vmatprep.subr.bf16.mxu0 0
        %1269 = vmatpush2.bf16.xpose.msra.mxu0 0
        %1270 = vmatprep.mubr.bf16.mxu0 0
        %1271 = vmatmul.mubr.bf16.gmra.mxu0 %v1233
        %v1272 = vpop.f32.mrf.mxu0
        %v1273 = vadd.f32 0.0, %v1272
        %v1274 = vpop.f32.mrf.mxu0
        %v1275 = vpop.f32.mrf.mxu0
        %v1276 = vpop.f32.mrf.mxu0
        %1277 = vdwg.mxu0
        %vm1278 = vcmask 130048
        %v1279 = vsel %vm1278, %v1120, -inf
        %1280 = vmax.xlane.f32.xlu0 %v1279
        %v1281 = vpop.xlane.xlu0 %1280
        %v1282 = vsel %vm1278, %v1171, -inf
        %1283 = vmax.xlane.f32.xlu0 %v1282
        %v1284 = vpop.xlane.xlu0 %1283
        %v1285 = vsel %vm1278, %v1222, -inf
        %1286 = vmax.xlane.f32.xlu0 %v1285
        %v1287 = vpop.xlane.xlu0 %1286
        %v1288 = vsel %vm1278, %v1273, -inf
        %1289 = vmax.xlane.f32.xlu0 %v1288
        %v1290 = vpop.xlane.xlu0 %1289
        %v1291 = vsub.f32 %v1120, %v1281
        %v1292 = vsub.f32 %v1171, %v1284
        %v1293 = vsub.f32 %v1222, %v1287
        %v1294 = vsub.f32 %v1273, %v1290
        %v1295 = vmul.f32 %v1291, 1.442695
        %v1296 = vpow.pop %v1295
        %v1297 = vmul.f32 %v1292, 1.442695
        %v1298 = vpow.pop %v1297
        %v1299 = vmul.f32 %v1293, 1.442695
        %v1300 = vpow.pop %v1299
        %v1301 = vmul.f32 %v1294, 1.442695
        %v1302 = vpow.pop %v1301
        %v1303 = vsel %vm1278, %v1296, 0.0
        %1304 = vadd.xlane.f32.xlu0 %v1303
        %v1305 = vpop.xlane.xlu0 %1304
        %v1306 = vsel %vm1278, %v1298, 0.0
        %1307 = vadd.xlane.f32.xlu0 %v1306
        %v1308 = vpop.xlane.xlu0 %1307
        %v1309 = vsel %vm1278, %v1300, 0.0
        %1310 = vadd.xlane.f32.xlu0 %v1309
        %v1311 = vpop.xlane.xlu0 %1310
        %v1312 = vsel %vm1278, %v1302, 0.0
        %1313 = vadd.xlane.f32.xlu0 %v1312
        %v1314 = vpop.xlane.xlu0 %1313
        %v1315 = vrcp.pop %v1305
        %v1316 = vrcp.pop %v1308
        %v1317 = vrcp.pop %v1311
        %v1318 = vrcp.pop %v1314
        %v1319 = vmul.f32 %v1296, %v1315
        %v1320 = vmul.f32 %v1298, %v1316
        %v1321 = vmul.f32 %v1300, %v1317
        %v1322 = vmul.f32 %v1302, %v1318
        %v1323 = vpack.c.bf16 %v1319, %v1319
        %v1324 = vpack.c.bf16 %v1320, %v1320
        %v1325 = vpack.c.bf16 %v1321, %v1321
        %v1326 = vpack.c.bf16 %v1322, %v1322
        %v1329 = vunpack.c.l.b16 %v1065
        %v1330 = vunpack.c.l.b16 %v1066
        %v1331 = vpack.c.b16 %v1330, %v1329
        %v1334 = vsel %vm1278, %v1323, 0
        %1336 = vmatprep.subr.bf16.mxu0 0
        %1337 = vmatpush1.bf16.msra.mxu0 0
        %1338 = vmatprep.subr.bf16.mxu0 0
        %1339 = vmatpush1.bf16.msra.mxu0 0
        %1340 = vmatprep.subr.bf16.mxu0 0
        %1341 = vmatpush1.bf16.msra.mxu0 0
        %1342 = vmatprep.subr.bf16.mxu0 0
        %1343 = vmatpush1.bf16.msra.mxu0 0
        %1344 = vmatprep.subr.bf16.mxu0 0
        %1345 = vmatpush1.bf16.msra.mxu0 0
        %1346 = vmatprep.subr.bf16.mxu0 0
        %1347 = vmatpush1.bf16.msra.mxu0 0
        %1348 = vmatprep.subr.bf16.mxu0 0
        %1349 = vmatpush1.bf16.msra.mxu0 0
        %1350 = vmatprep.subr.bf16.mxu0 0
        %1351 = vmatpush1.bf16.msra.mxu0 %v1331
        %1352 = vmatprep.subr.bf16.mxu0 0
        %1353 = vmatpush2.bf16.msra.mxu0 0
        %1354 = vmatprep.subr.bf16.mxu0 0
        %1355 = vmatpush2.bf16.msra.mxu0 0
        %1356 = vmatprep.subr.bf16.mxu0 0
        %1357 = vmatpush2.bf16.msra.mxu0 0
        %1358 = vmatprep.subr.bf16.mxu0 0
        %1359 = vmatpush2.bf16.msra.mxu0 0
        %1360 = vmatprep.subr.bf16.mxu0 0
        %1361 = vmatpush2.bf16.msra.mxu0 0
        %1362 = vmatprep.subr.bf16.mxu0 0
        %1363 = vmatpush2.bf16.msra.mxu0 0
        %1364 = vmatprep.subr.bf16.mxu0 0
        %1365 = vmatpush2.bf16.msra.mxu0 0
        %1366 = vmatprep.subr.bf16.mxu0 0
        %1367 = vmatpush2.bf16.msra.mxu0 0
        %1368 = vmatprep.mubr.bf16.mxu0 0
        %1369 = vmatmul.mubr.bf16.gmra.mxu0 %v1334
        %v1370 = vpop.f32.mrf.mxu0
        %v1371 = vadd.f32 0.0, %v1370
        %v1372 = vpop.f32.mrf.mxu0
        %v1373 = vpop.f32.mrf.mxu0
        %v1374 = vpop.f32.mrf.mxu0
        %1375 = vdwg.mxu0
        %v1378 = vunpack.c.l.b16 %v1067
        %v1379 = vunpack.c.l.b16 %v1068
        %v1380 = vpack.c.b16 %v1379, %v1378
        %v1383 = vsel %vm1278, %v1324, 0
        %1385 = vmatprep.subr.bf16.mxu0 0
        %1386 = vmatpush1.bf16.msra.mxu0 0
        %1387 = vmatprep.subr.bf16.mxu0 0
        %1388 = vmatpush1.bf16.msra.mxu0 0
        %1389 = vmatprep.subr.bf16.mxu0 0
        %1390 = vmatpush1.bf16.msra.mxu0 0
        %1391 = vmatprep.subr.bf16.mxu0 0
        %1392 = vmatpush1.bf16.msra.mxu0 0
        %1393 = vmatprep.subr.bf16.mxu0 0
        %1394 = vmatpush1.bf16.msra.mxu0 0
        %1395 = vmatprep.subr.bf16.mxu0 0
        %1396 = vmatpush1.bf16.msra.mxu0 0
        %1397 = vmatprep.subr.bf16.mxu0 0
        %1398 = vmatpush1.bf16.msra.mxu0 0
        %1399 = vmatprep.subr.bf16.mxu0 0
        %1400 = vmatpush1.bf16.msra.mxu0 %v1380
        %1401 = vmatprep.subr.bf16.mxu0 0
        %1402 = vmatpush2.bf16.msra.mxu0 0
        %1403 = vmatprep.subr.bf16.mxu0 0
        %1404 = vmatpush2.bf16.msra.mxu0 0
        %1405 = vmatprep.subr.bf16.mxu0 0
        %1406 = vmatpush2.bf16.msra.mxu0 0
        %1407 = vmatprep.subr.bf16.mxu0 0
        %1408 = vmatpush2.bf16.msra.mxu0 0
        %1409 = vmatprep.subr.bf16.mxu0 0
        %1410 = vmatpush2.bf16.msra.mxu0 0
        %1411 = vmatprep.subr.bf16.mxu0 0
        %1412 = vmatpush2.bf16.msra.mxu0 0
        %1413 = vmatprep.subr.bf16.mxu0 0
        %1414 = vmatpush2.bf16.msra.mxu0 0
        %1415 = vmatprep.subr.bf16.mxu0 0
        %1416 = vmatpush2.bf16.msra.mxu0 0
        %1417 = vmatprep.mubr.bf16.mxu0 0
        %1418 = vmatmul.mubr.bf16.gmra.mxu0 %v1383
        %v1419 = vpop.f32.mrf.mxu0
        %v1420 = vadd.f32 0.0, %v1419
        %v1421 = vpop.f32.mrf.mxu0
        %v1422 = vpop.f32.mrf.mxu0
        %v1423 = vpop.f32.mrf.mxu0
        %1424 = vdwg.mxu0
        %v1427 = vunpack.c.l.b16 %v1069
        %v1428 = vunpack.c.l.b16 %v1070
        %v1429 = vpack.c.b16 %v1428, %v1427
        %v1432 = vsel %vm1278, %v1325, 0
        %1434 = vmatprep.subr.bf16.mxu0 0
        %1435 = vmatpush1.bf16.msra.mxu0 0
        %1436 = vmatprep.subr.bf16.mxu0 0
        %1437 = vmatpush1.bf16.msra.mxu0 0
        %1438 = vmatprep.subr.bf16.mxu0 0
        %1439 = vmatpush1.bf16.msra.mxu0 0
        %1440 = vmatprep.subr.bf16.mxu0 0
        %1441 = vmatpush1.bf16.msra.mxu0 0
        %1442 = vmatprep.subr.bf16.mxu0 0
        %1443 = vmatpush1.bf16.msra.mxu0 0
        %1444 = vmatprep.subr.bf16.mxu0 0
        %1445 = vmatpush1.bf16.msra.mxu0 0
        %1446 = vmatprep.subr.bf16.mxu0 0
        %1447 = vmatpush1.bf16.msra.mxu0 0
        %1448 = vmatprep.subr.bf16.mxu0 0
        %1449 = vmatpush1.bf16.msra.mxu0 %v1429
        %1450 = vmatprep.subr.bf16.mxu0 0
        %1451 = vmatpush2.bf16.msra.mxu0 0
        %1452 = vmatprep.subr.bf16.mxu0 0
        %1453 = vmatpush2.bf16.msra.mxu0 0
        %1454 = vmatprep.subr.bf16.mxu0 0
        %1455 = vmatpush2.bf16.msra.mxu0 0
        %1456 = vmatprep.subr.bf16.mxu0 0
        %1457 = vmatpush2.bf16.msra.mxu0 0
        %1458 = vmatprep.subr.bf16.mxu0 0
        %1459 = vmatpush2.bf16.msra.mxu0 0
        %1460 = vmatprep.subr.bf16.mxu0 0
        %1461 = vmatpush2.bf16.msra.mxu0 0
        %1462 = vmatprep.subr.bf16.mxu0 0
        %1463 = vmatpush2.bf16.msra.mxu0 0
        %1464 = vmatprep.subr.bf16.mxu0 0
        %1465 = vmatpush2.bf16.msra.mxu0 0
        %1466 = vmatprep.mubr.bf16.mxu0 0
        %1467 = vmatmul.mubr.bf16.gmra.mxu0 %v1432
        %v1468 = vpop.f32.mrf.mxu0
        %v1469 = vadd.f32 0.0, %v1468
        %v1470 = vpop.f32.mrf.mxu0
        %v1471 = vpop.f32.mrf.mxu0
        %v1472 = vpop.f32.mrf.mxu0
        %1473 = vdwg.mxu0
        %v1476 = vunpack.c.l.b16 %v1071
        %v1477 = vunpack.c.l.b16 %v1072
        %v1478 = vpack.c.b16 %v1477, %v1476
        %v1481 = vsel %vm1278, %v1326, 0
        %1483 = vmatprep.subr.bf16.mxu0 0
        %1484 = vmatpush1.bf16.msra.mxu0 0
        %1485 = vmatprep.subr.bf16.mxu0 0
        %1486 = vmatpush1.bf16.msra.mxu0 0
        %1487 = vmatprep.subr.bf16.mxu0 0
        %1488 = vmatpush1.bf16.msra.mxu0 0
        %1489 = vmatprep.subr.bf16.mxu0 0
        %1490 = vmatpush1.bf16.msra.mxu0 0
        %1491 = vmatprep.subr.bf16.mxu0 0
        %1492 = vmatpush1.bf16.msra.mxu0 0
        %1493 = vmatprep.subr.bf16.mxu0 0
        %1494 = vmatpush1.bf16.msra.mxu0 0
        %1495 = vmatprep.subr.bf16.mxu0 0
        %1496 = vmatpush1.bf16.msra.mxu0 0
        %1497 = vmatprep.subr.bf16.mxu0 0
        %1498 = vmatpush1.bf16.msra.mxu0 %v1478
        %1499 = vmatprep.subr.bf16.mxu0 0
        %1500 = vmatpush2.bf16.msra.mxu0 0
        %1501 = vmatprep.subr.bf16.mxu0 0
        %1502 = vmatpush2.bf16.msra.mxu0 0
        %1503 = vmatprep.subr.bf16.mxu0 0
        %1504 = vmatpush2.bf16.msra.mxu0 0
        %1505 = vmatprep.subr.bf16.mxu0 0
        %1506 = vmatpush2.bf16.msra.mxu0 0
        %1507 = vmatprep.subr.bf16.mxu0 0
        %1508 = vmatpush2.bf16.msra.mxu0 0
        %1509 = vmatprep.subr.bf16.mxu0 0
        %1510 = vmatpush2.bf16.msra.mxu0 0
        %1511 = vmatprep.subr.bf16.mxu0 0
        %1512 = vmatpush2.bf16.msra.mxu0 0
        %1513 = vmatprep.subr.bf16.mxu0 0
        %1514 = vmatpush2.bf16.msra.mxu0 0
        %1515 = vmatprep.mubr.bf16.mxu0 0
        %1516 = vmatmul.mubr.bf16.gmra.mxu0 %v1481
        %v1517 = vpop.f32.mrf.mxu0
        %v1518 = vadd.f32 0.0, %v1517
        %v1519 = vpop.f32.mrf.mxu0
        %v1520 = vpop.f32.mrf.mxu0
        %v1521 = vpop.f32.mrf.mxu0
        %1522 = vdwg.mxu0
        %1524 = vrot.lane.b32.xlu0 %v1420, 8
        %v1525 = vpop.permute.xlu0 %1524
        %1528 = vrot.lane.b32.xlu0 %v1469, 16
        %v1529 = vpop.permute.xlu0 %1528
        %1532 = vrot.lane.b32.xlu0 %v1518, 24
        %v1533 = vpop.permute.xlu0 %1532
        %v1535 = vsel %vm1078, %v1371, %v1525
        %v1536 = vsel %vm1278, %v1535, %v1529
        %vm1537 = vcmask 195584
        %v1538 = vsel %vm1537, %v1536, %v1533
        %v1539 = vpack.c.bf16 %v1538, %v1538
        %v1540 = vld [vmem:[#allocation9] sm:$0xf]
        %v1541 = vld [vmem:[#allocation9 + $0x4] sm:$0xf]
        %v1542 = vld [vmem:[#allocation9 + $0x8] sm:$0xf]
        %v1543 = vld [vmem:[#allocation9 + $0xc] sm:$0xf]
        %v1545 = vlaneseq
        %v1546 = vshrl.u32 %v1545, 7
        %v1547 = vsub.s32 0, %v1546
        %v1548 = vrot.slane %v638, %v1547
        %v1554 = vunpack.c.l.b16 %v1540
        %v1555 = vunpack.c.l.b16 %v1541
        %v1556 = vunpack.c.l.b16 %v1542
        %v1557 = vunpack.c.l.b16 %v1543
        %v1558 = vpack.c.b16 %v1555, %v1554
        %v1559 = vpack.c.b16 %v1557, %v1556
        %v1563 = vsel %vm947, %v1539, 0
        %1565 = vmatprep.subr.bf16.mxu0 0
        %1566 = vmatpush1.bf16.msra.mxu0 0
        %1567 = vmatprep.subr.bf16.mxu0 0
        %1568 = vmatpush1.bf16.msra.mxu0 0
        %1569 = vmatprep.subr.bf16.mxu0 0
        %1570 = vmatpush1.bf16.msra.mxu0 0
        %1571 = vmatprep.subr.bf16.mxu0 0
        %1572 = vmatpush1.bf16.msra.mxu0 0
        %1573 = vmatprep.subr.bf16.mxu0 0
        %1574 = vmatpush1.bf16.msra.mxu0 0
        %1575 = vmatprep.subr.bf16.mxu0 0
        %1576 = vmatpush1.bf16.msra.mxu0 0
        %1577 = vmatprep.subr.bf16.mxu0 0
        %1578 = vmatpush1.bf16.msra.mxu0 %v1559
        %1579 = vmatprep.subr.bf16.mxu0 0
        %1580 = vmatpush1.bf16.msra.mxu0 %v1558
        %1581 = vmatprep.subr.bf16.mxu0 0
        %1582 = vmatpush2.bf16.msra.mxu0 0
        %1583 = vmatprep.subr.bf16.mxu0 0
        %1584 = vmatpush2.bf16.msra.mxu0 0
        %1585 = vmatprep.subr.bf16.mxu0 0
        %1586 = vmatpush2.bf16.msra.mxu0 0
        %1587 = vmatprep.subr.bf16.mxu0 0
        %1588 = vmatpush2.bf16.msra.mxu0 0
        %1589 = vmatprep.subr.bf16.mxu0 0
        %1590 = vmatpush2.bf16.msra.mxu0 0
        %1591 = vmatprep.subr.bf16.mxu0 0
        %1592 = vmatpush2.bf16.msra.mxu0 0
        %1593 = vmatprep.subr.bf16.mxu0 0
        %1594 = vmatpush2.bf16.msra.mxu0 0
        %1595 = vmatprep.subr.bf16.mxu0 0
        %1596 = vmatpush2.bf16.msra.mxu0 0
        %1597 = vmatprep.mubr.bf16.mxu0 0
        %1598 = vmatmul.mubr.bf16.gmra.mxu0 %v1563
        %v1599 = vpop.f32.mrf.mxu0
        %v1600 = vadd.f32 %v1548, %v1599
        %v1601 = vpop.f32.mrf.mxu0
        %v1602 = vpop.f32.mrf.mxu0
        %v1603 = vpop.f32.mrf.mxu0
        %1604 = vdwg.mxu0
        %v1605 = vadd.f32 %v946, %v1600
        %v1606 = vsel %vm947, %v1605, 0.0
        %1607 = vadd.xlane.f32.xlu0 %v1606
        %v1608 = vpop.xlane.xlu0 %1607
        %v1609 = vmul.f32 %v1608, %v951
        %v1610 = vsub.f32 %v1605, %v1609
        %v1611 = vmul.f32 %v1610, %v1610
        %v1612 = vsel %vm947, %v1611, 0.0
        %1613 = vadd.xlane.f32.xlu0 %v1612
        %v1614 = vpop.xlane.xlu0 %1613
        %v1615 = vmul.f32 %v1614, %v951
        %v1616 = vadd.f32 %v1615, 1e-05
        %v1617 = vrsqrt.pop %v1616
        %v1618 = vmul.f32 %v1610, %v1617
        %v1620 = vlaneseq
        %v1621 = vshrl.u32 %v1620, 7
        %v1622 = vsub.s32 0, %v1621
        %v1623 = vrot.slane %v635, %v1622
        %v1625 = vmul.f32 %v1618, %v1623
        %v1627 = vlaneseq
        %v1628 = vshrl.u32 %v1627, 7
        %v1629 = vsub.s32 0, %v1628
        %v1630 = vrot.slane %v636, %v1629
        %v1632 = vadd.f32 %v1625, %v1630
        %v1633 = vpack.c.bf16 %v1632, %v1632
        %v1634 = vld [vmem:[#allocation10] sm:$0xf]
        %v1635 = vld [vmem:[#allocation10 + $0x4] sm:$0xf]
        %v1636 = vld [vmem:[#allocation10 + $0x8] sm:$0xf]
        %v1637 = vld [vmem:[#allocation10 + $0xc] sm:$0xf]
        %v1639 = vlaneseq
        %v1640 = vshrl.u32 %v1639, 7
        %v1641 = vsub.s32 0, %v1640
        %v1642 = vrot.slane %v639, %v1641
        %v1648 = vunpack.c.l.b16 %v1634
        %v1649 = vunpack.c.l.b16 %v1635
        %v1650 = vunpack.c.l.b16 %v1636
        %v1651 = vunpack.c.l.b16 %v1637
        %v1652 = vpack.c.b16 %v1649, %v1648
        %v1653 = vpack.c.b16 %v1651, %v1650
        %v1657 = vsel %vm947, %v1633, 0
        %1659 = vmatprep.subr.bf16.mxu0 0
        %1660 = vmatpush1.bf16.msra.mxu0 0
        %1661 = vmatprep.subr.bf16.mxu0 0
        %1662 = vmatpush1.bf16.msra.mxu0 0
        %1663 = vmatprep.subr.bf16.mxu0 0
        %1664 = vmatpush1.bf16.msra.mxu0 0
        %1665 = vmatprep.subr.bf16.mxu0 0
        %1666 = vmatpush1.bf16.msra.mxu0 0
        %1667 = vmatprep.subr.bf16.mxu0 0
        %1668 = vmatpush1.bf16.msra.mxu0 0
        %1669 = vmatprep.subr.bf16.mxu0 0
        %1670 = vmatpush1.bf16.msra.mxu0 0
        %1671 = vmatprep.subr.bf16.mxu0 0
        %1672 = vmatpush1.bf16.msra.mxu0 %v1653
        %1673 = vmatprep.subr.bf16.mxu0 0
        %1674 = vmatpush1.bf16.msra.mxu0 %v1652
        %1675 = vmatprep.subr.bf16.mxu0 0
        %1676 = vmatpush2.bf16.msra.mxu0 0
        %1677 = vmatprep.subr.bf16.mxu0 0
        %1678 = vmatpush2.bf16.msra.mxu0 0
        %1679 = vmatprep.subr.bf16.mxu0 0
        %1680 = vmatpush2.bf16.msra.mxu0 0
        %1681 = vmatprep.subr.bf16.mxu0 0
        %1682 = vmatpush2.bf16.msra.mxu0 0
        %1683 = vmatprep.subr.bf16.mxu0 0
        %1684 = vmatpush2.bf16.msra.mxu0 0
        %1685 = vmatprep.subr.bf16.mxu0 0
        %1686 = vmatpush2.bf16.msra.mxu0 0
        %1687 = vmatprep.subr.bf16.mxu0 0
        %1688 = vmatpush2.bf16.msra.mxu0 0
        %1689 = vmatprep.subr.bf16.mxu0 0
        %1690 = vmatpush2.bf16.msra.mxu0 0
        %1691 = vmatprep.mubr.bf16.mxu0 0
        %1692 = vmatmul.mubr.bf16.gmra.mxu0 %v1657
        %v1693 = vpop.f32.mrf.mxu0
        %v1694 = vadd.f32 %v1642, %v1693
        %v1695 = vpop.f32.mrf.mxu0
        %v1696 = vpop.f32.mrf.mxu0
        %v1697 = vpop.f32.mrf.mxu0
        %1698 = vdwg.mxu0
        %v1699 = vmax.f32 %v1694, 0.0
        %v1700 = vpack.c.bf16 %v1699, %v1699
        %v1701 = vld [vmem:[%s11] sm:$0xf]
        %v1702 = vld [vmem:[%s11 + $0x4] sm:$0xf]
        %v1703 = vld [vmem:[%s11 + $0x8] sm:$0xf]
        %v1704 = vld [vmem:[%s11 + $0xc] sm:$0xf]
        %v1705 = vld [vmem:[%s11 + $0x10] sm:$0xf]
        %v1706 = vld [vmem:[%s11 + $0x14] sm:$0xf]
        %v1707 = vld [vmem:[%s11 + $0x18] sm:$0xf]
        %v1708 = vld [vmem:[%s11 + $0x1c] sm:$0xf]
        %v1710 = vlaneseq
        %v1711 = vshrl.u32 %v1710, 7
        %v1712 = vsub.s32 0, %v1711
        %v1713 = vrot.slane %v640, %v1712
        %v1723 = vunpack.c.l.b16 %v1701
        %v1724 = vunpack.c.l.b16 %v1702
        %v1725 = vunpack.c.l.b16 %v1703
        %v1726 = vunpack.c.l.b16 %v1704
        %v1727 = vunpack.c.l.b16 %v1705
        %v1728 = vunpack.c.l.b16 %v1706
        %v1729 = vunpack.c.l.b16 %v1707
        %v1730 = vunpack.c.l.b16 %v1708
        %v1731 = vpack.c.b16 %v1724, %v1723
        %v1732 = vpack.c.b16 %v1726, %v1725
        %v1733 = vpack.c.b16 %v1728, %v1727
        %v1734 = vpack.c.b16 %v1730, %v1729
        %vm1739 = vcmask 523264
        %v1741 = vsel %vm1739, %v1700, 0
        %1743 = vmatprep.subr.bf16.mxu0 0
        %1744 = vmatpush1.bf16.msra.mxu0 0
        %1745 = vmatprep.subr.bf16.mxu0 0
        %1746 = vmatpush1.bf16.msra.mxu0 0
        %1747 = vmatprep.subr.bf16.mxu0 0
        %1748 = vmatpush1.bf16.msra.mxu0 0
        %1749 = vmatprep.subr.bf16.mxu0 0
        %1750 = vmatpush1.bf16.msra.mxu0 0
        %1751 = vmatprep.subr.bf16.mxu0 0
        %1752 = vmatpush1.bf16.msra.mxu0 %v1734
        %1753 = vmatprep.subr.bf16.mxu0 0
        %1754 = vmatpush1.bf16.msra.mxu0 %v1733
        %1755 = vmatprep.subr.bf16.mxu0 0
        %1756 = vmatpush1.bf16.msra.mxu0 %v1732
        %1757 = vmatprep.subr.bf16.mxu0 0
        %1758 = vmatpush1.bf16.msra.mxu0 %v1731
        %1759 = vmatprep.subr.bf16.mxu0 0
        %1760 = vmatpush2.bf16.msra.mxu0 0
        %1761 = vmatprep.subr.bf16.mxu0 0
        %1762 = vmatpush2.bf16.msra.mxu0 0
        %1763 = vmatprep.subr.bf16.mxu0 0
        %1764 = vmatpush2.bf16.msra.mxu0 0
        %1765 = vmatprep.subr.bf16.mxu0 0
        %1766 = vmatpush2.bf16.msra.mxu0 0
        %1767 = vmatprep.subr.bf16.mxu0 0
        %1768 = vmatpush2.bf16.msra.mxu0 0
        %1769 = vmatprep.subr.bf16.mxu0 0
        %1770 = vmatpush2.bf16.msra.mxu0 0
        %1771 = vmatprep.subr.bf16.mxu0 0
        %1772 = vmatpush2.bf16.msra.mxu0 0
        %1773 = vmatprep.subr.bf16.mxu0 0
        %1774 = vmatpush2.bf16.msra.mxu0 0
        %1775 = vmatprep.mubr.bf16.mxu0 0
        %1776 = vmatmul.mubr.bf16.gmra.mxu0 %v1741
        %v1777 = vpop.f32.mrf.mxu0
        %v1778 = vadd.f32 %v1713, %v1777
        %v1779 = vpop.f32.mrf.mxu0
        %v1780 = vpop.f32.mrf.mxu0
        %v1781 = vpop.f32.mrf.mxu0
        %1782 = vdwg.mxu0
        %v1783 = vadd.f32 %v1605, %v1778
        %1784 = vst.msk [vmem:[%s626] sm:$0xff] %vm947, %v1783
        %s1785 = sand.u32 %s418, 1
        %s1786 = scalar_lea.sflag [#allocation6], %s1785
        %s1787 = sand.u32 %s418, 1
        %s1788 = smul.addr %s1787, 8
        %s1789 = scalar_lea.vmem [#allocation13], %s1788
        // Predicated region
        $region113: #{tpu_custom_call.1} parent=87 // pred_check
          %p1790 = pneg %p428
        $region114: #{tpu_custom_call.1} parent=87 // pred_check_branch
          %1792 = sbr.rel (%p1790) target = $region116
        $region115: #{tpu_custom_call.1} parent=87 // pred_region
          %s1794 = ssub.s32 128, 128
          %1795 = vsyncadd %s1786, %s1794
          %s1796 = smul.addr %s38, 2
          %s1797 = sadd.s32 %s39, %s1796
          %s1798 = smul.addr %s1797, 128
          %s1799 = scalar_lea.hbm %s17, %s1798
          %s1801 = sshll.u32 %s1789, 4
          %s1802 = int_to_ptr.vmem [resolvable:$true] %s1801
          %1804 = dma.vmem_to_hbm [thread:$0]  %s1802, 128, %s1799, %s1786
        $region116: #{tpu_custom_call.1} parent=87 // pred_fallthru
          _
      $region88: #{tpu_custom_call.1} parent=5 // pred_fallthru
        _
      %p1805 = scmp.le.s32.totalorder 2, %s29
      // Predicated region
      $region117: #{tpu_custom_call.1} parent=5 // pred_check
        %p1806 = pneg %p1805
      $region118: #{tpu_custom_call.1} parent=5 // pred_check_branch
        %1808 = sbr.rel (%p1806) target = $region120
      $region119: #{tpu_custom_call.1} parent=5 // pred_region
        %s1809 = ssub.s32 %s29, 2
        // Predicated region
        $region121: #{tpu_custom_call.1} parent=119 // pred_check
          %p1810 = pneg %p434
        $region122: #{tpu_custom_call.1} parent=119 // pred_check_branch
          %1812 = sbr.rel (%p1810) target = $region124
        $region123: #{tpu_custom_call.1} parent=119 // pred_region
          %s1813 = sand.u32 %s419, 1
          %s1814 = scalar_lea.sflag [#allocation6], %s1813
          %s1815 = sand.u32 %s419, 1
          %s1816 = smul.addr %s1815, 8
          %s1817 = scalar_lea.vmem [#allocation13], %s1816
          %1818 = dma.done %s1814, 128
        $region124: #{tpu_custom_call.1} parent=119 // pred_fallthru
          _
      $region120: #{tpu_custom_call.1} parent=5 // pred_fallthru
        _
    $region6: #{tpu_custom_call.1} parent=1 // loop_footer
      %s33 = sadd.s32 1, %s29
    $region7: #{tpu_custom_call.1} parent=1 // loop_footer_branch
      %28 = sbr.rel target = $region3
    $region8: #{tpu_custom_call.1} parent=1 // loop_exit
      _
    %1819 = vsyncpa [#allocation5], 1
    %s1820 = scalar_lea.sflag [#allocation5], 1
    %1821 = vsyncpa %s1820, 1
    %1822 = vsyncpa [#allocation8], 1
    %1823 = vsyncpa [#allocation11], 1
    %1824 = vsyncpa [#allocation6], 1
    %s1825 = scalar_lea.sflag [#allocation6], 1
    %1826 = vsyncpa %s1825, 1

</llo_original>
